<compile_context>
chip_gen: v7x
topology: tpu7x:2x2x1
jax: 0.10.0
libtpu: 0.0.40
codegen_flags: <defaults>
</compile_context>

<pallas_src>
import functools

import jax
import jax.numpy as jnp
from jax.experimental import pallas as pl
from jax.experimental.pallas import tpu as pltpu

# ----------------------------- model config ------------------------------
VOCAB_SIZE = 50
LABEL_SIZE = 5
EMBEDDING_DIM = 16
HIDDEN_SIZE = 32
NUM_LAYERS = 2          # kernel below is specialized to 2 layers

BATCH = 2
SEQ = 8
BPAD = 8                # batch padded to the f32 sublane tile

E = EMBEDDING_DIM
H = HIDDEN_SIZE
G4 = 4 * H              # 128 gate lanes per direction

# ---------------- packed weight-slab row offsets (all multiples of 8) ------
OFF_WIH0_F = 0                       # (E, 4H)
OFF_WIH0_B = OFF_WIH0_F + E          # 16
OFF_WHH0_F = OFF_WIH0_B + E          # 32   (H, 4H)
OFF_WHH0_B = OFF_WHH0_F + H          # 64
OFF_B0_F   = OFF_WHH0_B + H          # 96   (1, 4H) in row 0 of an 8-row pad
OFF_B0_B   = OFF_B0_F + 8            # 104
OFF_WIH1_F = OFF_B0_B + 8            # 112  (2H, 4H)
OFF_WIH1_B = OFF_WIH1_F + 2 * H      # 176
OFF_WHH1_F = OFF_WIH1_B + 2 * H      # 240  (H, 4H)
OFF_WHH1_B = OFF_WHH1_F + H          # 272
OFF_B1_F   = OFF_WHH1_B + H          # 304
OFF_B1_B   = OFF_B1_F + 8            # 312
OFF_WOUT   = OFF_B1_B + 8            # 320  (2H, L) in lanes 0:L
OFF_BOUT   = OFF_WOUT + 2 * H        # 384
SLAB_ROWS  = OFF_BOUT + 8            # 392


# --------------------------- fused Pallas kernel --------------------------
def _fused_model_kernel(x_ref, w_ref, o_ref,
                        gin_f, gin_b, y_f, y_b,
                        *, hidden, seq_len, bpad):
    """Whole model (2 bi-LSTM layers + Linear) in one VMEM-resident program.

    x_ref : (T*Bpad, E)   time-major, batch padded to the sublane tile.
    w_ref : (SLAB_ROWS, 4H) packed weight slab (gate order [i, f, o, g]).
    o_ref : (T*Bpad, 128) lane-dense output, logits live in lanes 0:LABEL.
    gin_f / gin_b : (T*Bpad, 4H) scratch — hoisted input projections.
    y_f / y_b     : (T*Bpad, H)  scratch — per-direction hidden outputs.
    """
    Hd, T, B = hidden, seq_len, bpad
    H3 = 3 * Hd

    def cell(g_pre, h, c, whh):
        # MRB-friendly add-after-dot form (single 128-wide MXU pass).
        gates = g_pre + jnp.dot(h, whh, preferred_element_type=jnp.float32)
        sg = jax.nn.sigmoid(gates[:, :H3])        # i, f, o lanes only
        g = jnp.tanh(gates[:, H3:])               # g lanes only
        i = sg[:, 0:Hd]
        f = sg[:, Hd:2 * Hd]
        o = sg[:, 2 * Hd:H3]
        c_new = f * c + i * g
        return o * jnp.tanh(c_new), c_new

    def run_layer(whh_f, whh_b):
        """Recurrence over gin_f/gin_b scratch; streams h into y_f/y_b."""
        h_f = jnp.zeros((B, Hd), jnp.float32)
        h_b = jnp.zeros((B, Hd), jnp.float32)
        c_f = jnp.zeros((B, Hd), jnp.float32)
        c_b = jnp.zeros((B, Hd), jnp.float32)
        for t in range(T):                        # static, fully unrolled
            tb = T - 1 - t
            h_f, c_f = cell(gin_f[t * B:(t + 1) * B, :], h_f, c_f, whh_f)
            h_b, c_b = cell(gin_b[tb * B:(tb + 1) * B, :], h_b, c_b, whh_b)
            y_f[t * B:(t + 1) * B, :] = h_f       # 8-row aligned stores
            y_b[tb * B:(tb + 1) * B, :] = h_b

    # ------------------------------ layer 0 -------------------------------
    x = x_ref[...]                                           # (T*B, E)
    gin_f[...] = (jnp.dot(x, w_ref[OFF_WIH0_F:OFF_WIH0_F + E, :],
                          preferred_element_type=jnp.float32)
                  + w_ref[OFF_B0_F:OFF_B0_F + 1, :])
    gin_b[...] = (jnp.dot(x, w_ref[OFF_WIH0_B:OFF_WIH0_B + E, :],
                          preferred_element_type=jnp.float32)
                  + w_ref[OFF_B0_B:OFF_B0_B + 1, :])
    run_layer(w_ref[OFF_WHH0_F:OFF_WHH0_F + Hd, :],
              w_ref[OFF_WHH0_B:OFF_WHH0_B + Hd, :])

    # ------------------------------ layer 1 -------------------------------
    yf0 = y_f[...]                                           # (T*B, H)
    yb0 = y_b[...]
    gin_f[...] = (jnp.dot(yf0, w_ref[OFF_WIH1_F:OFF_WIH1_F + Hd, :],
                          preferred_element_type=jnp.float32)
                  + jnp.dot(yb0, w_ref[OFF_WIH1_F + Hd:OFF_WIH1_F + 2 * Hd, :],
                            preferred_element_type=jnp.float32)
                  + w_ref[OFF_B1_F:OFF_B1_F + 1, :])
    gin_b[...] = (jnp.dot(yf0, w_ref[OFF_WIH1_B:OFF_WIH1_B + Hd, :],
                          preferred_element_type=jnp.float32)
                  + jnp.dot(yb0, w_ref[OFF_WIH1_B + Hd:OFF_WIH1_B + 2 * Hd, :],
                            preferred_element_type=jnp.float32)
                  + w_ref[OFF_B1_B:OFF_B1_B + 1, :])
    run_layer(w_ref[OFF_WHH1_F:OFF_WHH1_F + Hd, :],
              w_ref[OFF_WHH1_B:OFF_WHH1_B + Hd, :])

    # --------------- final Linear: one lane-dense 128-wide store ----------
    yf1 = y_f[...]
    yb1 = y_b[...]
    o_ref[...] = (jnp.dot(yf1, w_ref[OFF_WOUT:OFF_WOUT + Hd, :],
                          preferred_element_type=jnp.float32)
                  + jnp.dot(yb1, w_ref[OFF_WOUT + Hd:OFF_WOUT + 2 * Hd, :],
                            preferred_element_type=jnp.float32)
                  + w_ref[OFF_BOUT:OFF_BOUT + 1, :])


# ---------------------------- Pallas wrapper -------------------------------
def fused_model_pallas(x2d, slab):
    """x2d: (T*BPAD, E) time-major padded rows; slab: packed weights."""
    TB = x2d.shape[0]
    return pl.pallas_call(
        functools.partial(_fused_model_kernel,
                          hidden=HIDDEN_SIZE, seq_len=SEQ, bpad=BPAD),
        out_shape=jax.ShapeDtypeStruct((TB, 128), jnp.float32),
        in_specs=[pl.BlockSpec(memory_space=pltpu.MemorySpace.VMEM),
                  pl.BlockSpec(memory_space=pltpu.MemorySpace.VMEM)],
        out_specs=pl.BlockSpec(memory_space=pltpu.MemorySpace.VMEM),
        scratch_shapes=[
            pltpu.VMEM((TB, 4 * HIDDEN_SIZE), jnp.float32),   # gin_f
            pltpu.VMEM((TB, 4 * HIDDEN_SIZE), jnp.float32),   # gin_b
            pltpu.VMEM((TB, HIDDEN_SIZE), jnp.float32),       # y_f
            pltpu.VMEM((TB, HIDDEN_SIZE), jnp.float32),       # y_b
        ],
    )(x2d, slab)


# ------------------------------ parameters ---------------------------------
def init_params(key):
    ks = jax.random.split(key, 3 + 4 * NUM_LAYERS * 2)
    bound = 1.0 / jnp.sqrt(HIDDEN_SIZE)

    params = {
        "embedding": jax.random.normal(ks[0], (VOCAB_SIZE, EMBEDDING_DIM),
                                       jnp.float32),
        "out_w": jax.random.uniform(ks[1], (2 * HIDDEN_SIZE, LABEL_SIZE),
                                    jnp.float32, -bound, bound),
        "out_b": jax.random.uniform(ks[2], (LABEL_SIZE,),
                                    jnp.float32, -bound, bound),
        "lstm": [],
    }
    idx = 3
    for layer in range(NUM_LAYERS):
        d_in = EMBEDDING_DIM if layer == 0 else 2 * HIDDEN_SIZE
        layer_dirs = []
        for _direction in range(2):  # forward, backward
            wih = jax.random.uniform(ks[idx], (d_in, 4 * HIDDEN_SIZE),
                                     jnp.float32, -bound, bound)
            whh = jax.random.uniform(ks[idx + 1], (HIDDEN_SIZE, 4 * HIDDEN_SIZE),
                                     jnp.float32, -bound, bound)
            b_ih = jax.random.uniform(ks[idx + 2], (4 * HIDDEN_SIZE,),
                                      jnp.float32, -bound, bound)
            b_hh = jax.random.uniform(ks[idx + 3], (4 * HIDDEN_SIZE,),
                                      jnp.float32, -bound, bound)
            layer_dirs.append((wih, whh, b_ih + b_hh))
            idx += 4
        params["lstm"].append(layer_dirs)
    return params


def pack_params(params):
    """Pack ALL non-embedding weights into one (SLAB_ROWS, 128) f32 slab.

    Gate columns are permuted (i, f, g, o) -> (i, f, o, g) so the kernel can
    apply sigmoid to lanes [0:3H) and tanh to lanes [3H:4H) only.
    """
    Hd = HIDDEN_SIZE

    def reorder(w):  # last dim 4H: (i, f, g, o) -> (i, f, o, g)
        return jnp.concatenate(
            [w[..., 0:Hd], w[..., Hd:2 * Hd],
             w[..., 3 * Hd:4 * Hd], w[..., 2 * Hd:3 * Hd]], axis=-1)

    slab = jnp.zeros((SLAB_ROWS, 4 * Hd), jnp.float32)

    def put(s, off, a):
        a = jnp.asarray(a, jnp.float32)
        return s.at[off:off + a.shape[0], :a.shape[1]].set(a)

    (wih0_f, whh0_f, b0_f), (wih0_b, whh0_b, b0_b) = params["lstm"][0]
    (wih1_f, whh1_f, b1_f), (wih1_b, whh1_b, b1_b) = params["lstm"][1]

    slab = put(slab, OFF_WIH0_F, reorder(wih0_f))
    slab = put(slab, OFF_WIH0_B, reorder(wih0_b))
    slab = put(slab, OFF_WHH0_F, reorder(whh0_f))
    slab = put(slab, OFF_WHH0_B, reorder(whh0_b))
    slab = put(slab, OFF_B0_F, reorder(b0_f).reshape(1, 4 * Hd))
    slab = put(slab, OFF_B0_B, reorder(b0_b).reshape(1, 4 * Hd))
    slab = put(slab, OFF_WIH1_F, reorder(wih1_f))
    slab = put(slab, OFF_WIH1_B, reorder(wih1_b))
    slab = put(slab, OFF_WHH1_F, reorder(whh1_f))
    slab = put(slab, OFF_WHH1_B, reorder(whh1_b))
    slab = put(slab, OFF_B1_F, reorder(b1_f).reshape(1, 4 * Hd))
    slab = put(slab, OFF_B1_B, reorder(b1_b).reshape(1, 4 * Hd))
    slab = put(slab, OFF_WOUT, params["out_w"])                    # (2H, L)
    slab = put(slab, OFF_BOUT, params["out_b"].reshape(1, LABEL_SIZE))
    return slab


# ------------------------------ full model ---------------------------------
@jax.jit
def model_forward(slab, embedding, tokens):
    B, T = tokens.shape
    # Embedding lookup (gather) kept as trivial XLA glue.
    emb = jnp.take(embedding, tokens, axis=0)                 # (B, T, E)
    x = jnp.transpose(emb, (1, 0, 2))                         # (T, B, E)
    x = jnp.pad(x, ((0, 0), (0, BPAD - B), (0, 0)))           # (T, BPAD, E)
    x2d = x.reshape(T * BPAD, EMBEDDING_DIM)                  # time-major rows
    out128 = fused_model_pallas(x2d, slab)                    # (T*BPAD, 128)
    out = out128.reshape(T, BPAD, 128)[:, :B, :LABEL_SIZE]    # drop padding
    return jnp.transpose(out, (1, 0, 2))                      # (B, T, L)


# --------------------------- pure-JAX reference ----------------------------
def _lstm_layer_ref(x, wih, whh, b):
    Hd = whh.shape[0]
    B = x.shape[1]

    def step(carry, x_t):
        h, c = carry
        gates = x_t @ wih + h @ whh + b
        i = jax.nn.sigmoid(gates[:, 0 * Hd:1 * Hd])
        f = jax.nn.sigmoid(gates[:, 1 * Hd:2 * Hd])
        g = jnp.tanh(gates[:, 2 * Hd:3 * Hd])
        o = jax.nn.sigmoid(gates[:, 3 * Hd:4 * Hd])
        c = f * c + i * g
        h = o * jnp.tanh(c)
        return (h, c), h

    init = (jnp.zeros((B, Hd), jnp.float32), jnp.zeros((B, Hd), jnp.float32))
    _, hs = jax.lax.scan(step, init, x)
    return hs


def model_forward_ref(params, tokens):
    emb = jnp.take(params["embedding"], tokens, axis=0)
    x = jnp.transpose(emb, (1, 0, 2))
    for layer_dirs in params["lstm"]:
        (wih_f, whh_f, b_f), (wih_b, whh_b, b_b) = layer_dirs
        h_fwd = _lstm_layer_ref(x, wih_f, whh_f, b_f)
        h_bwd = _lstm_layer_ref(x[::-1], wih_b, whh_b, b_b)[::-1]
        x = jnp.concatenate([h_fwd, h_bwd], axis=-1)
    logits = x @ params["out_w"] + params["out_b"]
    return jnp.transpose(logits, (1, 0, 2))


# --------------------------------- main ------------------------------------
if __name__ == "__main__":
    key = jax.random.PRNGKey(0)
    pkey, tkey = jax.random.split(key)

    params = init_params(pkey)
    slab = pack_params(params)
    tokens = jax.random.randint(tkey, (BATCH, SEQ), 0, VOCAB_SIZE, jnp.int32)

    out = model_forward(slab, params["embedding"], tokens)
    out = jax.block_until_ready(out)

    ref = model_forward_ref(params, tokens)
    assert out.shape == (BATCH, SEQ, LABEL_SIZE), out.shape
    assert jnp.max(jnp.abs(out - ref)) < 5e-5, "mismatch vs pure-JAX reference"

    print("KERNEL_OK")
</pallas_src>

<mosaic_0001>
module attributes {stable_mosaic.version = 11 : i64} {
  func.func @_fused_model_kernel(%arg0: memref<64x16xf32, #tpu.memory_space<vmem>>, %arg1: memref<392x128xf32, #tpu.memory_space<vmem>>, %arg2: memref<64x128xf32, #tpu.memory_space<vmem>>, %arg3: memref<64x128xf32, #tpu.memory_space<vmem>>, %arg4: memref<64x128xf32, #tpu.memory_space<vmem>>, %arg5: memref<64x32xf32, #tpu.memory_space<vmem>>, %arg6: memref<64x32xf32, #tpu.memory_space<vmem>>) attributes {dimension_semantics = [], scalar_prefetch = 0 : i64, scratch_operands = 4 : i64, tpu.core_type = #tpu.core_type<tc>} {
    %c0 = arith.constant 0 : index
    %c0_0 = arith.constant 0 : index
    %0 = vector.load %arg0[%c0, %c0_0] : memref<64x16xf32, #tpu.memory_space<vmem>>, vector<64x16xf32>
    %c0_1 = arith.constant 0 : index
    %c0_2 = arith.constant 0 : index
    %1 = vector.load %arg1[%c0_1, %c0_2] : memref<392x128xf32, #tpu.memory_space<vmem>>, vector<16x128xf32>
    %cst = arith.constant dense<0.000000e+00> : vector<64x128xf32>
    %2 = tpu.matmul %0, %1, %cst {dimension_numbers = #tpu.dot_dimension_numbers<[1], [0], [0], [1], [0, 0, 1, 1], [], []>} : vector<64x16xf32>, vector<16x128xf32>, vector<64x128xf32> -> vector<64x128xf32>
    %c96 = arith.constant 96 : index
    %c0_3 = arith.constant 0 : index
    %3 = vector.load %arg1[%c96, %c0_3] : memref<392x128xf32, #tpu.memory_space<vmem>>, vector<1x128xf32>
    %4 = vector.broadcast %3 : vector<1x128xf32> to vector<64x128xf32>
    %5 = arith.addf %2, %4 : vector<64x128xf32>
    %c0_4 = arith.constant 0 : index
    %c0_5 = arith.constant 0 : index
    %6 = vector.load %arg3[%c0_4, %c0_5] : memref<64x128xf32, #tpu.memory_space<vmem>>, vector<64x128xf32>
    tpu.vector_store %arg3[%c0_4, %c0_5], %5 {strides = array<i32>} : memref<64x128xf32, #tpu.memory_space<vmem>>, vector<64x128xf32>,
    %c16 = arith.constant 16 : index
    %c0_6 = arith.constant 0 : index
    %7 = vector.load %arg1[%c16, %c0_6] : memref<392x128xf32, #tpu.memory_space<vmem>>, vector<16x128xf32>
    %cst_7 = arith.constant dense<0.000000e+00> : vector<64x128xf32>
    %8 = tpu.matmul %0, %7, %cst_7 {dimension_numbers = #tpu.dot_dimension_numbers<[1], [0], [0], [1], [0, 0, 1, 1], [], []>} : vector<64x16xf32>, vector<16x128xf32>, vector<64x128xf32> -> vector<64x128xf32>
    %c104 = arith.constant 104 : index
    %c0_8 = arith.constant 0 : index
    %9 = vector.load %arg1[%c104, %c0_8] : memref<392x128xf32, #tpu.memory_space<vmem>>, vector<1x128xf32>
    %10 = vector.broadcast %9 : vector<1x128xf32> to vector<64x128xf32>
    %11 = arith.addf %8, %10 : vector<64x128xf32>
    %c0_9 = arith.constant 0 : index
    %c0_10 = arith.constant 0 : index
    %12 = vector.load %arg4[%c0_9, %c0_10] : memref<64x128xf32, #tpu.memory_space<vmem>>, vector<64x128xf32>
    tpu.vector_store %arg4[%c0_9, %c0_10], %11 {strides = array<i32>} : memref<64x128xf32, #tpu.memory_space<vmem>>, vector<64x128xf32>,
    %c32 = arith.constant 32 : index
    %c0_11 = arith.constant 0 : index
    %13 = vector.load %arg1[%c32, %c0_11] : memref<392x128xf32, #tpu.memory_space<vmem>>, vector<32x128xf32>
    %c64 = arith.constant 64 : index
    %c0_12 = arith.constant 0 : index
    %14 = vector.load %arg1[%c64, %c0_12] : memref<392x128xf32, #tpu.memory_space<vmem>>, vector<32x128xf32>
    %cst_13 = arith.constant 0.000000e+00 : f32
    %15 = vector.broadcast %cst_13 : f32 to vector<8x32xf32>
    %cst_14 = arith.constant 0.000000e+00 : f32
    %16 = vector.broadcast %cst_14 : f32 to vector<8x32xf32>
    %cst_15 = arith.constant 0.000000e+00 : f32
    %17 = vector.broadcast %cst_15 : f32 to vector<8x32xf32>
    %cst_16 = arith.constant 0.000000e+00 : f32
    %18 = vector.broadcast %cst_16 : f32 to vector<8x32xf32>
    %c0_17 = arith.constant 0 : index
    %c0_18 = arith.constant 0 : index
    %19 = vector.load %arg3[%c0_17, %c0_18] : memref<64x128xf32, #tpu.memory_space<vmem>>, vector<8x128xf32>
    %cst_19 = arith.constant dense<0.000000e+00> : vector<8x128xf32>
    %20 = tpu.matmul %15, %13, %cst_19 {dimension_numbers = #tpu.dot_dimension_numbers<[1], [0], [0], [1], [0, 0, 1, 1], [], []>} : vector<8x32xf32>, vector<32x128xf32>, vector<8x128xf32> -> vector<8x128xf32>
    %21 = arith.addf %19, %20 : vector<8x128xf32>
    %22 = vector.extract_strided_slice %21 {offsets = [0, 0], sizes = [8, 96], strides = [1, 1]} : vector<8x128xf32> to vector<8x96xf32>
    %23 = arith.negf %22 : vector<8x96xf32>
    %24 = math.exp %23 : vector<8x96xf32>
    %cst_20 = arith.constant 1.000000e+00 : f32
    %25 = vector.broadcast %cst_20 : f32 to vector<8x96xf32>
    %26 = arith.addf %25, %24 : vector<8x96xf32>
    %27 = arith.divf %25, %26 : vector<8x96xf32>
    %28 = vector.extract_strided_slice %21 {offsets = [0, 96], sizes = [8, 32], strides = [1, 1]} : vector<8x128xf32> to vector<8x32xf32>
    %29 = math.tanh %28 : vector<8x32xf32>
    %30 = vector.extract_strided_slice %27 {offsets = [0, 0], sizes = [8, 32], strides = [1, 1]} : vector<8x96xf32> to vector<8x32xf32>
    %31 = vector.extract_strided_slice %27 {offsets = [0, 32], sizes = [8, 32], strides = [1, 1]} : vector<8x96xf32> to vector<8x32xf32>
    %32 = vector.extract_strided_slice %27 {offsets = [0, 64], sizes = [8, 32], strides = [1, 1]} : vector<8x96xf32> to vector<8x32xf32>
    %33 = arith.mulf %31, %17 : vector<8x32xf32>
    %34 = arith.mulf %30, %29 : vector<8x32xf32>
    %35 = arith.addf %33, %34 : vector<8x32xf32>
    %36 = math.tanh %35 : vector<8x32xf32>
    %37 = arith.mulf %32, %36 : vector<8x32xf32>
    %c56 = arith.constant 56 : index
    %c0_21 = arith.constant 0 : index
    %38 = vector.load %arg4[%c56, %c0_21] : memref<64x128xf32, #tpu.memory_space<vmem>>, vector<8x128xf32>
    %cst_22 = arith.constant dense<0.000000e+00> : vector<8x128xf32>
    %39 = tpu.matmul %16, %14, %cst_22 {dimension_numbers = #tpu.dot_dimension_numbers<[1], [0], [0], [1], [0, 0, 1, 1], [], []>} : vector<8x32xf32>, vector<32x128xf32>, vector<8x128xf32> -> vector<8x128xf32>
    %40 = arith.addf %38, %39 : vector<8x128xf32>
    %41 = vector.extract_strided_slice %40 {offsets = [0, 0], sizes = [8, 96], strides = [1, 1]} : vector<8x128xf32> to vector<8x96xf32>
    %42 = arith.negf %41 : vector<8x96xf32>
    %43 = math.exp %42 : vector<8x96xf32>
    %cst_23 = arith.constant 1.000000e+00 : f32
    %44 = vector.broadcast %cst_23 : f32 to vector<8x96xf32>
    %45 = arith.addf %44, %43 : vector<8x96xf32>
    %46 = arith.divf %44, %45 : vector<8x96xf32>
    %47 = vector.extract_strided_slice %40 {offsets = [0, 96], sizes = [8, 32], strides = [1, 1]} : vector<8x128xf32> to vector<8x32xf32>
    %48 = math.tanh %47 : vector<8x32xf32>
    %49 = vector.extract_strided_slice %46 {offsets = [0, 0], sizes = [8, 32], strides = [1, 1]} : vector<8x96xf32> to vector<8x32xf32>
    %50 = vector.extract_strided_slice %46 {offsets = [0, 32], sizes = [8, 32], strides = [1, 1]} : vector<8x96xf32> to vector<8x32xf32>
    %51 = vector.extract_strided_slice %46 {offsets = [0, 64], sizes = [8, 32], strides = [1, 1]} : vector<8x96xf32> to vector<8x32xf32>
    %52 = arith.mulf %50, %18 : vector<8x32xf32>
    %53 = arith.mulf %49, %48 : vector<8x32xf32>
    %54 = arith.addf %52, %53 : vector<8x32xf32>
    %55 = math.tanh %54 : vector<8x32xf32>
    %56 = arith.mulf %51, %55 : vector<8x32xf32>
    %c0_24 = arith.constant 0 : index
    %c0_25 = arith.constant 0 : index
    %57 = vector.load %arg5[%c0_24, %c0_25] : memref<64x32xf32, #tpu.memory_space<vmem>>, vector<8x32xf32>
    tpu.vector_store %arg5[%c0_24, %c0_25], %37 {strides = array<i32>} : memref<64x32xf32, #tpu.memory_space<vmem>>, vector<8x32xf32>,
    %c56_26 = arith.constant 56 : index
    %c0_27 = arith.constant 0 : index
    %58 = vector.load %arg6[%c56_26, %c0_27] : memref<64x32xf32, #tpu.memory_space<vmem>>, vector<8x32xf32>
    tpu.vector_store %arg6[%c56_26, %c0_27], %56 {strides = array<i32>} : memref<64x32xf32, #tpu.memory_space<vmem>>, vector<8x32xf32>,
    %c8 = arith.constant 8 : index
    %c0_28 = arith.constant 0 : index
    %59 = vector.load %arg3[%c8, %c0_28] : memref<64x128xf32, #tpu.memory_space<vmem>>, vector<8x128xf32>
    %cst_29 = arith.constant dense<0.000000e+00> : vector<8x128xf32>
    %60 = tpu.matmul %37, %13, %cst_29 {dimension_numbers = #tpu.dot_dimension_numbers<[1], [0], [0], [1], [0, 0, 1, 1], [], []>} : vector<8x32xf32>, vector<32x128xf32>, vector<8x128xf32> -> vector<8x128xf32>
    %61 = arith.addf %59, %60 : vector<8x128xf32>
    %62 = vector.extract_strided_slice %61 {offsets = [0, 0], sizes = [8, 96], strides = [1, 1]} : vector<8x128xf32> to vector<8x96xf32>
    %63 = arith.negf %62 : vector<8x96xf32>
    %64 = math.exp %63 : vector<8x96xf32>
    %cst_30 = arith.constant 1.000000e+00 : f32
    %65 = vector.broadcast %cst_30 : f32 to vector<8x96xf32>
    %66 = arith.addf %65, %64 : vector<8x96xf32>
    %67 = arith.divf %65, %66 : vector<8x96xf32>
    %68 = vector.extract_strided_slice %61 {offsets = [0, 96], sizes = [8, 32], strides = [1, 1]} : vector<8x128xf32> to vector<8x32xf32>
    %69 = math.tanh %68 : vector<8x32xf32>
    %70 = vector.extract_strided_slice %67 {offsets = [0, 0], sizes = [8, 32], strides = [1, 1]} : vector<8x96xf32> to vector<8x32xf32>
    %71 = vector.extract_strided_slice %67 {offsets = [0, 32], sizes = [8, 32], strides = [1, 1]} : vector<8x96xf32> to vector<8x32xf32>
    %72 = vector.extract_strided_slice %67 {offsets = [0, 64], sizes = [8, 32], strides = [1, 1]} : vector<8x96xf32> to vector<8x32xf32>
    %73 = arith.mulf %71, %35 : vector<8x32xf32>
    %74 = arith.mulf %70, %69 : vector<8x32xf32>
    %75 = arith.addf %73, %74 : vector<8x32xf32>
    %76 = math.tanh %75 : vector<8x32xf32>
    %77 = arith.mulf %72, %76 : vector<8x32xf32>
    %c48 = arith.constant 48 : index
    %c0_31 = arith.constant 0 : index
    %78 = vector.load %arg4[%c48, %c0_31] : memref<64x128xf32, #tpu.memory_space<vmem>>, vector<8x128xf32>
    %cst_32 = arith.constant dense<0.000000e+00> : vector<8x128xf32>
    %79 = tpu.matmul %56, %14, %cst_32 {dimension_numbers = #tpu.dot_dimension_numbers<[1], [0], [0], [1], [0, 0, 1, 1], [], []>} : vector<8x32xf32>, vector<32x128xf32>, vector<8x128xf32> -> vector<8x128xf32>
    %80 = arith.addf %78, %79 : vector<8x128xf32>
    %81 = vector.extract_strided_slice %80 {offsets = [0, 0], sizes = [8, 96], strides = [1, 1]} : vector<8x128xf32> to vector<8x96xf32>
    %82 = arith.negf %81 : vector<8x96xf32>
    %83 = math.exp %82 : vector<8x96xf32>
    %cst_33 = arith.constant 1.000000e+00 : f32
    %84 = vector.broadcast %cst_33 : f32 to vector<8x96xf32>
    %85 = arith.addf %84, %83 : vector<8x96xf32>
    %86 = arith.divf %84, %85 : vector<8x96xf32>
    %87 = vector.extract_strided_slice %80 {offsets = [0, 96], sizes = [8, 32], strides = [1, 1]} : vector<8x128xf32> to vector<8x32xf32>
    %88 = math.tanh %87 : vector<8x32xf32>
    %89 = vector.extract_strided_slice %86 {offsets = [0, 0], sizes = [8, 32], strides = [1, 1]} : vector<8x96xf32> to vector<8x32xf32>
    %90 = vector.extract_strided_slice %86 {offsets = [0, 32], sizes = [8, 32], strides = [1, 1]} : vector<8x96xf32> to vector<8x32xf32>
    %91 = vector.extract_strided_slice %86 {offsets = [0, 64], sizes = [8, 32], strides = [1, 1]} : vector<8x96xf32> to vector<8x32xf32>
    %92 = arith.mulf %90, %54 : vector<8x32xf32>
    %93 = arith.mulf %89, %88 : vector<8x32xf32>
    %94 = arith.addf %92, %93 : vector<8x32xf32>
    %95 = math.tanh %94 : vector<8x32xf32>
    %96 = arith.mulf %91, %95 : vector<8x32xf32>
    %c8_34 = arith.constant 8 : index
    %c0_35 = arith.constant 0 : index
    %97 = vector.load %arg5[%c8_34, %c0_35] : memref<64x32xf32, #tpu.memory_space<vmem>>, vector<8x32xf32>
    tpu.vector_store %arg5[%c8_34, %c0_35], %77 {strides = array<i32>} : memref<64x32xf32, #tpu.memory_space<vmem>>, vector<8x32xf32>,
    %c48_36 = arith.constant 48 : index
    %c0_37 = arith.constant 0 : index
    %98 = vector.load %arg6[%c48_36, %c0_37] : memref<64x32xf32, #tpu.memory_space<vmem>>, vector<8x32xf32>
    tpu.vector_store %arg6[%c48_36, %c0_37], %96 {strides = array<i32>} : memref<64x32xf32, #tpu.memory_space<vmem>>, vector<8x32xf32>,
    %c16_38 = arith.constant 16 : index
    %c0_39 = arith.constant 0 : index
    %99 = vector.load %arg3[%c16_38, %c0_39] : memref<64x128xf32, #tpu.memory_space<vmem>>, vector<8x128xf32>
    %cst_40 = arith.constant dense<0.000000e+00> : vector<8x128xf32>
    %100 = tpu.matmul %77, %13, %cst_40 {dimension_numbers = #tpu.dot_dimension_numbers<[1], [0], [0], [1], [0, 0, 1, 1], [], []>} : vector<8x32xf32>, vector<32x128xf32>, vector<8x128xf32> -> vector<8x128xf32>
    %101 = arith.addf %99, %100 : vector<8x128xf32>
    %102 = vector.extract_strided_slice %101 {offsets = [0, 0], sizes = [8, 96], strides = [1, 1]} : vector<8x128xf32> to vector<8x96xf32>
    %103 = arith.negf %102 : vector<8x96xf32>
    %104 = math.exp %103 : vector<8x96xf32>
    %cst_41 = arith.constant 1.000000e+00 : f32
    %105 = vector.broadcast %cst_41 : f32 to vector<8x96xf32>
    %106 = arith.addf %105, %104 : vector<8x96xf32>
    %107 = arith.divf %105, %106 : vector<8x96xf32>
    %108 = vector.extract_strided_slice %101 {offsets = [0, 96], sizes = [8, 32], strides = [1, 1]} : vector<8x128xf32> to vector<8x32xf32>
    %109 = math.tanh %108 : vector<8x32xf32>
    %110 = vector.extract_strided_slice %107 {offsets = [0, 0], sizes = [8, 32], strides = [1, 1]} : vector<8x96xf32> to vector<8x32xf32>
    %111 = vector.extract_strided_slice %107 {offsets = [0, 32], sizes = [8, 32], strides = [1, 1]} : vector<8x96xf32> to vector<8x32xf32>
    %112 = vector.extract_strided_slice %107 {offsets = [0, 64], sizes = [8, 32], strides = [1, 1]} : vector<8x96xf32> to vector<8x32xf32>
    %113 = arith.mulf %111, %75 : vector<8x32xf32>
    %114 = arith.mulf %110, %109 : vector<8x32xf32>
    %115 = arith.addf %113, %114 : vector<8x32xf32>
    %116 = math.tanh %115 : vector<8x32xf32>
    %117 = arith.mulf %112, %116 : vector<8x32xf32>
    %c40 = arith.constant 40 : index
    %c0_42 = arith.constant 0 : index
    %118 = vector.load %arg4[%c40, %c0_42] : memref<64x128xf32, #tpu.memory_space<vmem>>, vector<8x128xf32>
    %cst_43 = arith.constant dense<0.000000e+00> : vector<8x128xf32>
    %119 = tpu.matmul %96, %14, %cst_43 {dimension_numbers = #tpu.dot_dimension_numbers<[1], [0], [0], [1], [0, 0, 1, 1], [], []>} : vector<8x32xf32>, vector<32x128xf32>, vector<8x128xf32> -> vector<8x128xf32>
    %120 = arith.addf %118, %119 : vector<8x128xf32>
    %121 = vector.extract_strided_slice %120 {offsets = [0, 0], sizes = [8, 96], strides = [1, 1]} : vector<8x128xf32> to vector<8x96xf32>
    %122 = arith.negf %121 : vector<8x96xf32>
    %123 = math.exp %122 : vector<8x96xf32>
    %cst_44 = arith.constant 1.000000e+00 : f32
    %124 = vector.broadcast %cst_44 : f32 to vector<8x96xf32>
    %125 = arith.addf %124, %123 : vector<8x96xf32>
    %126 = arith.divf %124, %125 : vector<8x96xf32>
    %127 = vector.extract_strided_slice %120 {offsets = [0, 96], sizes = [8, 32], strides = [1, 1]} : vector<8x128xf32> to vector<8x32xf32>
    %128 = math.tanh %127 : vector<8x32xf32>
    %129 = vector.extract_strided_slice %126 {offsets = [0, 0], sizes = [8, 32], strides = [1, 1]} : vector<8x96xf32> to vector<8x32xf32>
    %130 = vector.extract_strided_slice %126 {offsets = [0, 32], sizes = [8, 32], strides = [1, 1]} : vector<8x96xf32> to vector<8x32xf32>
    %131 = vector.extract_strided_slice %126 {offsets = [0, 64], sizes = [8, 32], strides = [1, 1]} : vector<8x96xf32> to vector<8x32xf32>
    %132 = arith.mulf %130, %94 : vector<8x32xf32>
    %133 = arith.mulf %129, %128 : vector<8x32xf32>
    %134 = arith.addf %132, %133 : vector<8x32xf32>
    %135 = math.tanh %134 : vector<8x32xf32>
    %136 = arith.mulf %131, %135 : vector<8x32xf32>
    %c16_45 = arith.constant 16 : index
    %c0_46 = arith.constant 0 : index
    %137 = vector.load %arg5[%c16_45, %c0_46] : memref<64x32xf32, #tpu.memory_space<vmem>>, vector<8x32xf32>
    tpu.vector_store %arg5[%c16_45, %c0_46], %117 {strides = array<i32>} : memref<64x32xf32, #tpu.memory_space<vmem>>, vector<8x32xf32>,
    %c40_47 = arith.constant 40 : index
    %c0_48 = arith.constant 0 : index
    %138 = vector.load %arg6[%c40_47, %c0_48] : memref<64x32xf32, #tpu.memory_space<vmem>>, vector<8x32xf32>
    tpu.vector_store %arg6[%c40_47, %c0_48], %136 {strides = array<i32>} : memref<64x32xf32, #tpu.memory_space<vmem>>, vector<8x32xf32>,
    %c24 = arith.constant 24 : index
    %c0_49 = arith.constant 0 : index
    %139 = vector.load %arg3[%c24, %c0_49] : memref<64x128xf32, #tpu.memory_space<vmem>>, vector<8x128xf32>
    %cst_50 = arith.constant dense<0.000000e+00> : vector<8x128xf32>
    %140 = tpu.matmul %117, %13, %cst_50 {dimension_numbers = #tpu.dot_dimension_numbers<[1], [0], [0], [1], [0, 0, 1, 1], [], []>} : vector<8x32xf32>, vector<32x128xf32>, vector<8x128xf32> -> vector<8x128xf32>
    %141 = arith.addf %139, %140 : vector<8x128xf32>
    %142 = vector.extract_strided_slice %141 {offsets = [0, 0], sizes = [8, 96], strides = [1, 1]} : vector<8x128xf32> to vector<8x96xf32>
    %143 = arith.negf %142 : vector<8x96xf32>
    %144 = math.exp %143 : vector<8x96xf32>
    %cst_51 = arith.constant 1.000000e+00 : f32
    %145 = vector.broadcast %cst_51 : f32 to vector<8x96xf32>
    %146 = arith.addf %145, %144 : vector<8x96xf32>
    %147 = arith.divf %145, %146 : vector<8x96xf32>
    %148 = vector.extract_strided_slice %141 {offsets = [0, 96], sizes = [8, 32], strides = [1, 1]} : vector<8x128xf32> to vector<8x32xf32>
    %149 = math.tanh %148 : vector<8x32xf32>
    %150 = vector.extract_strided_slice %147 {offsets = [0, 0], sizes = [8, 32], strides = [1, 1]} : vector<8x96xf32> to vector<8x32xf32>
    %151 = vector.extract_strided_slice %147 {offsets = [0, 32], sizes = [8, 32], strides = [1, 1]} : vector<8x96xf32> to vector<8x32xf32>
    %152 = vector.extract_strided_slice %147 {offsets = [0, 64], sizes = [8, 32], strides = [1, 1]} : vector<8x96xf32> to vector<8x32xf32>
    %153 = arith.mulf %151, %115 : vector<8x32xf32>
    %154 = arith.mulf %150, %149 : vector<8x32xf32>
    %155 = arith.addf %153, %154 : vector<8x32xf32>
    %156 = math.tanh %155 : vector<8x32xf32>
    %157 = arith.mulf %152, %156 : vector<8x32xf32>
    %c32_52 = arith.constant 32 : index
    %c0_53 = arith.constant 0 : index
    %158 = vector.load %arg4[%c32_52, %c0_53] : memref<64x128xf32, #tpu.memory_space<vmem>>, vector<8x128xf32>
    %cst_54 = arith.constant dense<0.000000e+00> : vector<8x128xf32>
    %159 = tpu.matmul %136, %14, %cst_54 {dimension_numbers = #tpu.dot_dimension_numbers<[1], [0], [0], [1], [0, 0, 1, 1], [], []>} : vector<8x32xf32>, vector<32x128xf32>, vector<8x128xf32> -> vector<8x128xf32>
    %160 = arith.addf %158, %159 : vector<8x128xf32>
    %161 = vector.extract_strided_slice %160 {offsets = [0, 0], sizes = [8, 96], strides = [1, 1]} : vector<8x128xf32> to vector<8x96xf32>
    %162 = arith.negf %161 : vector<8x96xf32>
    %163 = math.exp %162 : vector<8x96xf32>
    %cst_55 = arith.constant 1.000000e+00 : f32
    %164 = vector.broadcast %cst_55 : f32 to vector<8x96xf32>
    %165 = arith.addf %164, %163 : vector<8x96xf32>
    %166 = arith.divf %164, %165 : vector<8x96xf32>
    %167 = vector.extract_strided_slice %160 {offsets = [0, 96], sizes = [8, 32], strides = [1, 1]} : vector<8x128xf32> to vector<8x32xf32>
    %168 = math.tanh %167 : vector<8x32xf32>
    %169 = vector.extract_strided_slice %166 {offsets = [0, 0], sizes = [8, 32], strides = [1, 1]} : vector<8x96xf32> to vector<8x32xf32>
    %170 = vector.extract_strided_slice %166 {offsets = [0, 32], sizes = [8, 32], strides = [1, 1]} : vector<8x96xf32> to vector<8x32xf32>
    %171 = vector.extract_strided_slice %166 {offsets = [0, 64], sizes = [8, 32], strides = [1, 1]} : vector<8x96xf32> to vector<8x32xf32>
    %172 = arith.mulf %170, %134 : vector<8x32xf32>
    %173 = arith.mulf %169, %168 : vector<8x32xf32>
    %174 = arith.addf %172, %173 : vector<8x32xf32>
    %175 = math.tanh %174 : vector<8x32xf32>
    %176 = arith.mulf %171, %175 : vector<8x32xf32>
    %c24_56 = arith.constant 24 : index
    %c0_57 = arith.constant 0 : index
    %177 = vector.load %arg5[%c24_56, %c0_57] : memref<64x32xf32, #tpu.memory_space<vmem>>, vector<8x32xf32>
    tpu.vector_store %arg5[%c24_56, %c0_57], %157 {strides = array<i32>} : memref<64x32xf32, #tpu.memory_space<vmem>>, vector<8x32xf32>,
    %c32_58 = arith.constant 32 : index
    %c0_59 = arith.constant 0 : index
    %178 = vector.load %arg6[%c32_58, %c0_59] : memref<64x32xf32, #tpu.memory_space<vmem>>, vector<8x32xf32>
    tpu.vector_store %arg6[%c32_58, %c0_59], %176 {strides = array<i32>} : memref<64x32xf32, #tpu.memory_space<vmem>>, vector<8x32xf32>,
    %c32_60 = arith.constant 32 : index
    %c0_61 = arith.constant 0 : index
    %179 = vector.load %arg3[%c32_60, %c0_61] : memref<64x128xf32, #tpu.memory_space<vmem>>, vector<8x128xf32>
    %cst_62 = arith.constant dense<0.000000e+00> : vector<8x128xf32>
    %180 = tpu.matmul %157, %13, %cst_62 {dimension_numbers = #tpu.dot_dimension_numbers<[1], [0], [0], [1], [0, 0, 1, 1], [], []>} : vector<8x32xf32>, vector<32x128xf32>, vector<8x128xf32> -> vector<8x128xf32>
    %181 = arith.addf %179, %180 : vector<8x128xf32>
    %182 = vector.extract_strided_slice %181 {offsets = [0, 0], sizes = [8, 96], strides = [1, 1]} : vector<8x128xf32> to vector<8x96xf32>
    %183 = arith.negf %182 : vector<8x96xf32>
    %184 = math.exp %183 : vector<8x96xf32>
    %cst_63 = arith.constant 1.000000e+00 : f32
    %185 = vector.broadcast %cst_63 : f32 to vector<8x96xf32>
    %186 = arith.addf %185, %184 : vector<8x96xf32>
    %187 = arith.divf %185, %186 : vector<8x96xf32>
    %188 = vector.extract_strided_slice %181 {offsets = [0, 96], sizes = [8, 32], strides = [1, 1]} : vector<8x128xf32> to vector<8x32xf32>
    %189 = math.tanh %188 : vector<8x32xf32>
    %190 = vector.extract_strided_slice %187 {offsets = [0, 0], sizes = [8, 32], strides = [1, 1]} : vector<8x96xf32> to vector<8x32xf32>
    %191 = vector.extract_strided_slice %187 {offsets = [0, 32], sizes = [8, 32], strides = [1, 1]} : vector<8x96xf32> to vector<8x32xf32>
    %192 = vector.extract_strided_slice %187 {offsets = [0, 64], sizes = [8, 32], strides = [1, 1]} : vector<8x96xf32> to vector<8x32xf32>
    %193 = arith.mulf %191, %155 : vector<8x32xf32>
    %194 = arith.mulf %190, %189 : vector<8x32xf32>
    %195 = arith.addf %193, %194 : vector<8x32xf32>
    %196 = math.tanh %195 : vector<8x32xf32>
    %197 = arith.mulf %192, %196 : vector<8x32xf32>
    %c24_64 = arith.constant 24 : index
    %c0_65 = arith.constant 0 : index
    %198 = vector.load %arg4[%c24_64, %c0_65] : memref<64x128xf32, #tpu.memory_space<vmem>>, vector<8x128xf32>
    %cst_66 = arith.constant dense<0.000000e+00> : vector<8x128xf32>
    %199 = tpu.matmul %176, %14, %cst_66 {dimension_numbers = #tpu.dot_dimension_numbers<[1], [0], [0], [1], [0, 0, 1, 1], [], []>} : vector<8x32xf32>, vector<32x128xf32>, vector<8x128xf32> -> vector<8x128xf32>
    %200 = arith.addf %198, %199 : vector<8x128xf32>
    %201 = vector.extract_strided_slice %200 {offsets = [0, 0], sizes = [8, 96], strides = [1, 1]} : vector<8x128xf32> to vector<8x96xf32>
    %202 = arith.negf %201 : vector<8x96xf32>
    %203 = math.exp %202 : vector<8x96xf32>
    %cst_67 = arith.constant 1.000000e+00 : f32
    %204 = vector.broadcast %cst_67 : f32 to vector<8x96xf32>
    %205 = arith.addf %204, %203 : vector<8x96xf32>
    %206 = arith.divf %204, %205 : vector<8x96xf32>
    %207 = vector.extract_strided_slice %200 {offsets = [0, 96], sizes = [8, 32], strides = [1, 1]} : vector<8x128xf32> to vector<8x32xf32>
    %208 = math.tanh %207 : vector<8x32xf32>
    %209 = vector.extract_strided_slice %206 {offsets = [0, 0], sizes = [8, 32], strides = [1, 1]} : vector<8x96xf32> to vector<8x32xf32>
    %210 = vector.extract_strided_slice %206 {offsets = [0, 32], sizes = [8, 32], strides = [1, 1]} : vector<8x96xf32> to vector<8x32xf32>
    %211 = vector.extract_strided_slice %206 {offsets = [0, 64], sizes = [8, 32], strides = [1, 1]} : vector<8x96xf32> to vector<8x32xf32>
    %212 = arith.mulf %210, %174 : vector<8x32xf32>
    %213 = arith.mulf %209, %208 : vector<8x32xf32>
    %214 = arith.addf %212, %213 : vector<8x32xf32>
    %215 = math.tanh %214 : vector<8x32xf32>
    %216 = arith.mulf %211, %215 : vector<8x32xf32>
    %c32_68 = arith.constant 32 : index
    %c0_69 = arith.constant 0 : index
    %217 = vector.load %arg5[%c32_68, %c0_69] : memref<64x32xf32, #tpu.memory_space<vmem>>, vector<8x32xf32>
    tpu.vector_store %arg5[%c32_68, %c0_69], %197 {strides = array<i32>} : memref<64x32xf32, #tpu.memory_space<vmem>>, vector<8x32xf32>,
    %c24_70 = arith.constant 24 : index
    %c0_71 = arith.constant 0 : index
    %218 = vector.load %arg6[%c24_70, %c0_71] : memref<64x32xf32, #tpu.memory_space<vmem>>, vector<8x32xf32>
    tpu.vector_store %arg6[%c24_70, %c0_71], %216 {strides = array<i32>} : memref<64x32xf32, #tpu.memory_space<vmem>>, vector<8x32xf32>,
    %c40_72 = arith.constant 40 : index
    %c0_73 = arith.constant 0 : index
    %219 = vector.load %arg3[%c40_72, %c0_73] : memref<64x128xf32, #tpu.memory_space<vmem>>, vector<8x128xf32>
    %cst_74 = arith.constant dense<0.000000e+00> : vector<8x128xf32>
    %220 = tpu.matmul %197, %13, %cst_74 {dimension_numbers = #tpu.dot_dimension_numbers<[1], [0], [0], [1], [0, 0, 1, 1], [], []>} : vector<8x32xf32>, vector<32x128xf32>, vector<8x128xf32> -> vector<8x128xf32>
    %221 = arith.addf %219, %220 : vector<8x128xf32>
    %222 = vector.extract_strided_slice %221 {offsets = [0, 0], sizes = [8, 96], strides = [1, 1]} : vector<8x128xf32> to vector<8x96xf32>
    %223 = arith.negf %222 : vector<8x96xf32>
    %224 = math.exp %223 : vector<8x96xf32>
    %cst_75 = arith.constant 1.000000e+00 : f32
    %225 = vector.broadcast %cst_75 : f32 to vector<8x96xf32>
    %226 = arith.addf %225, %224 : vector<8x96xf32>
    %227 = arith.divf %225, %226 : vector<8x96xf32>
    %228 = vector.extract_strided_slice %221 {offsets = [0, 96], sizes = [8, 32], strides = [1, 1]} : vector<8x128xf32> to vector<8x32xf32>
    %229 = math.tanh %228 : vector<8x32xf32>
    %230 = vector.extract_strided_slice %227 {offsets = [0, 0], sizes = [8, 32], strides = [1, 1]} : vector<8x96xf32> to vector<8x32xf32>
    %231 = vector.extract_strided_slice %227 {offsets = [0, 32], sizes = [8, 32], strides = [1, 1]} : vector<8x96xf32> to vector<8x32xf32>
    %232 = vector.extract_strided_slice %227 {offsets = [0, 64], sizes = [8, 32], strides = [1, 1]} : vector<8x96xf32> to vector<8x32xf32>
    %233 = arith.mulf %231, %195 : vector<8x32xf32>
    %234 = arith.mulf %230, %229 : vector<8x32xf32>
    %235 = arith.addf %233, %234 : vector<8x32xf32>
    %236 = math.tanh %235 : vector<8x32xf32>
    %237 = arith.mulf %232, %236 : vector<8x32xf32>
    %c16_76 = arith.constant 16 : index
    %c0_77 = arith.constant 0 : index
    %238 = vector.load %arg4[%c16_76, %c0_77] : memref<64x128xf32, #tpu.memory_space<vmem>>, vector<8x128xf32>
    %cst_78 = arith.constant dense<0.000000e+00> : vector<8x128xf32>
    %239 = tpu.matmul %216, %14, %cst_78 {dimension_numbers = #tpu.dot_dimension_numbers<[1], [0], [0], [1], [0, 0, 1, 1], [], []>} : vector<8x32xf32>, vector<32x128xf32>, vector<8x128xf32> -> vector<8x128xf32>
    %240 = arith.addf %238, %239 : vector<8x128xf32>
    %241 = vector.extract_strided_slice %240 {offsets = [0, 0], sizes = [8, 96], strides = [1, 1]} : vector<8x128xf32> to vector<8x96xf32>
    %242 = arith.negf %241 : vector<8x96xf32>
    %243 = math.exp %242 : vector<8x96xf32>
    %cst_79 = arith.constant 1.000000e+00 : f32
    %244 = vector.broadcast %cst_79 : f32 to vector<8x96xf32>
    %245 = arith.addf %244, %243 : vector<8x96xf32>
    %246 = arith.divf %244, %245 : vector<8x96xf32>
    %247 = vector.extract_strided_slice %240 {offsets = [0, 96], sizes = [8, 32], strides = [1, 1]} : vector<8x128xf32> to vector<8x32xf32>
    %248 = math.tanh %247 : vector<8x32xf32>
    %249 = vector.extract_strided_slice %246 {offsets = [0, 0], sizes = [8, 32], strides = [1, 1]} : vector<8x96xf32> to vector<8x32xf32>
    %250 = vector.extract_strided_slice %246 {offsets = [0, 32], sizes = [8, 32], strides = [1, 1]} : vector<8x96xf32> to vector<8x32xf32>
    %251 = vector.extract_strided_slice %246 {offsets = [0, 64], sizes = [8, 32], strides = [1, 1]} : vector<8x96xf32> to vector<8x32xf32>
    %252 = arith.mulf %250, %214 : vector<8x32xf32>
    %253 = arith.mulf %249, %248 : vector<8x32xf32>
    %254 = arith.addf %252, %253 : vector<8x32xf32>
    %255 = math.tanh %254 : vector<8x32xf32>
    %256 = arith.mulf %251, %255 : vector<8x32xf32>
    %c40_80 = arith.constant 40 : index
    %c0_81 = arith.constant 0 : index
    %257 = vector.load %arg5[%c40_80, %c0_81] : memref<64x32xf32, #tpu.memory_space<vmem>>, vector<8x32xf32>
    tpu.vector_store %arg5[%c40_80, %c0_81], %237 {strides = array<i32>} : memref<64x32xf32, #tpu.memory_space<vmem>>, vector<8x32xf32>,
    %c16_82 = arith.constant 16 : index
    %c0_83 = arith.constant 0 : index
    %258 = vector.load %arg6[%c16_82, %c0_83] : memref<64x32xf32, #tpu.memory_space<vmem>>, vector<8x32xf32>
    tpu.vector_store %arg6[%c16_82, %c0_83], %256 {strides = array<i32>} : memref<64x32xf32, #tpu.memory_space<vmem>>, vector<8x32xf32>,
    %c48_84 = arith.constant 48 : index
    %c0_85 = arith.constant 0 : index
    %259 = vector.load %arg3[%c48_84, %c0_85] : memref<64x128xf32, #tpu.memory_space<vmem>>, vector<8x128xf32>
    %cst_86 = arith.constant dense<0.000000e+00> : vector<8x128xf32>
    %260 = tpu.matmul %237, %13, %cst_86 {dimension_numbers = #tpu.dot_dimension_numbers<[1], [0], [0], [1], [0, 0, 1, 1], [], []>} : vector<8x32xf32>, vector<32x128xf32>, vector<8x128xf32> -> vector<8x128xf32>
    %261 = arith.addf %259, %260 : vector<8x128xf32>
    %262 = vector.extract_strided_slice %261 {offsets = [0, 0], sizes = [8, 96], strides = [1, 1]} : vector<8x128xf32> to vector<8x96xf32>
    %263 = arith.negf %262 : vector<8x96xf32>
    %264 = math.exp %263 : vector<8x96xf32>
    %cst_87 = arith.constant 1.000000e+00 : f32
    %265 = vector.broadcast %cst_87 : f32 to vector<8x96xf32>
    %266 = arith.addf %265, %264 : vector<8x96xf32>
    %267 = arith.divf %265, %266 : vector<8x96xf32>
    %268 = vector.extract_strided_slice %261 {offsets = [0, 96], sizes = [8, 32], strides = [1, 1]} : vector<8x128xf32> to vector<8x32xf32>
    %269 = math.tanh %268 : vector<8x32xf32>
    %270 = vector.extract_strided_slice %267 {offsets = [0, 0], sizes = [8, 32], strides = [1, 1]} : vector<8x96xf32> to vector<8x32xf32>
    %271 = vector.extract_strided_slice %267 {offsets = [0, 32], sizes = [8, 32], strides = [1, 1]} : vector<8x96xf32> to vector<8x32xf32>
    %272 = vector.extract_strided_slice %267 {offsets = [0, 64], sizes = [8, 32], strides = [1, 1]} : vector<8x96xf32> to vector<8x32xf32>
    %273 = arith.mulf %271, %235 : vector<8x32xf32>
    %274 = arith.mulf %270, %269 : vector<8x32xf32>
    %275 = arith.addf %273, %274 : vector<8x32xf32>
    %276 = math.tanh %275 : vector<8x32xf32>
    %277 = arith.mulf %272, %276 : vector<8x32xf32>
    %c8_88 = arith.constant 8 : index
    %c0_89 = arith.constant 0 : index
    %278 = vector.load %arg4[%c8_88, %c0_89] : memref<64x128xf32, #tpu.memory_space<vmem>>, vector<8x128xf32>
    %cst_90 = arith.constant dense<0.000000e+00> : vector<8x128xf32>
    %279 = tpu.matmul %256, %14, %cst_90 {dimension_numbers = #tpu.dot_dimension_numbers<[1], [0], [0], [1], [0, 0, 1, 1], [], []>} : vector<8x32xf32>, vector<32x128xf32>, vector<8x128xf32> -> vector<8x128xf32>
    %280 = arith.addf %278, %279 : vector<8x128xf32>
    %281 = vector.extract_strided_slice %280 {offsets = [0, 0], sizes = [8, 96], strides = [1, 1]} : vector<8x128xf32> to vector<8x96xf32>
    %282 = arith.negf %281 : vector<8x96xf32>
    %283 = math.exp %282 : vector<8x96xf32>
    %cst_91 = arith.constant 1.000000e+00 : f32
    %284 = vector.broadcast %cst_91 : f32 to vector<8x96xf32>
    %285 = arith.addf %284, %283 : vector<8x96xf32>
    %286 = arith.divf %284, %285 : vector<8x96xf32>
    %287 = vector.extract_strided_slice %280 {offsets = [0, 96], sizes = [8, 32], strides = [1, 1]} : vector<8x128xf32> to vector<8x32xf32>
    %288 = math.tanh %287 : vector<8x32xf32>
    %289 = vector.extract_strided_slice %286 {offsets = [0, 0], sizes = [8, 32], strides = [1, 1]} : vector<8x96xf32> to vector<8x32xf32>
    %290 = vector.extract_strided_slice %286 {offsets = [0, 32], sizes = [8, 32], strides = [1, 1]} : vector<8x96xf32> to vector<8x32xf32>
    %291 = vector.extract_strided_slice %286 {offsets = [0, 64], sizes = [8, 32], strides = [1, 1]} : vector<8x96xf32> to vector<8x32xf32>
    %292 = arith.mulf %290, %254 : vector<8x32xf32>
    %293 = arith.mulf %289, %288 : vector<8x32xf32>
    %294 = arith.addf %292, %293 : vector<8x32xf32>
    %295 = math.tanh %294 : vector<8x32xf32>
    %296 = arith.mulf %291, %295 : vector<8x32xf32>
    %c48_92 = arith.constant 48 : index
    %c0_93 = arith.constant 0 : index
    %297 = vector.load %arg5[%c48_92, %c0_93] : memref<64x32xf32, #tpu.memory_space<vmem>>, vector<8x32xf32>
    tpu.vector_store %arg5[%c48_92, %c0_93], %277 {strides = array<i32>} : memref<64x32xf32, #tpu.memory_space<vmem>>, vector<8x32xf32>,
    %c8_94 = arith.constant 8 : index
    %c0_95 = arith.constant 0 : index
    %298 = vector.load %arg6[%c8_94, %c0_95] : memref<64x32xf32, #tpu.memory_space<vmem>>, vector<8x32xf32>
    tpu.vector_store %arg6[%c8_94, %c0_95], %296 {strides = array<i32>} : memref<64x32xf32, #tpu.memory_space<vmem>>, vector<8x32xf32>,
    %c56_96 = arith.constant 56 : index
    %c0_97 = arith.constant 0 : index
    %299 = vector.load %arg3[%c56_96, %c0_97] : memref<64x128xf32, #tpu.memory_space<vmem>>, vector<8x128xf32>
    %cst_98 = arith.constant dense<0.000000e+00> : vector<8x128xf32>
    %300 = tpu.matmul %277, %13, %cst_98 {dimension_numbers = #tpu.dot_dimension_numbers<[1], [0], [0], [1], [0, 0, 1, 1], [], []>} : vector<8x32xf32>, vector<32x128xf32>, vector<8x128xf32> -> vector<8x128xf32>
    %301 = arith.addf %299, %300 : vector<8x128xf32>
    %302 = vector.extract_strided_slice %301 {offsets = [0, 0], sizes = [8, 96], strides = [1, 1]} : vector<8x128xf32> to vector<8x96xf32>
    %303 = arith.negf %302 : vector<8x96xf32>
    %304 = math.exp %303 : vector<8x96xf32>
    %cst_99 = arith.constant 1.000000e+00 : f32
    %305 = vector.broadcast %cst_99 : f32 to vector<8x96xf32>
    %306 = arith.addf %305, %304 : vector<8x96xf32>
    %307 = arith.divf %305, %306 : vector<8x96xf32>
    %308 = vector.extract_strided_slice %301 {offsets = [0, 96], sizes = [8, 32], strides = [1, 1]} : vector<8x128xf32> to vector<8x32xf32>
    %309 = math.tanh %308 : vector<8x32xf32>
    %310 = vector.extract_strided_slice %307 {offsets = [0, 0], sizes = [8, 32], strides = [1, 1]} : vector<8x96xf32> to vector<8x32xf32>
    %311 = vector.extract_strided_slice %307 {offsets = [0, 32], sizes = [8, 32], strides = [1, 1]} : vector<8x96xf32> to vector<8x32xf32>
    %312 = vector.extract_strided_slice %307 {offsets = [0, 64], sizes = [8, 32], strides = [1, 1]} : vector<8x96xf32> to vector<8x32xf32>
    %313 = arith.mulf %311, %275 : vector<8x32xf32>
    %314 = arith.mulf %310, %309 : vector<8x32xf32>
    %315 = arith.addf %313, %314 : vector<8x32xf32>
    %316 = math.tanh %315 : vector<8x32xf32>
    %317 = arith.mulf %312, %316 : vector<8x32xf32>
    %c0_100 = arith.constant 0 : index
    %c0_101 = arith.constant 0 : index
    %318 = vector.load %arg4[%c0_100, %c0_101] : memref<64x128xf32, #tpu.memory_space<vmem>>, vector<8x128xf32>
    %cst_102 = arith.constant dense<0.000000e+00> : vector<8x128xf32>
    %319 = tpu.matmul %296, %14, %cst_102 {dimension_numbers = #tpu.dot_dimension_numbers<[1], [0], [0], [1], [0, 0, 1, 1], [], []>} : vector<8x32xf32>, vector<32x128xf32>, vector<8x128xf32> -> vector<8x128xf32>
    %320 = arith.addf %318, %319 : vector<8x128xf32>
    %321 = vector.extract_strided_slice %320 {offsets = [0, 0], sizes = [8, 96], strides = [1, 1]} : vector<8x128xf32> to vector<8x96xf32>
    %322 = arith.negf %321 : vector<8x96xf32>
    %323 = math.exp %322 : vector<8x96xf32>
    %cst_103 = arith.constant 1.000000e+00 : f32
    %324 = vector.broadcast %cst_103 : f32 to vector<8x96xf32>
    %325 = arith.addf %324, %323 : vector<8x96xf32>
    %326 = arith.divf %324, %325 : vector<8x96xf32>
    %327 = vector.extract_strided_slice %320 {offsets = [0, 96], sizes = [8, 32], strides = [1, 1]} : vector<8x128xf32> to vector<8x32xf32>
    %328 = math.tanh %327 : vector<8x32xf32>
    %329 = vector.extract_strided_slice %326 {offsets = [0, 0], sizes = [8, 32], strides = [1, 1]} : vector<8x96xf32> to vector<8x32xf32>
    %330 = vector.extract_strided_slice %326 {offsets = [0, 32], sizes = [8, 32], strides = [1, 1]} : vector<8x96xf32> to vector<8x32xf32>
    %331 = vector.extract_strided_slice %326 {offsets = [0, 64], sizes = [8, 32], strides = [1, 1]} : vector<8x96xf32> to vector<8x32xf32>
    %332 = arith.mulf %330, %294 : vector<8x32xf32>
    %333 = arith.mulf %329, %328 : vector<8x32xf32>
    %334 = arith.addf %332, %333 : vector<8x32xf32>
    %335 = math.tanh %334 : vector<8x32xf32>
    %336 = arith.mulf %331, %335 : vector<8x32xf32>
    %c56_104 = arith.constant 56 : index
    %c0_105 = arith.constant 0 : index
    %337 = vector.load %arg5[%c56_104, %c0_105] : memref<64x32xf32, #tpu.memory_space<vmem>>, vector<8x32xf32>
    tpu.vector_store %arg5[%c56_104, %c0_105], %317 {strides = array<i32>} : memref<64x32xf32, #tpu.memory_space<vmem>>, vector<8x32xf32>,
    %c0_106 = arith.constant 0 : index
    %c0_107 = arith.constant 0 : index
    %338 = vector.load %arg6[%c0_106, %c0_107] : memref<64x32xf32, #tpu.memory_space<vmem>>, vector<8x32xf32>
    tpu.vector_store %arg6[%c0_106, %c0_107], %336 {strides = array<i32>} : memref<64x32xf32, #tpu.memory_space<vmem>>, vector<8x32xf32>,
    %c0_108 = arith.constant 0 : index
    %c0_109 = arith.constant 0 : index
    %339 = vector.load %arg5[%c0_108, %c0_109] : memref<64x32xf32, #tpu.memory_space<vmem>>, vector<64x32xf32>
    %c0_110 = arith.constant 0 : index
    %c0_111 = arith.constant 0 : index
    %340 = vector.load %arg6[%c0_110, %c0_111] : memref<64x32xf32, #tpu.memory_space<vmem>>, vector<64x32xf32>
    %c112 = arith.constant 112 : index
    %c0_112 = arith.constant 0 : index
    %341 = vector.load %arg1[%c112, %c0_112] : memref<392x128xf32, #tpu.memory_space<vmem>>, vector<32x128xf32>
    %cst_113 = arith.constant dense<0.000000e+00> : vector<64x128xf32>
    %342 = tpu.matmul %339, %341, %cst_113 {dimension_numbers = #tpu.dot_dimension_numbers<[1], [0], [0], [1], [0, 0, 1, 1], [], []>} : vector<64x32xf32>, vector<32x128xf32>, vector<64x128xf32> -> vector<64x128xf32>
    %c144 = arith.constant 144 : index
    %c0_114 = arith.constant 0 : index
    %343 = vector.load %arg1[%c144, %c0_114] : memref<392x128xf32, #tpu.memory_space<vmem>>, vector<32x128xf32>
    %cst_115 = arith.constant dense<0.000000e+00> : vector<64x128xf32>
    %344 = tpu.matmul %340, %343, %cst_115 {dimension_numbers = #tpu.dot_dimension_numbers<[1], [0], [0], [1], [0, 0, 1, 1], [], []>} : vector<64x32xf32>, vector<32x128xf32>, vector<64x128xf32> -> vector<64x128xf32>
    %345 = arith.addf %342, %344 : vector<64x128xf32>
    %c304 = arith.constant 304 : index
    %c0_116 = arith.constant 0 : index
    %346 = vector.load %arg1[%c304, %c0_116] : memref<392x128xf32, #tpu.memory_space<vmem>>, vector<1x128xf32>
    %347 = vector.broadcast %346 : vector<1x128xf32> to vector<64x128xf32>
    %348 = arith.addf %345, %347 : vector<64x128xf32>
    %c0_117 = arith.constant 0 : index
    %c0_118 = arith.constant 0 : index
    %349 = vector.load %arg3[%c0_117, %c0_118] : memref<64x128xf32, #tpu.memory_space<vmem>>, vector<64x128xf32>
    tpu.vector_store %arg3[%c0_117, %c0_118], %348 {strides = array<i32>} : memref<64x128xf32, #tpu.memory_space<vmem>>, vector<64x128xf32>,
    %c176 = arith.constant 176 : index
    %c0_119 = arith.constant 0 : index
    %350 = vector.load %arg1[%c176, %c0_119] : memref<392x128xf32, #tpu.memory_space<vmem>>, vector<32x128xf32>
    %cst_120 = arith.constant dense<0.000000e+00> : vector<64x128xf32>
    %351 = tpu.matmul %339, %350, %cst_120 {dimension_numbers = #tpu.dot_dimension_numbers<[1], [0], [0], [1], [0, 0, 1, 1], [], []>} : vector<64x32xf32>, vector<32x128xf32>, vector<64x128xf32> -> vector<64x128xf32>
    %c208 = arith.constant 208 : index
    %c0_121 = arith.constant 0 : index
    %352 = vector.load %arg1[%c208, %c0_121] : memref<392x128xf32, #tpu.memory_space<vmem>>, vector<32x128xf32>
    %cst_122 = arith.constant dense<0.000000e+00> : vector<64x128xf32>
    %353 = tpu.matmul %340, %352, %cst_122 {dimension_numbers = #tpu.dot_dimension_numbers<[1], [0], [0], [1], [0, 0, 1, 1], [], []>} : vector<64x32xf32>, vector<32x128xf32>, vector<64x128xf32> -> vector<64x128xf32>
    %354 = arith.addf %351, %353 : vector<64x128xf32>
    %c312 = arith.constant 312 : index
    %c0_123 = arith.constant 0 : index
    %355 = vector.load %arg1[%c312, %c0_123] : memref<392x128xf32, #tpu.memory_space<vmem>>, vector<1x128xf32>
    %356 = vector.broadcast %355 : vector<1x128xf32> to vector<64x128xf32>
    %357 = arith.addf %354, %356 : vector<64x128xf32>
    %c0_124 = arith.constant 0 : index
    %c0_125 = arith.constant 0 : index
    %358 = vector.load %arg4[%c0_124, %c0_125] : memref<64x128xf32, #tpu.memory_space<vmem>>, vector<64x128xf32>
    tpu.vector_store %arg4[%c0_124, %c0_125], %357 {strides = array<i32>} : memref<64x128xf32, #tpu.memory_space<vmem>>, vector<64x128xf32>,
    %c240 = arith.constant 240 : index
    %c0_126 = arith.constant 0 : index
    %359 = vector.load %arg1[%c240, %c0_126] : memref<392x128xf32, #tpu.memory_space<vmem>>, vector<32x128xf32>
    %c272 = arith.constant 272 : index
    %c0_127 = arith.constant 0 : index
    %360 = vector.load %arg1[%c272, %c0_127] : memref<392x128xf32, #tpu.memory_space<vmem>>, vector<32x128xf32>
    %cst_128 = arith.constant 0.000000e+00 : f32
    %361 = vector.broadcast %cst_128 : f32 to vector<8x32xf32>
    %cst_129 = arith.constant 0.000000e+00 : f32
    %362 = vector.broadcast %cst_129 : f32 to vector<8x32xf32>
    %cst_130 = arith.constant 0.000000e+00 : f32
    %363 = vector.broadcast %cst_130 : f32 to vector<8x32xf32>
    %cst_131 = arith.constant 0.000000e+00 : f32
    %364 = vector.broadcast %cst_131 : f32 to vector<8x32xf32>
    %c0_132 = arith.constant 0 : index
    %c0_133 = arith.constant 0 : index
    %365 = vector.load %arg3[%c0_132, %c0_133] : memref<64x128xf32, #tpu.memory_space<vmem>>, vector<8x128xf32>
    %cst_134 = arith.constant dense<0.000000e+00> : vector<8x128xf32>
    %366 = tpu.matmul %361, %359, %cst_134 {dimension_numbers = #tpu.dot_dimension_numbers<[1], [0], [0], [1], [0, 0, 1, 1], [], []>} : vector<8x32xf32>, vector<32x128xf32>, vector<8x128xf32> -> vector<8x128xf32>
    %367 = arith.addf %365, %366 : vector<8x128xf32>
    %368 = vector.extract_strided_slice %367 {offsets = [0, 0], sizes = [8, 96], strides = [1, 1]} : vector<8x128xf32> to vector<8x96xf32>
    %369 = arith.negf %368 : vector<8x96xf32>
    %370 = math.exp %369 : vector<8x96xf32>
    %cst_135 = arith.constant 1.000000e+00 : f32
    %371 = vector.broadcast %cst_135 : f32 to vector<8x96xf32>
    %372 = arith.addf %371, %370 : vector<8x96xf32>
    %373 = arith.divf %371, %372 : vector<8x96xf32>
    %374 = vector.extract_strided_slice %367 {offsets = [0, 96], sizes = [8, 32], strides = [1, 1]} : vector<8x128xf32> to vector<8x32xf32>
    %375 = math.tanh %374 : vector<8x32xf32>
    %376 = vector.extract_strided_slice %373 {offsets = [0, 0], sizes = [8, 32], strides = [1, 1]} : vector<8x96xf32> to vector<8x32xf32>
    %377 = vector.extract_strided_slice %373 {offsets = [0, 32], sizes = [8, 32], strides = [1, 1]} : vector<8x96xf32> to vector<8x32xf32>
    %378 = vector.extract_strided_slice %373 {offsets = [0, 64], sizes = [8, 32], strides = [1, 1]} : vector<8x96xf32> to vector<8x32xf32>
    %379 = arith.mulf %377, %363 : vector<8x32xf32>
    %380 = arith.mulf %376, %375 : vector<8x32xf32>
    %381 = arith.addf %379, %380 : vector<8x32xf32>
    %382 = math.tanh %381 : vector<8x32xf32>
    %383 = arith.mulf %378, %382 : vector<8x32xf32>
    %c56_136 = arith.constant 56 : index
    %c0_137 = arith.constant 0 : index
    %384 = vector.load %arg4[%c56_136, %c0_137] : memref<64x128xf32, #tpu.memory_space<vmem>>, vector<8x128xf32>
    %cst_138 = arith.constant dense<0.000000e+00> : vector<8x128xf32>
    %385 = tpu.matmul %362, %360, %cst_138 {dimension_numbers = #tpu.dot_dimension_numbers<[1], [0], [0], [1], [0, 0, 1, 1], [], []>} : vector<8x32xf32>, vector<32x128xf32>, vector<8x128xf32> -> vector<8x128xf32>
    %386 = arith.addf %384, %385 : vector<8x128xf32>
    %387 = vector.extract_strided_slice %386 {offsets = [0, 0], sizes = [8, 96], strides = [1, 1]} : vector<8x128xf32> to vector<8x96xf32>
    %388 = arith.negf %387 : vector<8x96xf32>
    %389 = math.exp %388 : vector<8x96xf32>
    %cst_139 = arith.constant 1.000000e+00 : f32
    %390 = vector.broadcast %cst_139 : f32 to vector<8x96xf32>
    %391 = arith.addf %390, %389 : vector<8x96xf32>
    %392 = arith.divf %390, %391 : vector<8x96xf32>
    %393 = vector.extract_strided_slice %386 {offsets = [0, 96], sizes = [8, 32], strides = [1, 1]} : vector<8x128xf32> to vector<8x32xf32>
    %394 = math.tanh %393 : vector<8x32xf32>
    %395 = vector.extract_strided_slice %392 {offsets = [0, 0], sizes = [8, 32], strides = [1, 1]} : vector<8x96xf32> to vector<8x32xf32>
    %396 = vector.extract_strided_slice %392 {offsets = [0, 32], sizes = [8, 32], strides = [1, 1]} : vector<8x96xf32> to vector<8x32xf32>
    %397 = vector.extract_strided_slice %392 {offsets = [0, 64], sizes = [8, 32], strides = [1, 1]} : vector<8x96xf32> to vector<8x32xf32>
    %398 = arith.mulf %396, %364 : vector<8x32xf32>
    %399 = arith.mulf %395, %394 : vector<8x32xf32>
    %400 = arith.addf %398, %399 : vector<8x32xf32>
    %401 = math.tanh %400 : vector<8x32xf32>
    %402 = arith.mulf %397, %401 : vector<8x32xf32>
    %c0_140 = arith.constant 0 : index
    %c0_141 = arith.constant 0 : index
    %403 = vector.load %arg5[%c0_140, %c0_141] : memref<64x32xf32, #tpu.memory_space<vmem>>, vector<8x32xf32>
    tpu.vector_store %arg5[%c0_140, %c0_141], %383 {strides = array<i32>} : memref<64x32xf32, #tpu.memory_space<vmem>>, vector<8x32xf32>,
    %c56_142 = arith.constant 56 : index
    %c0_143 = arith.constant 0 : index
    %404 = vector.load %arg6[%c56_142, %c0_143] : memref<64x32xf32, #tpu.memory_space<vmem>>, vector<8x32xf32>
    tpu.vector_store %arg6[%c56_142, %c0_143], %402 {strides = array<i32>} : memref<64x32xf32, #tpu.memory_space<vmem>>, vector<8x32xf32>,
    %c8_144 = arith.constant 8 : index
    %c0_145 = arith.constant 0 : index
    %405 = vector.load %arg3[%c8_144, %c0_145] : memref<64x128xf32, #tpu.memory_space<vmem>>, vector<8x128xf32>
    %cst_146 = arith.constant dense<0.000000e+00> : vector<8x128xf32>
    %406 = tpu.matmul %383, %359, %cst_146 {dimension_numbers = #tpu.dot_dimension_numbers<[1], [0], [0], [1], [0, 0, 1, 1], [], []>} : vector<8x32xf32>, vector<32x128xf32>, vector<8x128xf32> -> vector<8x128xf32>
    %407 = arith.addf %405, %406 : vector<8x128xf32>
    %408 = vector.extract_strided_slice %407 {offsets = [0, 0], sizes = [8, 96], strides = [1, 1]} : vector<8x128xf32> to vector<8x96xf32>
    %409 = arith.negf %408 : vector<8x96xf32>
    %410 = math.exp %409 : vector<8x96xf32>
    %cst_147 = arith.constant 1.000000e+00 : f32
    %411 = vector.broadcast %cst_147 : f32 to vector<8x96xf32>
    %412 = arith.addf %411, %410 : vector<8x96xf32>
    %413 = arith.divf %411, %412 : vector<8x96xf32>
    %414 = vector.extract_strided_slice %407 {offsets = [0, 96], sizes = [8, 32], strides = [1, 1]} : vector<8x128xf32> to vector<8x32xf32>
    %415 = math.tanh %414 : vector<8x32xf32>
    %416 = vector.extract_strided_slice %413 {offsets = [0, 0], sizes = [8, 32], strides = [1, 1]} : vector<8x96xf32> to vector<8x32xf32>
    %417 = vector.extract_strided_slice %413 {offsets = [0, 32], sizes = [8, 32], strides = [1, 1]} : vector<8x96xf32> to vector<8x32xf32>
    %418 = vector.extract_strided_slice %413 {offsets = [0, 64], sizes = [8, 32], strides = [1, 1]} : vector<8x96xf32> to vector<8x32xf32>
    %419 = arith.mulf %417, %381 : vector<8x32xf32>
    %420 = arith.mulf %416, %415 : vector<8x32xf32>
    %421 = arith.addf %419, %420 : vector<8x32xf32>
    %422 = math.tanh %421 : vector<8x32xf32>
    %423 = arith.mulf %418, %422 : vector<8x32xf32>
    %c48_148 = arith.constant 48 : index
    %c0_149 = arith.constant 0 : index
    %424 = vector.load %arg4[%c48_148, %c0_149] : memref<64x128xf32, #tpu.memory_space<vmem>>, vector<8x128xf32>
    %cst_150 = arith.constant dense<0.000000e+00> : vector<8x128xf32>
    %425 = tpu.matmul %402, %360, %cst_150 {dimension_numbers = #tpu.dot_dimension_numbers<[1], [0], [0], [1], [0, 0, 1, 1], [], []>} : vector<8x32xf32>, vector<32x128xf32>, vector<8x128xf32> -> vector<8x128xf32>
    %426 = arith.addf %424, %425 : vector<8x128xf32>
    %427 = vector.extract_strided_slice %426 {offsets = [0, 0], sizes = [8, 96], strides = [1, 1]} : vector<8x128xf32> to vector<8x96xf32>
    %428 = arith.negf %427 : vector<8x96xf32>
    %429 = math.exp %428 : vector<8x96xf32>
    %cst_151 = arith.constant 1.000000e+00 : f32
    %430 = vector.broadcast %cst_151 : f32 to vector<8x96xf32>
    %431 = arith.addf %430, %429 : vector<8x96xf32>
    %432 = arith.divf %430, %431 : vector<8x96xf32>
    %433 = vector.extract_strided_slice %426 {offsets = [0, 96], sizes = [8, 32], strides = [1, 1]} : vector<8x128xf32> to vector<8x32xf32>
    %434 = math.tanh %433 : vector<8x32xf32>
    %435 = vector.extract_strided_slice %432 {offsets = [0, 0], sizes = [8, 32], strides = [1, 1]} : vector<8x96xf32> to vector<8x32xf32>
    %436 = vector.extract_strided_slice %432 {offsets = [0, 32], sizes = [8, 32], strides = [1, 1]} : vector<8x96xf32> to vector<8x32xf32>
    %437 = vector.extract_strided_slice %432 {offsets = [0, 64], sizes = [8, 32], strides = [1, 1]} : vector<8x96xf32> to vector<8x32xf32>
    %438 = arith.mulf %436, %400 : vector<8x32xf32>
    %439 = arith.mulf %435, %434 : vector<8x32xf32>
    %440 = arith.addf %438, %439 : vector<8x32xf32>
    %441 = math.tanh %440 : vector<8x32xf32>
    %442 = arith.mulf %437, %441 : vector<8x32xf32>
    %c8_152 = arith.constant 8 : index
    %c0_153 = arith.constant 0 : index
    %443 = vector.load %arg5[%c8_152, %c0_153] : memref<64x32xf32, #tpu.memory_space<vmem>>, vector<8x32xf32>
    tpu.vector_store %arg5[%c8_152, %c0_153], %423 {strides = array<i32>} : memref<64x32xf32, #tpu.memory_space<vmem>>, vector<8x32xf32>,
    %c48_154 = arith.constant 48 : index
    %c0_155 = arith.constant 0 : index
    %444 = vector.load %arg6[%c48_154, %c0_155] : memref<64x32xf32, #tpu.memory_space<vmem>>, vector<8x32xf32>
    tpu.vector_store %arg6[%c48_154, %c0_155], %442 {strides = array<i32>} : memref<64x32xf32, #tpu.memory_space<vmem>>, vector<8x32xf32>,
    %c16_156 = arith.constant 16 : index
    %c0_157 = arith.constant 0 : index
    %445 = vector.load %arg3[%c16_156, %c0_157] : memref<64x128xf32, #tpu.memory_space<vmem>>, vector<8x128xf32>
    %cst_158 = arith.constant dense<0.000000e+00> : vector<8x128xf32>
    %446 = tpu.matmul %423, %359, %cst_158 {dimension_numbers = #tpu.dot_dimension_numbers<[1], [0], [0], [1], [0, 0, 1, 1], [], []>} : vector<8x32xf32>, vector<32x128xf32>, vector<8x128xf32> -> vector<8x128xf32>
    %447 = arith.addf %445, %446 : vector<8x128xf32>
    %448 = vector.extract_strided_slice %447 {offsets = [0, 0], sizes = [8, 96], strides = [1, 1]} : vector<8x128xf32> to vector<8x96xf32>
    %449 = arith.negf %448 : vector<8x96xf32>
    %450 = math.exp %449 : vector<8x96xf32>
    %cst_159 = arith.constant 1.000000e+00 : f32
    %451 = vector.broadcast %cst_159 : f32 to vector<8x96xf32>
    %452 = arith.addf %451, %450 : vector<8x96xf32>
    %453 = arith.divf %451, %452 : vector<8x96xf32>
    %454 = vector.extract_strided_slice %447 {offsets = [0, 96], sizes = [8, 32], strides = [1, 1]} : vector<8x128xf32> to vector<8x32xf32>
    %455 = math.tanh %454 : vector<8x32xf32>
    %456 = vector.extract_strided_slice %453 {offsets = [0, 0], sizes = [8, 32], strides = [1, 1]} : vector<8x96xf32> to vector<8x32xf32>
    %457 = vector.extract_strided_slice %453 {offsets = [0, 32], sizes = [8, 32], strides = [1, 1]} : vector<8x96xf32> to vector<8x32xf32>
    %458 = vector.extract_strided_slice %453 {offsets = [0, 64], sizes = [8, 32], strides = [1, 1]} : vector<8x96xf32> to vector<8x32xf32>
    %459 = arith.mulf %457, %421 : vector<8x32xf32>
    %460 = arith.mulf %456, %455 : vector<8x32xf32>
    %461 = arith.addf %459, %460 : vector<8x32xf32>
    %462 = math.tanh %461 : vector<8x32xf32>
    %463 = arith.mulf %458, %462 : vector<8x32xf32>
    %c40_160 = arith.constant 40 : index
    %c0_161 = arith.constant 0 : index
    %464 = vector.load %arg4[%c40_160, %c0_161] : memref<64x128xf32, #tpu.memory_space<vmem>>, vector<8x128xf32>
    %cst_162 = arith.constant dense<0.000000e+00> : vector<8x128xf32>
    %465 = tpu.matmul %442, %360, %cst_162 {dimension_numbers = #tpu.dot_dimension_numbers<[1], [0], [0], [1], [0, 0, 1, 1], [], []>} : vector<8x32xf32>, vector<32x128xf32>, vector<8x128xf32> -> vector<8x128xf32>
    %466 = arith.addf %464, %465 : vector<8x128xf32>
    %467 = vector.extract_strided_slice %466 {offsets = [0, 0], sizes = [8, 96], strides = [1, 1]} : vector<8x128xf32> to vector<8x96xf32>
    %468 = arith.negf %467 : vector<8x96xf32>
    %469 = math.exp %468 : vector<8x96xf32>
    %cst_163 = arith.constant 1.000000e+00 : f32
    %470 = vector.broadcast %cst_163 : f32 to vector<8x96xf32>
    %471 = arith.addf %470, %469 : vector<8x96xf32>
    %472 = arith.divf %470, %471 : vector<8x96xf32>
    %473 = vector.extract_strided_slice %466 {offsets = [0, 96], sizes = [8, 32], strides = [1, 1]} : vector<8x128xf32> to vector<8x32xf32>
    %474 = math.tanh %473 : vector<8x32xf32>
    %475 = vector.extract_strided_slice %472 {offsets = [0, 0], sizes = [8, 32], strides = [1, 1]} : vector<8x96xf32> to vector<8x32xf32>
    %476 = vector.extract_strided_slice %472 {offsets = [0, 32], sizes = [8, 32], strides = [1, 1]} : vector<8x96xf32> to vector<8x32xf32>
    %477 = vector.extract_strided_slice %472 {offsets = [0, 64], sizes = [8, 32], strides = [1, 1]} : vector<8x96xf32> to vector<8x32xf32>
    %478 = arith.mulf %476, %440 : vector<8x32xf32>
    %479 = arith.mulf %475, %474 : vector<8x32xf32>
    %480 = arith.addf %478, %479 : vector<8x32xf32>
    %481 = math.tanh %480 : vector<8x32xf32>
    %482 = arith.mulf %477, %481 : vector<8x32xf32>
    %c16_164 = arith.constant 16 : index
    %c0_165 = arith.constant 0 : index
    %483 = vector.load %arg5[%c16_164, %c0_165] : memref<64x32xf32, #tpu.memory_space<vmem>>, vector<8x32xf32>
    tpu.vector_store %arg5[%c16_164, %c0_165], %463 {strides = array<i32>} : memref<64x32xf32, #tpu.memory_space<vmem>>, vector<8x32xf32>,
    %c40_166 = arith.constant 40 : index
    %c0_167 = arith.constant 0 : index
    %484 = vector.load %arg6[%c40_166, %c0_167] : memref<64x32xf32, #tpu.memory_space<vmem>>, vector<8x32xf32>
    tpu.vector_store %arg6[%c40_166, %c0_167], %482 {strides = array<i32>} : memref<64x32xf32, #tpu.memory_space<vmem>>, vector<8x32xf32>,
    %c24_168 = arith.constant 24 : index
    %c0_169 = arith.constant 0 : index
    %485 = vector.load %arg3[%c24_168, %c0_169] : memref<64x128xf32, #tpu.memory_space<vmem>>, vector<8x128xf32>
    %cst_170 = arith.constant dense<0.000000e+00> : vector<8x128xf32>
    %486 = tpu.matmul %463, %359, %cst_170 {dimension_numbers = #tpu.dot_dimension_numbers<[1], [0], [0], [1], [0, 0, 1, 1], [], []>} : vector<8x32xf32>, vector<32x128xf32>, vector<8x128xf32> -> vector<8x128xf32>
    %487 = arith.addf %485, %486 : vector<8x128xf32>
    %488 = vector.extract_strided_slice %487 {offsets = [0, 0], sizes = [8, 96], strides = [1, 1]} : vector<8x128xf32> to vector<8x96xf32>
    %489 = arith.negf %488 : vector<8x96xf32>
    %490 = math.exp %489 : vector<8x96xf32>
    %cst_171 = arith.constant 1.000000e+00 : f32
    %491 = vector.broadcast %cst_171 : f32 to vector<8x96xf32>
    %492 = arith.addf %491, %490 : vector<8x96xf32>
    %493 = arith.divf %491, %492 : vector<8x96xf32>
    %494 = vector.extract_strided_slice %487 {offsets = [0, 96], sizes = [8, 32], strides = [1, 1]} : vector<8x128xf32> to vector<8x32xf32>
    %495 = math.tanh %494 : vector<8x32xf32>
    %496 = vector.extract_strided_slice %493 {offsets = [0, 0], sizes = [8, 32], strides = [1, 1]} : vector<8x96xf32> to vector<8x32xf32>
    %497 = vector.extract_strided_slice %493 {offsets = [0, 32], sizes = [8, 32], strides = [1, 1]} : vector<8x96xf32> to vector<8x32xf32>
    %498 = vector.extract_strided_slice %493 {offsets = [0, 64], sizes = [8, 32], strides = [1, 1]} : vector<8x96xf32> to vector<8x32xf32>
    %499 = arith.mulf %497, %461 : vector<8x32xf32>
    %500 = arith.mulf %496, %495 : vector<8x32xf32>
    %501 = arith.addf %499, %500 : vector<8x32xf32>
    %502 = math.tanh %501 : vector<8x32xf32>
    %503 = arith.mulf %498, %502 : vector<8x32xf32>
    %c32_172 = arith.constant 32 : index
    %c0_173 = arith.constant 0 : index
    %504 = vector.load %arg4[%c32_172, %c0_173] : memref<64x128xf32, #tpu.memory_space<vmem>>, vector<8x128xf32>
    %cst_174 = arith.constant dense<0.000000e+00> : vector<8x128xf32>
    %505 = tpu.matmul %482, %360, %cst_174 {dimension_numbers = #tpu.dot_dimension_numbers<[1], [0], [0], [1], [0, 0, 1, 1], [], []>} : vector<8x32xf32>, vector<32x128xf32>, vector<8x128xf32> -> vector<8x128xf32>
    %506 = arith.addf %504, %505 : vector<8x128xf32>
    %507 = vector.extract_strided_slice %506 {offsets = [0, 0], sizes = [8, 96], strides = [1, 1]} : vector<8x128xf32> to vector<8x96xf32>
    %508 = arith.negf %507 : vector<8x96xf32>
    %509 = math.exp %508 : vector<8x96xf32>
    %cst_175 = arith.constant 1.000000e+00 : f32
    %510 = vector.broadcast %cst_175 : f32 to vector<8x96xf32>
    %511 = arith.addf %510, %509 : vector<8x96xf32>
    %512 = arith.divf %510, %511 : vector<8x96xf32>
    %513 = vector.extract_strided_slice %506 {offsets = [0, 96], sizes = [8, 32], strides = [1, 1]} : vector<8x128xf32> to vector<8x32xf32>
    %514 = math.tanh %513 : vector<8x32xf32>
    %515 = vector.extract_strided_slice %512 {offsets = [0, 0], sizes = [8, 32], strides = [1, 1]} : vector<8x96xf32> to vector<8x32xf32>
    %516 = vector.extract_strided_slice %512 {offsets = [0, 32], sizes = [8, 32], strides = [1, 1]} : vector<8x96xf32> to vector<8x32xf32>
    %517 = vector.extract_strided_slice %512 {offsets = [0, 64], sizes = [8, 32], strides = [1, 1]} : vector<8x96xf32> to vector<8x32xf32>
    %518 = arith.mulf %516, %480 : vector<8x32xf32>
    %519 = arith.mulf %515, %514 : vector<8x32xf32>
    %520 = arith.addf %518, %519 : vector<8x32xf32>
    %521 = math.tanh %520 : vector<8x32xf32>
    %522 = arith.mulf %517, %521 : vector<8x32xf32>
    %c24_176 = arith.constant 24 : index
    %c0_177 = arith.constant 0 : index
    %523 = vector.load %arg5[%c24_176, %c0_177] : memref<64x32xf32, #tpu.memory_space<vmem>>, vector<8x32xf32>
    tpu.vector_store %arg5[%c24_176, %c0_177], %503 {strides = array<i32>} : memref<64x32xf32, #tpu.memory_space<vmem>>, vector<8x32xf32>,
    %c32_178 = arith.constant 32 : index
    %c0_179 = arith.constant 0 : index
    %524 = vector.load %arg6[%c32_178, %c0_179] : memref<64x32xf32, #tpu.memory_space<vmem>>, vector<8x32xf32>
    tpu.vector_store %arg6[%c32_178, %c0_179], %522 {strides = array<i32>} : memref<64x32xf32, #tpu.memory_space<vmem>>, vector<8x32xf32>,
    %c32_180 = arith.constant 32 : index
    %c0_181 = arith.constant 0 : index
    %525 = vector.load %arg3[%c32_180, %c0_181] : memref<64x128xf32, #tpu.memory_space<vmem>>, vector<8x128xf32>
    %cst_182 = arith.constant dense<0.000000e+00> : vector<8x128xf32>
    %526 = tpu.matmul %503, %359, %cst_182 {dimension_numbers = #tpu.dot_dimension_numbers<[1], [0], [0], [1], [0, 0, 1, 1], [], []>} : vector<8x32xf32>, vector<32x128xf32>, vector<8x128xf32> -> vector<8x128xf32>
    %527 = arith.addf %525, %526 : vector<8x128xf32>
    %528 = vector.extract_strided_slice %527 {offsets = [0, 0], sizes = [8, 96], strides = [1, 1]} : vector<8x128xf32> to vector<8x96xf32>
    %529 = arith.negf %528 : vector<8x96xf32>
    %530 = math.exp %529 : vector<8x96xf32>
    %cst_183 = arith.constant 1.000000e+00 : f32
    %531 = vector.broadcast %cst_183 : f32 to vector<8x96xf32>
    %532 = arith.addf %531, %530 : vector<8x96xf32>
    %533 = arith.divf %531, %532 : vector<8x96xf32>
    %534 = vector.extract_strided_slice %527 {offsets = [0, 96], sizes = [8, 32], strides = [1, 1]} : vector<8x128xf32> to vector<8x32xf32>
    %535 = math.tanh %534 : vector<8x32xf32>
    %536 = vector.extract_strided_slice %533 {offsets = [0, 0], sizes = [8, 32], strides = [1, 1]} : vector<8x96xf32> to vector<8x32xf32>
    %537 = vector.extract_strided_slice %533 {offsets = [0, 32], sizes = [8, 32], strides = [1, 1]} : vector<8x96xf32> to vector<8x32xf32>
    %538 = vector.extract_strided_slice %533 {offsets = [0, 64], sizes = [8, 32], strides = [1, 1]} : vector<8x96xf32> to vector<8x32xf32>
    %539 = arith.mulf %537, %501 : vector<8x32xf32>
    %540 = arith.mulf %536, %535 : vector<8x32xf32>
    %541 = arith.addf %539, %540 : vector<8x32xf32>
    %542 = math.tanh %541 : vector<8x32xf32>
    %543 = arith.mulf %538, %542 : vector<8x32xf32>
    %c24_184 = arith.constant 24 : index
    %c0_185 = arith.constant 0 : index
    %544 = vector.load %arg4[%c24_184, %c0_185] : memref<64x128xf32, #tpu.memory_space<vmem>>, vector<8x128xf32>
    %cst_186 = arith.constant dense<0.000000e+00> : vector<8x128xf32>
    %545 = tpu.matmul %522, %360, %cst_186 {dimension_numbers = #tpu.dot_dimension_numbers<[1], [0], [0], [1], [0, 0, 1, 1], [], []>} : vector<8x32xf32>, vector<32x128xf32>, vector<8x128xf32> -> vector<8x128xf32>
    %546 = arith.addf %544, %545 : vector<8x128xf32>
    %547 = vector.extract_strided_slice %546 {offsets = [0, 0], sizes = [8, 96], strides = [1, 1]} : vector<8x128xf32> to vector<8x96xf32>
    %548 = arith.negf %547 : vector<8x96xf32>
    %549 = math.exp %548 : vector<8x96xf32>
    %cst_187 = arith.constant 1.000000e+00 : f32
    %550 = vector.broadcast %cst_187 : f32 to vector<8x96xf32>
    %551 = arith.addf %550, %549 : vector<8x96xf32>
    %552 = arith.divf %550, %551 : vector<8x96xf32>
    %553 = vector.extract_strided_slice %546 {offsets = [0, 96], sizes = [8, 32], strides = [1, 1]} : vector<8x128xf32> to vector<8x32xf32>
    %554 = math.tanh %553 : vector<8x32xf32>
    %555 = vector.extract_strided_slice %552 {offsets = [0, 0], sizes = [8, 32], strides = [1, 1]} : vector<8x96xf32> to vector<8x32xf32>
    %556 = vector.extract_strided_slice %552 {offsets = [0, 32], sizes = [8, 32], strides = [1, 1]} : vector<8x96xf32> to vector<8x32xf32>
    %557 = vector.extract_strided_slice %552 {offsets = [0, 64], sizes = [8, 32], strides = [1, 1]} : vector<8x96xf32> to vector<8x32xf32>
    %558 = arith.mulf %556, %520 : vector<8x32xf32>
    %559 = arith.mulf %555, %554 : vector<8x32xf32>
    %560 = arith.addf %558, %559 : vector<8x32xf32>
    %561 = math.tanh %560 : vector<8x32xf32>
    %562 = arith.mulf %557, %561 : vector<8x32xf32>
    %c32_188 = arith.constant 32 : index
    %c0_189 = arith.constant 0 : index
    %563 = vector.load %arg5[%c32_188, %c0_189] : memref<64x32xf32, #tpu.memory_space<vmem>>, vector<8x32xf32>
    tpu.vector_store %arg5[%c32_188, %c0_189], %543 {strides = array<i32>} : memref<64x32xf32, #tpu.memory_space<vmem>>, vector<8x32xf32>,
    %c24_190 = arith.constant 24 : index
    %c0_191 = arith.constant 0 : index
    %564 = vector.load %arg6[%c24_190, %c0_191] : memref<64x32xf32, #tpu.memory_space<vmem>>, vector<8x32xf32>
    tpu.vector_store %arg6[%c24_190, %c0_191], %562 {strides = array<i32>} : memref<64x32xf32, #tpu.memory_space<vmem>>, vector<8x32xf32>,
    %c40_192 = arith.constant 40 : index
    %c0_193 = arith.constant 0 : index
    %565 = vector.load %arg3[%c40_192, %c0_193] : memref<64x128xf32, #tpu.memory_space<vmem>>, vector<8x128xf32>
    %cst_194 = arith.constant dense<0.000000e+00> : vector<8x128xf32>
    %566 = tpu.matmul %543, %359, %cst_194 {dimension_numbers = #tpu.dot_dimension_numbers<[1], [0], [0], [1], [0, 0, 1, 1], [], []>} : vector<8x32xf32>, vector<32x128xf32>, vector<8x128xf32> -> vector<8x128xf32>
    %567 = arith.addf %565, %566 : vector<8x128xf32>
    %568 = vector.extract_strided_slice %567 {offsets = [0, 0], sizes = [8, 96], strides = [1, 1]} : vector<8x128xf32> to vector<8x96xf32>
    %569 = arith.negf %568 : vector<8x96xf32>
    %570 = math.exp %569 : vector<8x96xf32>
    %cst_195 = arith.constant 1.000000e+00 : f32
    %571 = vector.broadcast %cst_195 : f32 to vector<8x96xf32>
    %572 = arith.addf %571, %570 : vector<8x96xf32>
    %573 = arith.divf %571, %572 : vector<8x96xf32>
    %574 = vector.extract_strided_slice %567 {offsets = [0, 96], sizes = [8, 32], strides = [1, 1]} : vector<8x128xf32> to vector<8x32xf32>
    %575 = math.tanh %574 : vector<8x32xf32>
    %576 = vector.extract_strided_slice %573 {offsets = [0, 0], sizes = [8, 32], strides = [1, 1]} : vector<8x96xf32> to vector<8x32xf32>
    %577 = vector.extract_strided_slice %573 {offsets = [0, 32], sizes = [8, 32], strides = [1, 1]} : vector<8x96xf32> to vector<8x32xf32>
    %578 = vector.extract_strided_slice %573 {offsets = [0, 64], sizes = [8, 32], strides = [1, 1]} : vector<8x96xf32> to vector<8x32xf32>
    %579 = arith.mulf %577, %541 : vector<8x32xf32>
    %580 = arith.mulf %576, %575 : vector<8x32xf32>
    %581 = arith.addf %579, %580 : vector<8x32xf32>
    %582 = math.tanh %581 : vector<8x32xf32>
    %583 = arith.mulf %578, %582 : vector<8x32xf32>
    %c16_196 = arith.constant 16 : index
    %c0_197 = arith.constant 0 : index
    %584 = vector.load %arg4[%c16_196, %c0_197] : memref<64x128xf32, #tpu.memory_space<vmem>>, vector<8x128xf32>
    %cst_198 = arith.constant dense<0.000000e+00> : vector<8x128xf32>
    %585 = tpu.matmul %562, %360, %cst_198 {dimension_numbers = #tpu.dot_dimension_numbers<[1], [0], [0], [1], [0, 0, 1, 1], [], []>} : vector<8x32xf32>, vector<32x128xf32>, vector<8x128xf32> -> vector<8x128xf32>
    %586 = arith.addf %584, %585 : vector<8x128xf32>
    %587 = vector.extract_strided_slice %586 {offsets = [0, 0], sizes = [8, 96], strides = [1, 1]} : vector<8x128xf32> to vector<8x96xf32>
    %588 = arith.negf %587 : vector<8x96xf32>
    %589 = math.exp %588 : vector<8x96xf32>
    %cst_199 = arith.constant 1.000000e+00 : f32
    %590 = vector.broadcast %cst_199 : f32 to vector<8x96xf32>
    %591 = arith.addf %590, %589 : vector<8x96xf32>
    %592 = arith.divf %590, %591 : vector<8x96xf32>
    %593 = vector.extract_strided_slice %586 {offsets = [0, 96], sizes = [8, 32], strides = [1, 1]} : vector<8x128xf32> to vector<8x32xf32>
    %594 = math.tanh %593 : vector<8x32xf32>
    %595 = vector.extract_strided_slice %592 {offsets = [0, 0], sizes = [8, 32], strides = [1, 1]} : vector<8x96xf32> to vector<8x32xf32>
    %596 = vector.extract_strided_slice %592 {offsets = [0, 32], sizes = [8, 32], strides = [1, 1]} : vector<8x96xf32> to vector<8x32xf32>
    %597 = vector.extract_strided_slice %592 {offsets = [0, 64], sizes = [8, 32], strides = [1, 1]} : vector<8x96xf32> to vector<8x32xf32>
    %598 = arith.mulf %596, %560 : vector<8x32xf32>
    %599 = arith.mulf %595, %594 : vector<8x32xf32>
    %600 = arith.addf %598, %599 : vector<8x32xf32>
    %601 = math.tanh %600 : vector<8x32xf32>
    %602 = arith.mulf %597, %601 : vector<8x32xf32>
    %c40_200 = arith.constant 40 : index
    %c0_201 = arith.constant 0 : index
    %603 = vector.load %arg5[%c40_200, %c0_201] : memref<64x32xf32, #tpu.memory_space<vmem>>, vector<8x32xf32>
    tpu.vector_store %arg5[%c40_200, %c0_201], %583 {strides = array<i32>} : memref<64x32xf32, #tpu.memory_space<vmem>>, vector<8x32xf32>,
    %c16_202 = arith.constant 16 : index
    %c0_203 = arith.constant 0 : index
    %604 = vector.load %arg6[%c16_202, %c0_203] : memref<64x32xf32, #tpu.memory_space<vmem>>, vector<8x32xf32>
    tpu.vector_store %arg6[%c16_202, %c0_203], %602 {strides = array<i32>} : memref<64x32xf32, #tpu.memory_space<vmem>>, vector<8x32xf32>,
    %c48_204 = arith.constant 48 : index
    %c0_205 = arith.constant 0 : index
    %605 = vector.load %arg3[%c48_204, %c0_205] : memref<64x128xf32, #tpu.memory_space<vmem>>, vector<8x128xf32>
    %cst_206 = arith.constant dense<0.000000e+00> : vector<8x128xf32>
    %606 = tpu.matmul %583, %359, %cst_206 {dimension_numbers = #tpu.dot_dimension_numbers<[1], [0], [0], [1], [0, 0, 1, 1], [], []>} : vector<8x32xf32>, vector<32x128xf32>, vector<8x128xf32> -> vector<8x128xf32>
    %607 = arith.addf %605, %606 : vector<8x128xf32>
    %608 = vector.extract_strided_slice %607 {offsets = [0, 0], sizes = [8, 96], strides = [1, 1]} : vector<8x128xf32> to vector<8x96xf32>
    %609 = arith.negf %608 : vector<8x96xf32>
    %610 = math.exp %609 : vector<8x96xf32>
    %cst_207 = arith.constant 1.000000e+00 : f32
    %611 = vector.broadcast %cst_207 : f32 to vector<8x96xf32>
    %612 = arith.addf %611, %610 : vector<8x96xf32>
    %613 = arith.divf %611, %612 : vector<8x96xf32>
    %614 = vector.extract_strided_slice %607 {offsets = [0, 96], sizes = [8, 32], strides = [1, 1]} : vector<8x128xf32> to vector<8x32xf32>
    %615 = math.tanh %614 : vector<8x32xf32>
    %616 = vector.extract_strided_slice %613 {offsets = [0, 0], sizes = [8, 32], strides = [1, 1]} : vector<8x96xf32> to vector<8x32xf32>
    %617 = vector.extract_strided_slice %613 {offsets = [0, 32], sizes = [8, 32], strides = [1, 1]} : vector<8x96xf32> to vector<8x32xf32>
    %618 = vector.extract_strided_slice %613 {offsets = [0, 64], sizes = [8, 32], strides = [1, 1]} : vector<8x96xf32> to vector<8x32xf32>
    %619 = arith.mulf %617, %581 : vector<8x32xf32>
    %620 = arith.mulf %616, %615 : vector<8x32xf32>
    %621 = arith.addf %619, %620 : vector<8x32xf32>
    %622 = math.tanh %621 : vector<8x32xf32>
    %623 = arith.mulf %618, %622 : vector<8x32xf32>
    %c8_208 = arith.constant 8 : index
    %c0_209 = arith.constant 0 : index
    %624 = vector.load %arg4[%c8_208, %c0_209] : memref<64x128xf32, #tpu.memory_space<vmem>>, vector<8x128xf32>
    %cst_210 = arith.constant dense<0.000000e+00> : vector<8x128xf32>
    %625 = tpu.matmul %602, %360, %cst_210 {dimension_numbers = #tpu.dot_dimension_numbers<[1], [0], [0], [1], [0, 0, 1, 1], [], []>} : vector<8x32xf32>, vector<32x128xf32>, vector<8x128xf32> -> vector<8x128xf32>
    %626 = arith.addf %624, %625 : vector<8x128xf32>
    %627 = vector.extract_strided_slice %626 {offsets = [0, 0], sizes = [8, 96], strides = [1, 1]} : vector<8x128xf32> to vector<8x96xf32>
    %628 = arith.negf %627 : vector<8x96xf32>
    %629 = math.exp %628 : vector<8x96xf32>
    %cst_211 = arith.constant 1.000000e+00 : f32
    %630 = vector.broadcast %cst_211 : f32 to vector<8x96xf32>
    %631 = arith.addf %630, %629 : vector<8x96xf32>
    %632 = arith.divf %630, %631 : vector<8x96xf32>
    %633 = vector.extract_strided_slice %626 {offsets = [0, 96], sizes = [8, 32], strides = [1, 1]} : vector<8x128xf32> to vector<8x32xf32>
    %634 = math.tanh %633 : vector<8x32xf32>
    %635 = vector.extract_strided_slice %632 {offsets = [0, 0], sizes = [8, 32], strides = [1, 1]} : vector<8x96xf32> to vector<8x32xf32>
    %636 = vector.extract_strided_slice %632 {offsets = [0, 32], sizes = [8, 32], strides = [1, 1]} : vector<8x96xf32> to vector<8x32xf32>
    %637 = vector.extract_strided_slice %632 {offsets = [0, 64], sizes = [8, 32], strides = [1, 1]} : vector<8x96xf32> to vector<8x32xf32>
    %638 = arith.mulf %636, %600 : vector<8x32xf32>
    %639 = arith.mulf %635, %634 : vector<8x32xf32>
    %640 = arith.addf %638, %639 : vector<8x32xf32>
    %641 = math.tanh %640 : vector<8x32xf32>
    %642 = arith.mulf %637, %641 : vector<8x32xf32>
    %c48_212 = arith.constant 48 : index
    %c0_213 = arith.constant 0 : index
    %643 = vector.load %arg5[%c48_212, %c0_213] : memref<64x32xf32, #tpu.memory_space<vmem>>, vector<8x32xf32>
    tpu.vector_store %arg5[%c48_212, %c0_213], %623 {strides = array<i32>} : memref<64x32xf32, #tpu.memory_space<vmem>>, vector<8x32xf32>,
    %c8_214 = arith.constant 8 : index
    %c0_215 = arith.constant 0 : index
    %644 = vector.load %arg6[%c8_214, %c0_215] : memref<64x32xf32, #tpu.memory_space<vmem>>, vector<8x32xf32>
    tpu.vector_store %arg6[%c8_214, %c0_215], %642 {strides = array<i32>} : memref<64x32xf32, #tpu.memory_space<vmem>>, vector<8x32xf32>,
    %c56_216 = arith.constant 56 : index
    %c0_217 = arith.constant 0 : index
    %645 = vector.load %arg3[%c56_216, %c0_217] : memref<64x128xf32, #tpu.memory_space<vmem>>, vector<8x128xf32>
    %cst_218 = arith.constant dense<0.000000e+00> : vector<8x128xf32>
    %646 = tpu.matmul %623, %359, %cst_218 {dimension_numbers = #tpu.dot_dimension_numbers<[1], [0], [0], [1], [0, 0, 1, 1], [], []>} : vector<8x32xf32>, vector<32x128xf32>, vector<8x128xf32> -> vector<8x128xf32>
    %647 = arith.addf %645, %646 : vector<8x128xf32>
    %648 = vector.extract_strided_slice %647 {offsets = [0, 0], sizes = [8, 96], strides = [1, 1]} : vector<8x128xf32> to vector<8x96xf32>
    %649 = arith.negf %648 : vector<8x96xf32>
    %650 = math.exp %649 : vector<8x96xf32>
    %cst_219 = arith.constant 1.000000e+00 : f32
    %651 = vector.broadcast %cst_219 : f32 to vector<8x96xf32>
    %652 = arith.addf %651, %650 : vector<8x96xf32>
    %653 = arith.divf %651, %652 : vector<8x96xf32>
    %654 = vector.extract_strided_slice %647 {offsets = [0, 96], sizes = [8, 32], strides = [1, 1]} : vector<8x128xf32> to vector<8x32xf32>
    %655 = math.tanh %654 : vector<8x32xf32>
    %656 = vector.extract_strided_slice %653 {offsets = [0, 0], sizes = [8, 32], strides = [1, 1]} : vector<8x96xf32> to vector<8x32xf32>
    %657 = vector.extract_strided_slice %653 {offsets = [0, 32], sizes = [8, 32], strides = [1, 1]} : vector<8x96xf32> to vector<8x32xf32>
    %658 = vector.extract_strided_slice %653 {offsets = [0, 64], sizes = [8, 32], strides = [1, 1]} : vector<8x96xf32> to vector<8x32xf32>
    %659 = arith.mulf %657, %621 : vector<8x32xf32>
    %660 = arith.mulf %656, %655 : vector<8x32xf32>
    %661 = arith.addf %659, %660 : vector<8x32xf32>
    %662 = math.tanh %661 : vector<8x32xf32>
    %663 = arith.mulf %658, %662 : vector<8x32xf32>
    %c0_220 = arith.constant 0 : index
    %c0_221 = arith.constant 0 : index
    %664 = vector.load %arg4[%c0_220, %c0_221] : memref<64x128xf32, #tpu.memory_space<vmem>>, vector<8x128xf32>
    %cst_222 = arith.constant dense<0.000000e+00> : vector<8x128xf32>
    %665 = tpu.matmul %642, %360, %cst_222 {dimension_numbers = #tpu.dot_dimension_numbers<[1], [0], [0], [1], [0, 0, 1, 1], [], []>} : vector<8x32xf32>, vector<32x128xf32>, vector<8x128xf32> -> vector<8x128xf32>
    %666 = arith.addf %664, %665 : vector<8x128xf32>
    %667 = vector.extract_strided_slice %666 {offsets = [0, 0], sizes = [8, 96], strides = [1, 1]} : vector<8x128xf32> to vector<8x96xf32>
    %668 = arith.negf %667 : vector<8x96xf32>
    %669 = math.exp %668 : vector<8x96xf32>
    %cst_223 = arith.constant 1.000000e+00 : f32
    %670 = vector.broadcast %cst_223 : f32 to vector<8x96xf32>
    %671 = arith.addf %670, %669 : vector<8x96xf32>
    %672 = arith.divf %670, %671 : vector<8x96xf32>
    %673 = vector.extract_strided_slice %666 {offsets = [0, 96], sizes = [8, 32], strides = [1, 1]} : vector<8x128xf32> to vector<8x32xf32>
    %674 = math.tanh %673 : vector<8x32xf32>
    %675 = vector.extract_strided_slice %672 {offsets = [0, 0], sizes = [8, 32], strides = [1, 1]} : vector<8x96xf32> to vector<8x32xf32>
    %676 = vector.extract_strided_slice %672 {offsets = [0, 32], sizes = [8, 32], strides = [1, 1]} : vector<8x96xf32> to vector<8x32xf32>
    %677 = vector.extract_strided_slice %672 {offsets = [0, 64], sizes = [8, 32], strides = [1, 1]} : vector<8x96xf32> to vector<8x32xf32>
    %678 = arith.mulf %676, %640 : vector<8x32xf32>
    %679 = arith.mulf %675, %674 : vector<8x32xf32>
    %680 = arith.addf %678, %679 : vector<8x32xf32>
    %681 = math.tanh %680 : vector<8x32xf32>
    %682 = arith.mulf %677, %681 : vector<8x32xf32>
    %c56_224 = arith.constant 56 : index
    %c0_225 = arith.constant 0 : index
    %683 = vector.load %arg5[%c56_224, %c0_225] : memref<64x32xf32, #tpu.memory_space<vmem>>, vector<8x32xf32>
    tpu.vector_store %arg5[%c56_224, %c0_225], %663 {strides = array<i32>} : memref<64x32xf32, #tpu.memory_space<vmem>>, vector<8x32xf32>,
    %c0_226 = arith.constant 0 : index
    %c0_227 = arith.constant 0 : index
    %684 = vector.load %arg6[%c0_226, %c0_227] : memref<64x32xf32, #tpu.memory_space<vmem>>, vector<8x32xf32>
    tpu.vector_store %arg6[%c0_226, %c0_227], %682 {strides = array<i32>} : memref<64x32xf32, #tpu.memory_space<vmem>>, vector<8x32xf32>,
    %c0_228 = arith.constant 0 : index
    %c0_229 = arith.constant 0 : index
    %685 = vector.load %arg5[%c0_228, %c0_229] : memref<64x32xf32, #tpu.memory_space<vmem>>, vector<64x32xf32>
    %c0_230 = arith.constant 0 : index
    %c0_231 = arith.constant 0 : index
    %686 = vector.load %arg6[%c0_230, %c0_231] : memref<64x32xf32, #tpu.memory_space<vmem>>, vector<64x32xf32>
    %c320 = arith.constant 320 : index
    %c0_232 = arith.constant 0 : index
    %687 = vector.load %arg1[%c320, %c0_232] : memref<392x128xf32, #tpu.memory_space<vmem>>, vector<32x128xf32>
    %cst_233 = arith.constant dense<0.000000e+00> : vector<64x128xf32>
    %688 = tpu.matmul %685, %687, %cst_233 {dimension_numbers = #tpu.dot_dimension_numbers<[1], [0], [0], [1], [0, 0, 1, 1], [], []>} : vector<64x32xf32>, vector<32x128xf32>, vector<64x128xf32> -> vector<64x128xf32>
    %c352 = arith.constant 352 : index
    %c0_234 = arith.constant 0 : index
    %689 = vector.load %arg1[%c352, %c0_234] : memref<392x128xf32, #tpu.memory_space<vmem>>, vector<32x128xf32>
    %cst_235 = arith.constant dense<0.000000e+00> : vector<64x128xf32>
    %690 = tpu.matmul %686, %689, %cst_235 {dimension_numbers = #tpu.dot_dimension_numbers<[1], [0], [0], [1], [0, 0, 1, 1], [], []>} : vector<64x32xf32>, vector<32x128xf32>, vector<64x128xf32> -> vector<64x128xf32>
    %691 = arith.addf %688, %690 : vector<64x128xf32>
    %c384 = arith.constant 384 : index
    %c0_236 = arith.constant 0 : index
    %692 = vector.load %arg1[%c384, %c0_236] : memref<392x128xf32, #tpu.memory_space<vmem>>, vector<1x128xf32>
    %693 = vector.broadcast %692 : vector<1x128xf32> to vector<64x128xf32>
    %694 = arith.addf %691, %693 : vector<64x128xf32>
    %c0_237 = arith.constant 0 : index
    %c0_238 = arith.constant 0 : index
    %695 = vector.load %arg2[%c0_237, %c0_238] : memref<64x128xf32, #tpu.memory_space<vmem>>, vector<64x128xf32>
    tpu.vector_store %arg2[%c0_237, %c0_238], %694 {strides = array<i32>} : memref<64x128xf32, #tpu.memory_space<vmem>>, vector<64x128xf32>,
    return
  }
}

</mosaic_0001>

<llo_original>
// kernel: model_forward.1
$region0: #{model_forward.1}
  #allocation0 [shape = 'u32[]', space=smem, size = 0x4, offset = 0x4, fixed_abs, tag = 'smem constant byte address 0x4 - core index']
  #allocation1 [shape = 'u32[144,128]{1,0:T(1,128)}', space=vmem, size = 0x12000, scoped, tag = 'internal scratch']
  #allocation2 [shape = 'f32[64,128]{1,0:T(8,128)}', space=vmem, size = 0x8000, scoped, tag = 'scratch operand']
  #allocation3 [shape = 'f32[64,128]{1,0:T(8,128)}', space=vmem, size = 0x8000, scoped, tag = 'scratch operand']
  #allocation4 [shape = 'f32[64,32]{1,0:T(8,128)}', space=vmem, size = 0x8000, scoped, tag = 'scratch operand']
  #allocation5 [shape = 'f32[64,32]{1,0:T(8,128)}', space=vmem, size = 0x8000, scoped, tag = 'scratch operand']
  %s0 = inlined_call_operand.vmem [shape: f32[64,16], index: 0, kind: input, shape index: {}]
  %s1 = inlined_call_operand.hbm [shape: f32[392,128], index: 1, kind: input, shape index: {}]
  %s2 = inlined_call_operand.vmem [shape: f32[64,128], index: 2, kind: output, shape index: {}]
  %s3 = sld [smem:[#allocation0]]
  $region22: #{model_forward.1} parent=0
    _
  %s5 = ssub.s32 1, %s3
  %s6 = scalar_select 0, %s5, %s3
  $region1: #{model_forward.1} parent=0
    #allocation6 [shape = 'u8[200704]{0}', space=vmem, size = 0x31000, scoped, tag = 'input window, operand 1, single buffered']
    #allocation7 [shape = 's32[1]{0}', space=sflag, size = 0x4, scoped, tag = 'scoped memory for model_forward.1']
    %7 = vsyncpa [#allocation7], 0
    // Predicated region
    $region2: #{model_forward.1} parent=1 // pred_check
      _
    $region3: #{model_forward.1} parent=1 // pred_check_branch
      %9 = sbr.rel (0) target = $region5
    $region4: #{model_forward.1} parent=1 // pred_region
      _
    $region5: #{model_forward.1} parent=1 // pred_fallthru
      _
    // Predicated region
    $region6: #{model_forward.1} parent=1 // pred_check
      _
    $region7: #{model_forward.1} parent=1 // pred_check_branch
      %11 = sbr.rel (0) target = $region9
    $region8: #{model_forward.1} parent=1 // pred_region
      %s13 = ssub.s32 6272, 6272
      %14 = vsyncadd [#allocation7], %s13
      %s15 = sshll.u32 [#allocation6], 4
      %s16 = int_to_ptr.vmem [resolvable:$true] %s15
      %21 = dma.hbm_to_vmem [thread:$0]  %s1, 6272, %s16, [#allocation7], 128, 128, 8
    $region9: #{model_forward.1} parent=1 // pred_fallthru
      _
    // Predicated region
    $region10: #{model_forward.1} parent=1 // pred_check
      _
    $region11: #{model_forward.1} parent=1 // pred_check_branch
      %23 = sbr.rel (0) target = $region13
    $region12: #{model_forward.1} parent=1 // pred_region
      %24 = dma.done [#allocation7], 6272
    $region13: #{model_forward.1} parent=1 // pred_fallthru
      _
    %v25 = vld [vmem:[%s0] sm:$0xff]
    %v26 = vld [vmem:[%s0 + $0x8] sm:$0xff]
    %v27 = vld [vmem:[%s0 + $0x10] sm:$0xff]
    %v28 = vld [vmem:[%s0 + $0x18] sm:$0xff]
    %v29 = vld [vmem:[%s0 + $0x20] sm:$0xff]
    %v30 = vld [vmem:[%s0 + $0x28] sm:$0xff]
    %v31 = vld [vmem:[%s0 + $0x30] sm:$0xff]
    %v32 = vld [vmem:[%s0 + $0x38] sm:$0xff]
    %v33 = vld [vmem:[#allocation6] sm:$0xff]
    %v34 = vld [vmem:[#allocation6 + $0x8] sm:$0xff]
    %v35 = vld [vmem:[#allocation6 + $0x60] sm:$0x1]
    %v36 = vlaneseq
    %v37 = vshrl.u32 %v36, 7
    %v38 = vsub.s32 0, %v37
    %v39 = vrot.slane %v35, %v38
    %vm40 = vcmask 130048
    %v42 = vsel %vm40, %v25, 0
    %v45 = vsel %vm40, %v26, 0
    %v48 = vsel %vm40, %v27, 0
    %v51 = vsel %vm40, %v28, 0
    %v54 = vsel %vm40, %v29, 0
    %v57 = vsel %vm40, %v30, 0
    %v60 = vsel %vm40, %v31, 0
    %v63 = vsel %vm40, %v32, 0
    %65 = vmatprep.subr.mxu0 0.0
    %66 = vmatpush1.msra.mxu0 %v33
    %67 = vmatprep.subr.mxu0 0.0
    %68 = vmatpush1.msra.mxu0 %v34
    %69 = vmatprep.subr.mxu0 0.0
    %70 = vmatpush1.msra.mxu0 0.0
    %71 = vmatprep.subr.mxu0 0.0
    %72 = vmatpush1.msra.mxu0 0.0
    %73 = vmatprep.subr.mxu0 0.0
    %74 = vmatpush1.msra.mxu0 0.0
    %75 = vmatprep.subr.mxu0 0.0
    %76 = vmatpush1.msra.mxu0 0.0
    %77 = vmatprep.subr.mxu0 0.0
    %78 = vmatpush1.msra.mxu0 0.0
    %79 = vmatprep.subr.mxu0 0.0
    %80 = vmatpush1.msra.mxu0 0.0
    %81 = vmatprep.subr.mxu0 0.0
    %82 = vmatpush1.msra.mxu0 0.0
    %83 = vmatprep.subr.mxu0 0.0
    %84 = vmatpush1.msra.mxu0 0.0
    %85 = vmatprep.subr.mxu0 0.0
    %86 = vmatpush1.msra.mxu0 0.0
    %87 = vmatprep.subr.mxu0 0.0
    %88 = vmatpush1.msra.mxu0 0.0
    %89 = vmatprep.subr.mxu0 0.0
    %90 = vmatpush1.msra.mxu0 0.0
    %91 = vmatprep.subr.mxu0 0.0
    %92 = vmatpush1.msra.mxu0 0.0
    %93 = vmatprep.subr.mxu0 0.0
    %94 = vmatpush1.msra.mxu0 0.0
    %95 = vmatprep.subr.mxu0 0.0
    %96 = vmatpush1.msra.mxu0 0.0
    %97 = vmatprep.subr.mxu0 0.0
    %98 = vmatpush1.msra.mxu0 0.0
    %99 = vmatprep.subr.mxu0 0.0
    %100 = vmatpush1.msra.mxu0 0.0
    %101 = vmatprep.subr.mxu0 0.0
    %102 = vmatpush1.msra.mxu0 0.0
    %103 = vmatprep.subr.mxu0 0.0
    %104 = vmatpush1.msra.mxu0 0.0
    %105 = vmatprep.subr.mxu0 0.0
    %106 = vmatpush1.msra.mxu0 0.0
    %107 = vmatprep.subr.mxu0 0.0
    %108 = vmatpush1.msra.mxu0 0.0
    %109 = vmatprep.subr.mxu0 0.0
    %110 = vmatpush1.msra.mxu0 0.0
    %111 = vmatprep.subr.mxu0 0.0
    %112 = vmatpush1.msra.mxu0 0.0
    %113 = vmatprep.subr.mxu0 0.0
    %114 = vmatpush1.msra.mxu0 0.0
    %115 = vmatprep.subr.mxu0 0.0
    %116 = vmatpush1.msra.mxu0 0.0
    %117 = vmatprep.subr.mxu0 0.0
    %118 = vmatpush1.msra.mxu0 0.0
    %119 = vmatprep.subr.mxu0 0.0
    %120 = vmatpush1.msra.mxu0 0.0
    %121 = vmatprep.subr.mxu0 0.0
    %122 = vmatpush1.msra.mxu0 0.0
    %123 = vmatprep.subr.mxu0 0.0
    %124 = vmatpush1.msra.mxu0 0.0
    %125 = vmatprep.subr.mxu0 0.0
    %126 = vmatpush1.msra.mxu0 0.0
    %127 = vmatprep.subr.mxu0 0.0
    %128 = vmatpush1.msra.mxu0 0.0
    %129 = vmatprep.mubr.f32.mxu0 0.0
    %130 = vmatmul.mubr.f32.gmra.mrb[0].mxu0 %v42
    %v131 = vpop.f32.mrb[0].mxu0
    %v132 = vadd.f32 %v39, %v131
    %v133 = vpop.f32.mrb[0].mxu0
    %134 = vmatprep.mubr.f32.mxu0 0.0
    %135 = vmatmul.mubr.f32.gmra.mrb[0].mxu0 %v45
    %v136 = vpop.f32.mrb[0].mxu0
    %v137 = vadd.f32 %v39, %v136
    %v138 = vpop.f32.mrb[0].mxu0
    %139 = vmatprep.mubr.f32.mxu0 0.0
    %140 = vmatmul.mubr.f32.gmra.mrb[0].mxu0 %v48
    %v141 = vpop.f32.mrb[0].mxu0
    %v142 = vadd.f32 %v39, %v141
    %v143 = vpop.f32.mrb[0].mxu0
    %144 = vmatprep.mubr.f32.mxu0 0.0
    %145 = vmatmul.mubr.f32.gmra.mrb[0].mxu0 %v51
    %v146 = vpop.f32.mrb[0].mxu0
    %v147 = vadd.f32 %v39, %v146
    %v148 = vpop.f32.mrb[0].mxu0
    %149 = vmatprep.mubr.f32.mxu0 0.0
    %150 = vmatmul.mubr.f32.gmra.mrb[0].mxu0 %v54
    %v151 = vpop.f32.mrb[0].mxu0
    %v152 = vadd.f32 %v39, %v151
    %v153 = vpop.f32.mrb[0].mxu0
    %154 = vmatprep.mubr.f32.mxu0 0.0
    %155 = vmatmul.mubr.f32.gmra.mrb[0].mxu0 %v57
    %v156 = vpop.f32.mrb[0].mxu0
    %v157 = vadd.f32 %v39, %v156
    %v158 = vpop.f32.mrb[0].mxu0
    %159 = vmatprep.mubr.f32.mxu0 0.0
    %160 = vmatmul.mubr.f32.gmra.mrb[0].mxu0 %v60
    %v161 = vpop.f32.mrb[0].mxu0
    %v162 = vadd.f32 %v39, %v161
    %v163 = vpop.f32.mrb[0].mxu0
    %164 = vmatprep.mubr.f32.mxu0 0.0
    %165 = vmatmul.mubr.f32.gmra.mrb[0].mxu0 %v63
    %v166 = vpop.f32.mrb[0].mxu0
    %v167 = vadd.f32 %v39, %v166
    %v168 = vpop.f32.mrb[0].mxu0
    %169 = vdwg.mxu0
    %170 = vst [vmem:[#allocation2] sm:$0xff] %v132
    %171 = vst [vmem:[#allocation2 + $0x8] sm:$0xff] %v137
    %172 = vst [vmem:[#allocation2 + $0x10] sm:$0xff] %v142
    %173 = vst [vmem:[#allocation2 + $0x18] sm:$0xff] %v147
    %174 = vst [vmem:[#allocation2 + $0x20] sm:$0xff] %v152
    %175 = vst [vmem:[#allocation2 + $0x28] sm:$0xff] %v157
    %176 = vst [vmem:[#allocation2 + $0x30] sm:$0xff] %v162
    %177 = vst [vmem:[#allocation2 + $0x38] sm:$0xff] %v167
    %v178 = vld [vmem:[#allocation6 + $0x10] sm:$0xff]
    %v179 = vld [vmem:[#allocation6 + $0x18] sm:$0xff]
    %v180 = vld [vmem:[#allocation6 + $0x68] sm:$0x1]
    %v181 = vlaneseq
    %v182 = vshrl.u32 %v181, 7
    %v183 = vsub.s32 0, %v182
    %v184 = vrot.slane %v180, %v183
    %185 = vmatprep.subr.mxu0 0.0
    %186 = vmatpush1.msra.mxu0 %v178
    %187 = vmatprep.subr.mxu0 0.0
    %188 = vmatpush1.msra.mxu0 %v179
    %189 = vmatprep.subr.mxu0 0.0
    %190 = vmatpush1.msra.mxu0 0.0
    %191 = vmatprep.subr.mxu0 0.0
    %192 = vmatpush1.msra.mxu0 0.0
    %193 = vmatprep.subr.mxu0 0.0
    %194 = vmatpush1.msra.mxu0 0.0
    %195 = vmatprep.subr.mxu0 0.0
    %196 = vmatpush1.msra.mxu0 0.0
    %197 = vmatprep.subr.mxu0 0.0
    %198 = vmatpush1.msra.mxu0 0.0
    %199 = vmatprep.subr.mxu0 0.0
    %200 = vmatpush1.msra.mxu0 0.0
    %201 = vmatprep.subr.mxu0 0.0
    %202 = vmatpush1.msra.mxu0 0.0
    %203 = vmatprep.subr.mxu0 0.0
    %204 = vmatpush1.msra.mxu0 0.0
    %205 = vmatprep.subr.mxu0 0.0
    %206 = vmatpush1.msra.mxu0 0.0
    %207 = vmatprep.subr.mxu0 0.0
    %208 = vmatpush1.msra.mxu0 0.0
    %209 = vmatprep.subr.mxu0 0.0
    %210 = vmatpush1.msra.mxu0 0.0
    %211 = vmatprep.subr.mxu0 0.0
    %212 = vmatpush1.msra.mxu0 0.0
    %213 = vmatprep.subr.mxu0 0.0
    %214 = vmatpush1.msra.mxu0 0.0
    %215 = vmatprep.subr.mxu0 0.0
    %216 = vmatpush1.msra.mxu0 0.0
    %217 = vmatprep.subr.mxu0 0.0
    %218 = vmatpush1.msra.mxu0 0.0
    %219 = vmatprep.subr.mxu0 0.0
    %220 = vmatpush1.msra.mxu0 0.0
    %221 = vmatprep.subr.mxu0 0.0
    %222 = vmatpush1.msra.mxu0 0.0
    %223 = vmatprep.subr.mxu0 0.0
    %224 = vmatpush1.msra.mxu0 0.0
    %225 = vmatprep.subr.mxu0 0.0
    %226 = vmatpush1.msra.mxu0 0.0
    %227 = vmatprep.subr.mxu0 0.0
    %228 = vmatpush1.msra.mxu0 0.0
    %229 = vmatprep.subr.mxu0 0.0
    %230 = vmatpush1.msra.mxu0 0.0
    %231 = vmatprep.subr.mxu0 0.0
    %232 = vmatpush1.msra.mxu0 0.0
    %233 = vmatprep.subr.mxu0 0.0
    %234 = vmatpush1.msra.mxu0 0.0
    %235 = vmatprep.subr.mxu0 0.0
    %236 = vmatpush1.msra.mxu0 0.0
    %237 = vmatprep.subr.mxu0 0.0
    %238 = vmatpush1.msra.mxu0 0.0
    %239 = vmatprep.subr.mxu0 0.0
    %240 = vmatpush1.msra.mxu0 0.0
    %241 = vmatprep.subr.mxu0 0.0
    %242 = vmatpush1.msra.mxu0 0.0
    %243 = vmatprep.subr.mxu0 0.0
    %244 = vmatpush1.msra.mxu0 0.0
    %245 = vmatprep.subr.mxu0 0.0
    %246 = vmatpush1.msra.mxu0 0.0
    %247 = vmatprep.subr.mxu0 0.0
    %248 = vmatpush1.msra.mxu0 0.0
    %249 = vmatprep.mubr.f32.mxu0 0.0
    %250 = vmatmul.mubr.f32.gmra.mrb[0].mxu0 %v42
    %v251 = vpop.f32.mrb[0].mxu0
    %v252 = vadd.f32 %v184, %v251
    %v253 = vpop.f32.mrb[0].mxu0
    %254 = vmatprep.mubr.f32.mxu0 0.0
    %255 = vmatmul.mubr.f32.gmra.mrb[0].mxu0 %v45
    %v256 = vpop.f32.mrb[0].mxu0
    %v257 = vadd.f32 %v184, %v256
    %v258 = vpop.f32.mrb[0].mxu0
    %259 = vmatprep.mubr.f32.mxu0 0.0
    %260 = vmatmul.mubr.f32.gmra.mrb[0].mxu0 %v48
    %v261 = vpop.f32.mrb[0].mxu0
    %v262 = vadd.f32 %v184, %v261
    %v263 = vpop.f32.mrb[0].mxu0
    %264 = vmatprep.mubr.f32.mxu0 0.0
    %265 = vmatmul.mubr.f32.gmra.mrb[0].mxu0 %v51
    %v266 = vpop.f32.mrb[0].mxu0
    %v267 = vadd.f32 %v184, %v266
    %v268 = vpop.f32.mrb[0].mxu0
    %269 = vmatprep.mubr.f32.mxu0 0.0
    %270 = vmatmul.mubr.f32.gmra.mrb[0].mxu0 %v54
    %v271 = vpop.f32.mrb[0].mxu0
    %v272 = vadd.f32 %v184, %v271
    %v273 = vpop.f32.mrb[0].mxu0
    %274 = vmatprep.mubr.f32.mxu0 0.0
    %275 = vmatmul.mubr.f32.gmra.mrb[0].mxu0 %v57
    %v276 = vpop.f32.mrb[0].mxu0
    %v277 = vadd.f32 %v184, %v276
    %v278 = vpop.f32.mrb[0].mxu0
    %279 = vmatprep.mubr.f32.mxu0 0.0
    %280 = vmatmul.mubr.f32.gmra.mrb[0].mxu0 %v60
    %v281 = vpop.f32.mrb[0].mxu0
    %v282 = vadd.f32 %v184, %v281
    %v283 = vpop.f32.mrb[0].mxu0
    %284 = vmatprep.mubr.f32.mxu0 0.0
    %285 = vmatmul.mubr.f32.gmra.mrb[0].mxu0 %v63
    %v286 = vpop.f32.mrb[0].mxu0
    %v287 = vadd.f32 %v184, %v286
    %v288 = vpop.f32.mrb[0].mxu0
    %289 = vdwg.mxu0
    %290 = vst [vmem:[#allocation3] sm:$0xff] %v252
    %291 = vst [vmem:[#allocation3 + $0x8] sm:$0xff] %v257
    %292 = vst [vmem:[#allocation3 + $0x10] sm:$0xff] %v262
    %293 = vst [vmem:[#allocation3 + $0x18] sm:$0xff] %v267
    %294 = vst [vmem:[#allocation3 + $0x20] sm:$0xff] %v272
    %295 = vst [vmem:[#allocation3 + $0x28] sm:$0xff] %v277
    %296 = vst [vmem:[#allocation3 + $0x30] sm:$0xff] %v282
    %297 = vst [vmem:[#allocation3 + $0x38] sm:$0xff] %v287
    %v298 = vld [vmem:[#allocation6 + $0x20] sm:$0xff]
    %v299 = vld [vmem:[#allocation6 + $0x28] sm:$0xff]
    %v300 = vld [vmem:[#allocation6 + $0x30] sm:$0xff]
    %v301 = vld [vmem:[#allocation6 + $0x38] sm:$0xff]
    %v302 = vld [vmem:[#allocation6 + $0x40] sm:$0xff]
    %v303 = vld [vmem:[#allocation6 + $0x48] sm:$0xff]
    %v304 = vld [vmem:[#allocation6 + $0x50] sm:$0xff]
    %v305 = vld [vmem:[#allocation6 + $0x58] sm:$0xff]
    %v306 = vld [vmem:[#allocation2] sm:$0xff]
    %vm307 = vcmask 261120
    %v309 = vsel %vm307, 0.0, 0
    %311 = vmatprep.subr.mxu0 0.0
    %312 = vmatpush1.msra.mxu0 %v298
    %313 = vmatprep.subr.mxu0 0.0
    %314 = vmatpush1.msra.mxu0 %v299
    %315 = vmatprep.subr.mxu0 0.0
    %316 = vmatpush1.msra.mxu0 %v300
    %317 = vmatprep.subr.mxu0 0.0
    %318 = vmatpush1.msra.mxu0 %v301
    %319 = vmatprep.subr.mxu0 0.0
    %320 = vmatpush1.msra.mxu0 0.0
    %321 = vmatprep.subr.mxu0 0.0
    %322 = vmatpush1.msra.mxu0 0.0
    %323 = vmatprep.subr.mxu0 0.0
    %324 = vmatpush1.msra.mxu0 0.0
    %325 = vmatprep.subr.mxu0 0.0
    %326 = vmatpush1.msra.mxu0 0.0
    %327 = vmatprep.subr.mxu0 0.0
    %328 = vmatpush1.msra.mxu0 0.0
    %329 = vmatprep.subr.mxu0 0.0
    %330 = vmatpush1.msra.mxu0 0.0
    %331 = vmatprep.subr.mxu0 0.0
    %332 = vmatpush1.msra.mxu0 0.0
    %333 = vmatprep.subr.mxu0 0.0
    %334 = vmatpush1.msra.mxu0 0.0
    %335 = vmatprep.subr.mxu0 0.0
    %336 = vmatpush1.msra.mxu0 0.0
    %337 = vmatprep.subr.mxu0 0.0
    %338 = vmatpush1.msra.mxu0 0.0
    %339 = vmatprep.subr.mxu0 0.0
    %340 = vmatpush1.msra.mxu0 0.0
    %341 = vmatprep.subr.mxu0 0.0
    %342 = vmatpush1.msra.mxu0 0.0
    %343 = vmatprep.subr.mxu0 0.0
    %344 = vmatpush1.msra.mxu0 0.0
    %345 = vmatprep.subr.mxu0 0.0
    %346 = vmatpush1.msra.mxu0 0.0
    %347 = vmatprep.subr.mxu0 0.0
    %348 = vmatpush1.msra.mxu0 0.0
    %349 = vmatprep.subr.mxu0 0.0
    %350 = vmatpush1.msra.mxu0 0.0
    %351 = vmatprep.subr.mxu0 0.0
    %352 = vmatpush1.msra.mxu0 0.0
    %353 = vmatprep.subr.mxu0 0.0
    %354 = vmatpush1.msra.mxu0 0.0
    %355 = vmatprep.subr.mxu0 0.0
    %356 = vmatpush1.msra.mxu0 0.0
    %357 = vmatprep.subr.mxu0 0.0
    %358 = vmatpush1.msra.mxu0 0.0
    %359 = vmatprep.subr.mxu0 0.0
    %360 = vmatpush1.msra.mxu0 0.0
    %361 = vmatprep.subr.mxu0 0.0
    %362 = vmatpush1.msra.mxu0 0.0
    %363 = vmatprep.subr.mxu0 0.0
    %364 = vmatpush1.msra.mxu0 0.0
    %365 = vmatprep.subr.mxu0 0.0
    %366 = vmatpush1.msra.mxu0 0.0
    %367 = vmatprep.subr.mxu0 0.0
    %368 = vmatpush1.msra.mxu0 0.0
    %369 = vmatprep.subr.mxu0 0.0
    %370 = vmatpush1.msra.mxu0 0.0
    %371 = vmatprep.subr.mxu0 0.0
    %372 = vmatpush1.msra.mxu0 0.0
    %373 = vmatprep.subr.mxu0 0.0
    %374 = vmatpush1.msra.mxu0 0.0
    %375 = vmatprep.mubr.f32.mxu0 0.0
    %376 = vmatmul.mubr.f32.gmra.mrb[0].mxu0 %v309
    %v377 = vpop.f32.mrb[0].mxu0
    %v378 = vadd.f32 0.0, %v377
    %v379 = vpop.f32.mrb[0].mxu0
    %380 = vdwg.mxu0
    %v381 = vadd.f32 %v306, %v378
    %v382 = vxor.u32 %v381, 2147483648
    %v383 = vmul.f32 %v382, 1.442695
    %v384 = vpow.pop %v383
    %v385 = vadd.f32 %v384, 1.0
    %v386 = vrcp.pop %v385
    %v387 = vmul.f32 1.0, %v386
    %v388 = vtanh.pop %v381
    %v389 = vmul.f32 %v387, 0.0
    %391 = vrot.lane.b32.xlu0 %v388, 32
    %v392 = vpop.permute.xlu0 %391
    %v394 = vmul.f32 %v387, %v392
    %396 = vrot.lane.b32.xlu0 %v394, 32
    %v397 = vpop.permute.xlu0 %396
    %v399 = vadd.f32 %v389, %v397
    %v400 = vtanh.pop %v399
    %402 = vrot.lane.b32.xlu0 %v400, 32
    %v403 = vpop.permute.xlu0 %402
    %v405 = vmul.f32 %v387, %v403
    %v406 = vld [vmem:[#allocation3 + $0x38] sm:$0xff]
    %407 = vmatprep.subr.mxu0 0.0
    %408 = vmatpush1.msra.mxu0 %v302
    %409 = vmatprep.subr.mxu0 0.0
    %410 = vmatpush1.msra.mxu0 %v303
    %411 = vmatprep.subr.mxu0 0.0
    %412 = vmatpush1.msra.mxu0 %v304
    %413 = vmatprep.subr.mxu0 0.0
    %414 = vmatpush1.msra.mxu0 %v305
    %415 = vmatprep.subr.mxu0 0.0
    %416 = vmatpush1.msra.mxu0 0.0
    %417 = vmatprep.subr.mxu0 0.0
    %418 = vmatpush1.msra.mxu0 0.0
    %419 = vmatprep.subr.mxu0 0.0
    %420 = vmatpush1.msra.mxu0 0.0
    %421 = vmatprep.subr.mxu0 0.0
    %422 = vmatpush1.msra.mxu0 0.0
    %423 = vmatprep.subr.mxu0 0.0
    %424 = vmatpush1.msra.mxu0 0.0
    %425 = vmatprep.subr.mxu0 0.0
    %426 = vmatpush1.msra.mxu0 0.0
    %427 = vmatprep.subr.mxu0 0.0
    %428 = vmatpush1.msra.mxu0 0.0
    %429 = vmatprep.subr.mxu0 0.0
    %430 = vmatpush1.msra.mxu0 0.0
    %431 = vmatprep.subr.mxu0 0.0
    %432 = vmatpush1.msra.mxu0 0.0
    %433 = vmatprep.subr.mxu0 0.0
    %434 = vmatpush1.msra.mxu0 0.0
    %435 = vmatprep.subr.mxu0 0.0
    %436 = vmatpush1.msra.mxu0 0.0
    %437 = vmatprep.subr.mxu0 0.0
    %438 = vmatpush1.msra.mxu0 0.0
    %439 = vmatprep.subr.mxu0 0.0
    %440 = vmatpush1.msra.mxu0 0.0
    %441 = vmatprep.subr.mxu0 0.0
    %442 = vmatpush1.msra.mxu0 0.0
    %443 = vmatprep.subr.mxu0 0.0
    %444 = vmatpush1.msra.mxu0 0.0
    %445 = vmatprep.subr.mxu0 0.0
    %446 = vmatpush1.msra.mxu0 0.0
    %447 = vmatprep.subr.mxu0 0.0
    %448 = vmatpush1.msra.mxu0 0.0
    %449 = vmatprep.subr.mxu0 0.0
    %450 = vmatpush1.msra.mxu0 0.0
    %451 = vmatprep.subr.mxu0 0.0
    %452 = vmatpush1.msra.mxu0 0.0
    %453 = vmatprep.subr.mxu0 0.0
    %454 = vmatpush1.msra.mxu0 0.0
    %455 = vmatprep.subr.mxu0 0.0
    %456 = vmatpush1.msra.mxu0 0.0
    %457 = vmatprep.subr.mxu0 0.0
    %458 = vmatpush1.msra.mxu0 0.0
    %459 = vmatprep.subr.mxu0 0.0
    %460 = vmatpush1.msra.mxu0 0.0
    %461 = vmatprep.subr.mxu0 0.0
    %462 = vmatpush1.msra.mxu0 0.0
    %463 = vmatprep.subr.mxu0 0.0
    %464 = vmatpush1.msra.mxu0 0.0
    %465 = vmatprep.subr.mxu0 0.0
    %466 = vmatpush1.msra.mxu0 0.0
    %467 = vmatprep.subr.mxu0 0.0
    %468 = vmatpush1.msra.mxu0 0.0
    %469 = vmatprep.subr.mxu0 0.0
    %470 = vmatpush1.msra.mxu0 0.0
    %471 = vmatprep.mubr.f32.mxu0 0.0
    %472 = vmatmul.mubr.f32.gmra.mrb[0].mxu0 %v309
    %v473 = vpop.f32.mrb[0].mxu0
    %v474 = vadd.f32 0.0, %v473
    %v475 = vpop.f32.mrb[0].mxu0
    %476 = vdwg.mxu0
    %v477 = vadd.f32 %v406, %v474
    %v478 = vxor.u32 %v477, 2147483648
    %v479 = vmul.f32 %v478, 1.442695
    %v480 = vpow.pop %v479
    %v481 = vadd.f32 %v480, 1.0
    %v482 = vrcp.pop %v481
    %v483 = vmul.f32 1.0, %v482
    %v484 = vtanh.pop %v477
    %v485 = vmul.f32 %v483, 0.0
    %487 = vrot.lane.b32.xlu0 %v484, 32
    %v488 = vpop.permute.xlu0 %487
    %v490 = vmul.f32 %v483, %v488
    %492 = vrot.lane.b32.xlu0 %v490, 32
    %v493 = vpop.permute.xlu0 %492
    %v495 = vadd.f32 %v485, %v493
    %v496 = vtanh.pop %v495
    %498 = vrot.lane.b32.xlu0 %v496, 32
    %v499 = vpop.permute.xlu0 %498
    %v501 = vmul.f32 %v483, %v499
    %503 = vrot.lane.b32.xlu0 %v405, 64
    %v504 = vpop.permute.xlu0 %503
    %506 = vst.msk [vmem:[#allocation4] sm:$0xff] %vm307, %v504
    %508 = vrot.lane.b32.xlu0 %v501, 64
    %v509 = vpop.permute.xlu0 %508
    %511 = vst.msk [vmem:[#allocation5 + $0x38] sm:$0xff] %vm307, %v509
    %v512 = vld [vmem:[#allocation2 + $0x8] sm:$0xff]
    %v513 = vsel %vm307, %v504, 0
    %515 = vmatprep.subr.mxu0 0.0
    %516 = vmatpush1.msra.mxu0 %v298
    %517 = vmatprep.subr.mxu0 0.0
    %518 = vmatpush1.msra.mxu0 %v299
    %519 = vmatprep.subr.mxu0 0.0
    %520 = vmatpush1.msra.mxu0 %v300
    %521 = vmatprep.subr.mxu0 0.0
    %522 = vmatpush1.msra.mxu0 %v301
    %523 = vmatprep.subr.mxu0 0.0
    %524 = vmatpush1.msra.mxu0 0.0
    %525 = vmatprep.subr.mxu0 0.0
    %526 = vmatpush1.msra.mxu0 0.0
    %527 = vmatprep.subr.mxu0 0.0
    %528 = vmatpush1.msra.mxu0 0.0
    %529 = vmatprep.subr.mxu0 0.0
    %530 = vmatpush1.msra.mxu0 0.0
    %531 = vmatprep.subr.mxu0 0.0
    %532 = vmatpush1.msra.mxu0 0.0
    %533 = vmatprep.subr.mxu0 0.0
    %534 = vmatpush1.msra.mxu0 0.0
    %535 = vmatprep.subr.mxu0 0.0
    %536 = vmatpush1.msra.mxu0 0.0
    %537 = vmatprep.subr.mxu0 0.0
    %538 = vmatpush1.msra.mxu0 0.0
    %539 = vmatprep.subr.mxu0 0.0
    %540 = vmatpush1.msra.mxu0 0.0
    %541 = vmatprep.subr.mxu0 0.0
    %542 = vmatpush1.msra.mxu0 0.0
    %543 = vmatprep.subr.mxu0 0.0
    %544 = vmatpush1.msra.mxu0 0.0
    %545 = vmatprep.subr.mxu0 0.0
    %546 = vmatpush1.msra.mxu0 0.0
    %547 = vmatprep.subr.mxu0 0.0
    %548 = vmatpush1.msra.mxu0 0.0
    %549 = vmatprep.subr.mxu0 0.0
    %550 = vmatpush1.msra.mxu0 0.0
    %551 = vmatprep.subr.mxu0 0.0
    %552 = vmatpush1.msra.mxu0 0.0
    %553 = vmatprep.subr.mxu0 0.0
    %554 = vmatpush1.msra.mxu0 0.0
    %555 = vmatprep.subr.mxu0 0.0
    %556 = vmatpush1.msra.mxu0 0.0
    %557 = vmatprep.subr.mxu0 0.0
    %558 = vmatpush1.msra.mxu0 0.0
    %559 = vmatprep.subr.mxu0 0.0
    %560 = vmatpush1.msra.mxu0 0.0
    %561 = vmatprep.subr.mxu0 0.0
    %562 = vmatpush1.msra.mxu0 0.0
    %563 = vmatprep.subr.mxu0 0.0
    %564 = vmatpush1.msra.mxu0 0.0
    %565 = vmatprep.subr.mxu0 0.0
    %566 = vmatpush1.msra.mxu0 0.0
    %567 = vmatprep.subr.mxu0 0.0
    %568 = vmatpush1.msra.mxu0 0.0
    %569 = vmatprep.subr.mxu0 0.0
    %570 = vmatpush1.msra.mxu0 0.0
    %571 = vmatprep.subr.mxu0 0.0
    %572 = vmatpush1.msra.mxu0 0.0
    %573 = vmatprep.subr.mxu0 0.0
    %574 = vmatpush1.msra.mxu0 0.0
    %575 = vmatprep.subr.mxu0 0.0
    %576 = vmatpush1.msra.mxu0 0.0
    %577 = vmatprep.subr.mxu0 0.0
    %578 = vmatpush1.msra.mxu0 0.0
    %579 = vmatprep.mubr.f32.mxu0 0.0
    %580 = vmatmul.mubr.f32.gmra.mrb[0].mxu0 %v513
    %v581 = vpop.f32.mrb[0].mxu0
    %v582 = vadd.f32 0.0, %v581
    %v583 = vpop.f32.mrb[0].mxu0
    %584 = vdwg.mxu0
    %v585 = vadd.f32 %v512, %v582
    %v586 = vxor.u32 %v585, 2147483648
    %v587 = vmul.f32 %v586, 1.442695
    %v588 = vpow.pop %v587
    %v589 = vadd.f32 %v588, 1.0
    %v590 = vrcp.pop %v589
    %v591 = vmul.f32 1.0, %v590
    %v592 = vtanh.pop %v585
    %v593 = vmul.f32 %v591, %v399
    %595 = vrot.lane.b32.xlu0 %v592, 32
    %v596 = vpop.permute.xlu0 %595
    %v598 = vmul.f32 %v591, %v596
    %600 = vrot.lane.b32.xlu0 %v598, 32
    %v601 = vpop.permute.xlu0 %600
    %v603 = vadd.f32 %v593, %v601
    %v604 = vtanh.pop %v603
    %606 = vrot.lane.b32.xlu0 %v604, 32
    %v607 = vpop.permute.xlu0 %606
    %v609 = vmul.f32 %v591, %v607
    %v610 = vld [vmem:[#allocation3 + $0x30] sm:$0xff]
    %v611 = vsel %vm307, %v509, 0
    %613 = vmatprep.subr.mxu0 0.0
    %614 = vmatpush1.msra.mxu0 %v302
    %615 = vmatprep.subr.mxu0 0.0
    %616 = vmatpush1.msra.mxu0 %v303
    %617 = vmatprep.subr.mxu0 0.0
    %618 = vmatpush1.msra.mxu0 %v304
    %619 = vmatprep.subr.mxu0 0.0
    %620 = vmatpush1.msra.mxu0 %v305
    %621 = vmatprep.subr.mxu0 0.0
    %622 = vmatpush1.msra.mxu0 0.0
    %623 = vmatprep.subr.mxu0 0.0
    %624 = vmatpush1.msra.mxu0 0.0
    %625 = vmatprep.subr.mxu0 0.0
    %626 = vmatpush1.msra.mxu0 0.0
    %627 = vmatprep.subr.mxu0 0.0
    %628 = vmatpush1.msra.mxu0 0.0
    %629 = vmatprep.subr.mxu0 0.0
    %630 = vmatpush1.msra.mxu0 0.0
    %631 = vmatprep.subr.mxu0 0.0
    %632 = vmatpush1.msra.mxu0 0.0
    %633 = vmatprep.subr.mxu0 0.0
    %634 = vmatpush1.msra.mxu0 0.0
    %635 = vmatprep.subr.mxu0 0.0
    %636 = vmatpush1.msra.mxu0 0.0
    %637 = vmatprep.subr.mxu0 0.0
    %638 = vmatpush1.msra.mxu0 0.0
    %639 = vmatprep.subr.mxu0 0.0
    %640 = vmatpush1.msra.mxu0 0.0
    %641 = vmatprep.subr.mxu0 0.0
    %642 = vmatpush1.msra.mxu0 0.0
    %643 = vmatprep.subr.mxu0 0.0
    %644 = vmatpush1.msra.mxu0 0.0
    %645 = vmatprep.subr.mxu0 0.0
    %646 = vmatpush1.msra.mxu0 0.0
    %647 = vmatprep.subr.mxu0 0.0
    %648 = vmatpush1.msra.mxu0 0.0
    %649 = vmatprep.subr.mxu0 0.0
    %650 = vmatpush1.msra.mxu0 0.0
    %651 = vmatprep.subr.mxu0 0.0
    %652 = vmatpush1.msra.mxu0 0.0
    %653 = vmatprep.subr.mxu0 0.0
    %654 = vmatpush1.msra.mxu0 0.0
    %655 = vmatprep.subr.mxu0 0.0
    %656 = vmatpush1.msra.mxu0 0.0
    %657 = vmatprep.subr.mxu0 0.0
    %658 = vmatpush1.msra.mxu0 0.0
    %659 = vmatprep.subr.mxu0 0.0
    %660 = vmatpush1.msra.mxu0 0.0
    %661 = vmatprep.subr.mxu0 0.0
    %662 = vmatpush1.msra.mxu0 0.0
    %663 = vmatprep.subr.mxu0 0.0
    %664 = vmatpush1.msra.mxu0 0.0
    %665 = vmatprep.subr.mxu0 0.0
    %666 = vmatpush1.msra.mxu0 0.0
    %667 = vmatprep.subr.mxu0 0.0
    %668 = vmatpush1.msra.mxu0 0.0
    %669 = vmatprep.subr.mxu0 0.0
    %670 = vmatpush1.msra.mxu0 0.0
    %671 = vmatprep.subr.mxu0 0.0
    %672 = vmatpush1.msra.mxu0 0.0
    %673 = vmatprep.subr.mxu0 0.0
    %674 = vmatpush1.msra.mxu0 0.0
    %675 = vmatprep.subr.mxu0 0.0
    %676 = vmatpush1.msra.mxu0 0.0
    %677 = vmatprep.mubr.f32.mxu0 0.0
    %678 = vmatmul.mubr.f32.gmra.mrb[0].mxu0 %v611
    %v679 = vpop.f32.mrb[0].mxu0
    %v680 = vadd.f32 0.0, %v679
    %v681 = vpop.f32.mrb[0].mxu0
    %682 = vdwg.mxu0
    %v683 = vadd.f32 %v610, %v680
    %v684 = vxor.u32 %v683, 2147483648
    %v685 = vmul.f32 %v684, 1.442695
    %v686 = vpow.pop %v685
    %v687 = vadd.f32 %v686, 1.0
    %v688 = vrcp.pop %v687
    %v689 = vmul.f32 1.0, %v688
    %v690 = vtanh.pop %v683
    %v691 = vmul.f32 %v689, %v495
    %693 = vrot.lane.b32.xlu0 %v690, 32
    %v694 = vpop.permute.xlu0 %693
    %v696 = vmul.f32 %v689, %v694
    %698 = vrot.lane.b32.xlu0 %v696, 32
    %v699 = vpop.permute.xlu0 %698
    %v701 = vadd.f32 %v691, %v699
    %v702 = vtanh.pop %v701
    %704 = vrot.lane.b32.xlu0 %v702, 32
    %v705 = vpop.permute.xlu0 %704
    %v707 = vmul.f32 %v689, %v705
    %709 = vrot.lane.b32.xlu0 %v609, 64
    %v710 = vpop.permute.xlu0 %709
    %712 = vst.msk [vmem:[#allocation4 + $0x8] sm:$0xff] %vm307, %v710
    %714 = vrot.lane.b32.xlu0 %v707, 64
    %v715 = vpop.permute.xlu0 %714
    %717 = vst.msk [vmem:[#allocation5 + $0x30] sm:$0xff] %vm307, %v715
    %v718 = vld [vmem:[#allocation2 + $0x10] sm:$0xff]
    %v719 = vsel %vm307, %v710, 0
    %721 = vmatprep.subr.mxu0 0.0
    %722 = vmatpush1.msra.mxu0 %v298
    %723 = vmatprep.subr.mxu0 0.0
    %724 = vmatpush1.msra.mxu0 %v299
    %725 = vmatprep.subr.mxu0 0.0
    %726 = vmatpush1.msra.mxu0 %v300
    %727 = vmatprep.subr.mxu0 0.0
    %728 = vmatpush1.msra.mxu0 %v301
    %729 = vmatprep.subr.mxu0 0.0
    %730 = vmatpush1.msra.mxu0 0.0
    %731 = vmatprep.subr.mxu0 0.0
    %732 = vmatpush1.msra.mxu0 0.0
    %733 = vmatprep.subr.mxu0 0.0
    %734 = vmatpush1.msra.mxu0 0.0
    %735 = vmatprep.subr.mxu0 0.0
    %736 = vmatpush1.msra.mxu0 0.0
    %737 = vmatprep.subr.mxu0 0.0
    %738 = vmatpush1.msra.mxu0 0.0
    %739 = vmatprep.subr.mxu0 0.0
    %740 = vmatpush1.msra.mxu0 0.0
    %741 = vmatprep.subr.mxu0 0.0
    %742 = vmatpush1.msra.mxu0 0.0
    %743 = vmatprep.subr.mxu0 0.0
    %744 = vmatpush1.msra.mxu0 0.0
    %745 = vmatprep.subr.mxu0 0.0
    %746 = vmatpush1.msra.mxu0 0.0
    %747 = vmatprep.subr.mxu0 0.0
    %748 = vmatpush1.msra.mxu0 0.0
    %749 = vmatprep.subr.mxu0 0.0
    %750 = vmatpush1.msra.mxu0 0.0
    %751 = vmatprep.subr.mxu0 0.0
    %752 = vmatpush1.msra.mxu0 0.0
    %753 = vmatprep.subr.mxu0 0.0
    %754 = vmatpush1.msra.mxu0 0.0
    %755 = vmatprep.subr.mxu0 0.0
    %756 = vmatpush1.msra.mxu0 0.0
    %757 = vmatprep.subr.mxu0 0.0
    %758 = vmatpush1.msra.mxu0 0.0
    %759 = vmatprep.subr.mxu0 0.0
    %760 = vmatpush1.msra.mxu0 0.0
    %761 = vmatprep.subr.mxu0 0.0
    %762 = vmatpush1.msra.mxu0 0.0
    %763 = vmatprep.subr.mxu0 0.0
    %764 = vmatpush1.msra.mxu0 0.0
    %765 = vmatprep.subr.mxu0 0.0
    %766 = vmatpush1.msra.mxu0 0.0
    %767 = vmatprep.subr.mxu0 0.0
    %768 = vmatpush1.msra.mxu0 0.0
    %769 = vmatprep.subr.mxu0 0.0
    %770 = vmatpush1.msra.mxu0 0.0
    %771 = vmatprep.subr.mxu0 0.0
    %772 = vmatpush1.msra.mxu0 0.0
    %773 = vmatprep.subr.mxu0 0.0
    %774 = vmatpush1.msra.mxu0 0.0
    %775 = vmatprep.subr.mxu0 0.0
    %776 = vmatpush1.msra.mxu0 0.0
    %777 = vmatprep.subr.mxu0 0.0
    %778 = vmatpush1.msra.mxu0 0.0
    %779 = vmatprep.subr.mxu0 0.0
    %780 = vmatpush1.msra.mxu0 0.0
    %781 = vmatprep.subr.mxu0 0.0
    %782 = vmatpush1.msra.mxu0 0.0
    %783 = vmatprep.subr.mxu0 0.0
    %784 = vmatpush1.msra.mxu0 0.0
    %785 = vmatprep.mubr.f32.mxu0 0.0
    %786 = vmatmul.mubr.f32.gmra.mrb[0].mxu0 %v719
    %v787 = vpop.f32.mrb[0].mxu0
    %v788 = vadd.f32 0.0, %v787
    %v789 = vpop.f32.mrb[0].mxu0
    %790 = vdwg.mxu0
    %v791 = vadd.f32 %v718, %v788
    %v792 = vxor.u32 %v791, 2147483648
    %v793 = vmul.f32 %v792, 1.442695
    %v794 = vpow.pop %v793
    %v795 = vadd.f32 %v794, 1.0
    %v796 = vrcp.pop %v795
    %v797 = vmul.f32 1.0, %v796
    %v798 = vtanh.pop %v791
    %v799 = vmul.f32 %v797, %v603
    %801 = vrot.lane.b32.xlu0 %v798, 32
    %v802 = vpop.permute.xlu0 %801
    %v804 = vmul.f32 %v797, %v802
    %806 = vrot.lane.b32.xlu0 %v804, 32
    %v807 = vpop.permute.xlu0 %806
    %v809 = vadd.f32 %v799, %v807
    %v810 = vtanh.pop %v809
    %812 = vrot.lane.b32.xlu0 %v810, 32
    %v813 = vpop.permute.xlu0 %812
    %v815 = vmul.f32 %v797, %v813
    %v816 = vld [vmem:[#allocation3 + $0x28] sm:$0xff]
    %v817 = vsel %vm307, %v715, 0
    %819 = vmatprep.subr.mxu0 0.0
    %820 = vmatpush1.msra.mxu0 %v302
    %821 = vmatprep.subr.mxu0 0.0
    %822 = vmatpush1.msra.mxu0 %v303
    %823 = vmatprep.subr.mxu0 0.0
    %824 = vmatpush1.msra.mxu0 %v304
    %825 = vmatprep.subr.mxu0 0.0
    %826 = vmatpush1.msra.mxu0 %v305
    %827 = vmatprep.subr.mxu0 0.0
    %828 = vmatpush1.msra.mxu0 0.0
    %829 = vmatprep.subr.mxu0 0.0
    %830 = vmatpush1.msra.mxu0 0.0
    %831 = vmatprep.subr.mxu0 0.0
    %832 = vmatpush1.msra.mxu0 0.0
    %833 = vmatprep.subr.mxu0 0.0
    %834 = vmatpush1.msra.mxu0 0.0
    %835 = vmatprep.subr.mxu0 0.0
    %836 = vmatpush1.msra.mxu0 0.0
    %837 = vmatprep.subr.mxu0 0.0
    %838 = vmatpush1.msra.mxu0 0.0
    %839 = vmatprep.subr.mxu0 0.0
    %840 = vmatpush1.msra.mxu0 0.0
    %841 = vmatprep.subr.mxu0 0.0
    %842 = vmatpush1.msra.mxu0 0.0
    %843 = vmatprep.subr.mxu0 0.0
    %844 = vmatpush1.msra.mxu0 0.0
    %845 = vmatprep.subr.mxu0 0.0
    %846 = vmatpush1.msra.mxu0 0.0
    %847 = vmatprep.subr.mxu0 0.0
    %848 = vmatpush1.msra.mxu0 0.0
    %849 = vmatprep.subr.mxu0 0.0
    %850 = vmatpush1.msra.mxu0 0.0
    %851 = vmatprep.subr.mxu0 0.0
    %852 = vmatpush1.msra.mxu0 0.0
    %853 = vmatprep.subr.mxu0 0.0
    %854 = vmatpush1.msra.mxu0 0.0
    %855 = vmatprep.subr.mxu0 0.0
    %856 = vmatpush1.msra.mxu0 0.0
    %857 = vmatprep.subr.mxu0 0.0
    %858 = vmatpush1.msra.mxu0 0.0
    %859 = vmatprep.subr.mxu0 0.0
    %860 = vmatpush1.msra.mxu0 0.0
    %861 = vmatprep.subr.mxu0 0.0
    %862 = vmatpush1.msra.mxu0 0.0
    %863 = vmatprep.subr.mxu0 0.0
    %864 = vmatpush1.msra.mxu0 0.0
    %865 = vmatprep.subr.mxu0 0.0
    %866 = vmatpush1.msra.mxu0 0.0
    %867 = vmatprep.subr.mxu0 0.0
    %868 = vmatpush1.msra.mxu0 0.0
    %869 = vmatprep.subr.mxu0 0.0
    %870 = vmatpush1.msra.mxu0 0.0
    %871 = vmatprep.subr.mxu0 0.0
    %872 = vmatpush1.msra.mxu0 0.0
    %873 = vmatprep.subr.mxu0 0.0
    %874 = vmatpush1.msra.mxu0 0.0
    %875 = vmatprep.subr.mxu0 0.0
    %876 = vmatpush1.msra.mxu0 0.0
    %877 = vmatprep.subr.mxu0 0.0
    %878 = vmatpush1.msra.mxu0 0.0
    %879 = vmatprep.subr.mxu0 0.0
    %880 = vmatpush1.msra.mxu0 0.0
    %881 = vmatprep.subr.mxu0 0.0
    %882 = vmatpush1.msra.mxu0 0.0
    %883 = vmatprep.mubr.f32.mxu0 0.0
    %884 = vmatmul.mubr.f32.gmra.mrb[0].mxu0 %v817
    %v885 = vpop.f32.mrb[0].mxu0
    %v886 = vadd.f32 0.0, %v885
    %v887 = vpop.f32.mrb[0].mxu0
    %888 = vdwg.mxu0
    %v889 = vadd.f32 %v816, %v886
    %v890 = vxor.u32 %v889, 2147483648
    %v891 = vmul.f32 %v890, 1.442695
    %v892 = vpow.pop %v891
    %v893 = vadd.f32 %v892, 1.0
    %v894 = vrcp.pop %v893
    %v895 = vmul.f32 1.0, %v894
    %v896 = vtanh.pop %v889
    %v897 = vmul.f32 %v895, %v701
    %899 = vrot.lane.b32.xlu0 %v896, 32
    %v900 = vpop.permute.xlu0 %899
    %v902 = vmul.f32 %v895, %v900
    %904 = vrot.lane.b32.xlu0 %v902, 32
    %v905 = vpop.permute.xlu0 %904
    %v907 = vadd.f32 %v897, %v905
    %v908 = vtanh.pop %v907
    %910 = vrot.lane.b32.xlu0 %v908, 32
    %v911 = vpop.permute.xlu0 %910
    %v913 = vmul.f32 %v895, %v911
    %915 = vrot.lane.b32.xlu0 %v815, 64
    %v916 = vpop.permute.xlu0 %915
    %918 = vst.msk [vmem:[#allocation4 + $0x10] sm:$0xff] %vm307, %v916
    %920 = vrot.lane.b32.xlu0 %v913, 64
    %v921 = vpop.permute.xlu0 %920
    %923 = vst.msk [vmem:[#allocation5 + $0x28] sm:$0xff] %vm307, %v921
    %v924 = vld [vmem:[#allocation2 + $0x18] sm:$0xff]
    %v925 = vsel %vm307, %v916, 0
    %927 = vmatprep.subr.mxu0 0.0
    %928 = vmatpush1.msra.mxu0 %v298
    %929 = vmatprep.subr.mxu0 0.0
    %930 = vmatpush1.msra.mxu0 %v299
    %931 = vmatprep.subr.mxu0 0.0
    %932 = vmatpush1.msra.mxu0 %v300
    %933 = vmatprep.subr.mxu0 0.0
    %934 = vmatpush1.msra.mxu0 %v301
    %935 = vmatprep.subr.mxu0 0.0
    %936 = vmatpush1.msra.mxu0 0.0
    %937 = vmatprep.subr.mxu0 0.0
    %938 = vmatpush1.msra.mxu0 0.0
    %939 = vmatprep.subr.mxu0 0.0
    %940 = vmatpush1.msra.mxu0 0.0
    %941 = vmatprep.subr.mxu0 0.0
    %942 = vmatpush1.msra.mxu0 0.0
    %943 = vmatprep.subr.mxu0 0.0
    %944 = vmatpush1.msra.mxu0 0.0
    %945 = vmatprep.subr.mxu0 0.0
    %946 = vmatpush1.msra.mxu0 0.0
    %947 = vmatprep.subr.mxu0 0.0
    %948 = vmatpush1.msra.mxu0 0.0
    %949 = vmatprep.subr.mxu0 0.0
    %950 = vmatpush1.msra.mxu0 0.0
    %951 = vmatprep.subr.mxu0 0.0
    %952 = vmatpush1.msra.mxu0 0.0
    %953 = vmatprep.subr.mxu0 0.0
    %954 = vmatpush1.msra.mxu0 0.0
    %955 = vmatprep.subr.mxu0 0.0
    %956 = vmatpush1.msra.mxu0 0.0
    %957 = vmatprep.subr.mxu0 0.0
    %958 = vmatpush1.msra.mxu0 0.0
    %959 = vmatprep.subr.mxu0 0.0
    %960 = vmatpush1.msra.mxu0 0.0
    %961 = vmatprep.subr.mxu0 0.0
    %962 = vmatpush1.msra.mxu0 0.0
    %963 = vmatprep.subr.mxu0 0.0
    %964 = vmatpush1.msra.mxu0 0.0
    %965 = vmatprep.subr.mxu0 0.0
    %966 = vmatpush1.msra.mxu0 0.0
    %967 = vmatprep.subr.mxu0 0.0
    %968 = vmatpush1.msra.mxu0 0.0
    %969 = vmatprep.subr.mxu0 0.0
    %970 = vmatpush1.msra.mxu0 0.0
    %971 = vmatprep.subr.mxu0 0.0
    %972 = vmatpush1.msra.mxu0 0.0
    %973 = vmatprep.subr.mxu0 0.0
    %974 = vmatpush1.msra.mxu0 0.0
    %975 = vmatprep.subr.mxu0 0.0
    %976 = vmatpush1.msra.mxu0 0.0
    %977 = vmatprep.subr.mxu0 0.0
    %978 = vmatpush1.msra.mxu0 0.0
    %979 = vmatprep.subr.mxu0 0.0
    %980 = vmatpush1.msra.mxu0 0.0
    %981 = vmatprep.subr.mxu0 0.0
    %982 = vmatpush1.msra.mxu0 0.0
    %983 = vmatprep.subr.mxu0 0.0
    %984 = vmatpush1.msra.mxu0 0.0
    %985 = vmatprep.subr.mxu0 0.0
    %986 = vmatpush1.msra.mxu0 0.0
    %987 = vmatprep.subr.mxu0 0.0
    %988 = vmatpush1.msra.mxu0 0.0
    %989 = vmatprep.subr.mxu0 0.0
    %990 = vmatpush1.msra.mxu0 0.0
    %991 = vmatprep.mubr.f32.mxu0 0.0
    %992 = vmatmul.mubr.f32.gmra.mrb[0].mxu0 %v925
    %v993 = vpop.f32.mrb[0].mxu0
    %v994 = vadd.f32 0.0, %v993
    %v995 = vpop.f32.mrb[0].mxu0
    %996 = vdwg.mxu0
    %v997 = vadd.f32 %v924, %v994
    %v998 = vxor.u32 %v997, 2147483648
    %v999 = vmul.f32 %v998, 1.442695
    %v1000 = vpow.pop %v999
    %v1001 = vadd.f32 %v1000, 1.0
    %v1002 = vrcp.pop %v1001
    %v1003 = vmul.f32 1.0, %v1002
    %v1004 = vtanh.pop %v997
    %v1005 = vmul.f32 %v1003, %v809
    %1007 = vrot.lane.b32.xlu0 %v1004, 32
    %v1008 = vpop.permute.xlu0 %1007
    %v1010 = vmul.f32 %v1003, %v1008
    %1012 = vrot.lane.b32.xlu0 %v1010, 32
    %v1013 = vpop.permute.xlu0 %1012
    %v1015 = vadd.f32 %v1005, %v1013
    %v1016 = vtanh.pop %v1015
    %1018 = vrot.lane.b32.xlu0 %v1016, 32
    %v1019 = vpop.permute.xlu0 %1018
    %v1021 = vmul.f32 %v1003, %v1019
    %v1022 = vld [vmem:[#allocation3 + $0x20] sm:$0xff]
    %v1023 = vsel %vm307, %v921, 0
    %1025 = vmatprep.subr.mxu0 0.0
    %1026 = vmatpush1.msra.mxu0 %v302
    %1027 = vmatprep.subr.mxu0 0.0
    %1028 = vmatpush1.msra.mxu0 %v303
    %1029 = vmatprep.subr.mxu0 0.0
    %1030 = vmatpush1.msra.mxu0 %v304
    %1031 = vmatprep.subr.mxu0 0.0
    %1032 = vmatpush1.msra.mxu0 %v305
    %1033 = vmatprep.subr.mxu0 0.0
    %1034 = vmatpush1.msra.mxu0 0.0
    %1035 = vmatprep.subr.mxu0 0.0
    %1036 = vmatpush1.msra.mxu0 0.0
    %1037 = vmatprep.subr.mxu0 0.0
    %1038 = vmatpush1.msra.mxu0 0.0
    %1039 = vmatprep.subr.mxu0 0.0
    %1040 = vmatpush1.msra.mxu0 0.0
    %1041 = vmatprep.subr.mxu0 0.0
    %1042 = vmatpush1.msra.mxu0 0.0
    %1043 = vmatprep.subr.mxu0 0.0
    %1044 = vmatpush1.msra.mxu0 0.0
    %1045 = vmatprep.subr.mxu0 0.0
    %1046 = vmatpush1.msra.mxu0 0.0
    %1047 = vmatprep.subr.mxu0 0.0
    %1048 = vmatpush1.msra.mxu0 0.0
    %1049 = vmatprep.subr.mxu0 0.0
    %1050 = vmatpush1.msra.mxu0 0.0
    %1051 = vmatprep.subr.mxu0 0.0
    %1052 = vmatpush1.msra.mxu0 0.0
    %1053 = vmatprep.subr.mxu0 0.0
    %1054 = vmatpush1.msra.mxu0 0.0
    %1055 = vmatprep.subr.mxu0 0.0
    %1056 = vmatpush1.msra.mxu0 0.0
    %1057 = vmatprep.subr.mxu0 0.0
    %1058 = vmatpush1.msra.mxu0 0.0
    %1059 = vmatprep.subr.mxu0 0.0
    %1060 = vmatpush1.msra.mxu0 0.0
    %1061 = vmatprep.subr.mxu0 0.0
    %1062 = vmatpush1.msra.mxu0 0.0
    %1063 = vmatprep.subr.mxu0 0.0
    %1064 = vmatpush1.msra.mxu0 0.0
    %1065 = vmatprep.subr.mxu0 0.0
    %1066 = vmatpush1.msra.mxu0 0.0
    %1067 = vmatprep.subr.mxu0 0.0
    %1068 = vmatpush1.msra.mxu0 0.0
    %1069 = vmatprep.subr.mxu0 0.0
    %1070 = vmatpush1.msra.mxu0 0.0
    %1071 = vmatprep.subr.mxu0 0.0
    %1072 = vmatpush1.msra.mxu0 0.0
    %1073 = vmatprep.subr.mxu0 0.0
    %1074 = vmatpush1.msra.mxu0 0.0
    %1075 = vmatprep.subr.mxu0 0.0
    %1076 = vmatpush1.msra.mxu0 0.0
    %1077 = vmatprep.subr.mxu0 0.0
    %1078 = vmatpush1.msra.mxu0 0.0
    %1079 = vmatprep.subr.mxu0 0.0
    %1080 = vmatpush1.msra.mxu0 0.0
    %1081 = vmatprep.subr.mxu0 0.0
    %1082 = vmatpush1.msra.mxu0 0.0
    %1083 = vmatprep.subr.mxu0 0.0
    %1084 = vmatpush1.msra.mxu0 0.0
    %1085 = vmatprep.subr.mxu0 0.0
    %1086 = vmatpush1.msra.mxu0 0.0
    %1087 = vmatprep.subr.mxu0 0.0
    %1088 = vmatpush1.msra.mxu0 0.0
    %1089 = vmatprep.mubr.f32.mxu0 0.0
    %1090 = vmatmul.mubr.f32.gmra.mrb[0].mxu0 %v1023
    %v1091 = vpop.f32.mrb[0].mxu0
    %v1092 = vadd.f32 0.0, %v1091
    %v1093 = vpop.f32.mrb[0].mxu0
    %1094 = vdwg.mxu0
    %v1095 = vadd.f32 %v1022, %v1092
    %v1096 = vxor.u32 %v1095, 2147483648
    %v1097 = vmul.f32 %v1096, 1.442695
    %v1098 = vpow.pop %v1097
    %v1099 = vadd.f32 %v1098, 1.0
    %v1100 = vrcp.pop %v1099
    %v1101 = vmul.f32 1.0, %v1100
    %v1102 = vtanh.pop %v1095
    %v1103 = vmul.f32 %v1101, %v907
    %1105 = vrot.lane.b32.xlu0 %v1102, 32
    %v1106 = vpop.permute.xlu0 %1105
    %v1108 = vmul.f32 %v1101, %v1106
    %1110 = vrot.lane.b32.xlu0 %v1108, 32
    %v1111 = vpop.permute.xlu0 %1110
    %v1113 = vadd.f32 %v1103, %v1111
    %v1114 = vtanh.pop %v1113
    %1116 = vrot.lane.b32.xlu0 %v1114, 32
    %v1117 = vpop.permute.xlu0 %1116
    %v1119 = vmul.f32 %v1101, %v1117
    %1121 = vrot.lane.b32.xlu0 %v1021, 64
    %v1122 = vpop.permute.xlu0 %1121
    %1124 = vst.msk [vmem:[#allocation4 + $0x18] sm:$0xff] %vm307, %v1122
    %1126 = vrot.lane.b32.xlu0 %v1119, 64
    %v1127 = vpop.permute.xlu0 %1126
    %1129 = vst.msk [vmem:[#allocation5 + $0x20] sm:$0xff] %vm307, %v1127
    %v1130 = vld [vmem:[#allocation2 + $0x20] sm:$0xff]
    %v1131 = vsel %vm307, %v1122, 0
    %1133 = vmatprep.subr.mxu0 0.0
    %1134 = vmatpush1.msra.mxu0 %v298
    %1135 = vmatprep.subr.mxu0 0.0
    %1136 = vmatpush1.msra.mxu0 %v299
    %1137 = vmatprep.subr.mxu0 0.0
    %1138 = vmatpush1.msra.mxu0 %v300
    %1139 = vmatprep.subr.mxu0 0.0
    %1140 = vmatpush1.msra.mxu0 %v301
    %1141 = vmatprep.subr.mxu0 0.0
    %1142 = vmatpush1.msra.mxu0 0.0
    %1143 = vmatprep.subr.mxu0 0.0
    %1144 = vmatpush1.msra.mxu0 0.0
    %1145 = vmatprep.subr.mxu0 0.0
    %1146 = vmatpush1.msra.mxu0 0.0
    %1147 = vmatprep.subr.mxu0 0.0
    %1148 = vmatpush1.msra.mxu0 0.0
    %1149 = vmatprep.subr.mxu0 0.0
    %1150 = vmatpush1.msra.mxu0 0.0
    %1151 = vmatprep.subr.mxu0 0.0
    %1152 = vmatpush1.msra.mxu0 0.0
    %1153 = vmatprep.subr.mxu0 0.0
    %1154 = vmatpush1.msra.mxu0 0.0
    %1155 = vmatprep.subr.mxu0 0.0
    %1156 = vmatpush1.msra.mxu0 0.0
    %1157 = vmatprep.subr.mxu0 0.0
    %1158 = vmatpush1.msra.mxu0 0.0
    %1159 = vmatprep.subr.mxu0 0.0
    %1160 = vmatpush1.msra.mxu0 0.0
    %1161 = vmatprep.subr.mxu0 0.0
    %1162 = vmatpush1.msra.mxu0 0.0
    %1163 = vmatprep.subr.mxu0 0.0
    %1164 = vmatpush1.msra.mxu0 0.0
    %1165 = vmatprep.subr.mxu0 0.0
    %1166 = vmatpush1.msra.mxu0 0.0
    %1167 = vmatprep.subr.mxu0 0.0
    %1168 = vmatpush1.msra.mxu0 0.0
    %1169 = vmatprep.subr.mxu0 0.0
    %1170 = vmatpush1.msra.mxu0 0.0
    %1171 = vmatprep.subr.mxu0 0.0
    %1172 = vmatpush1.msra.mxu0 0.0
    %1173 = vmatprep.subr.mxu0 0.0
    %1174 = vmatpush1.msra.mxu0 0.0
    %1175 = vmatprep.subr.mxu0 0.0
    %1176 = vmatpush1.msra.mxu0 0.0
    %1177 = vmatprep.subr.mxu0 0.0
    %1178 = vmatpush1.msra.mxu0 0.0
    %1179 = vmatprep.subr.mxu0 0.0
    %1180 = vmatpush1.msra.mxu0 0.0
    %1181 = vmatprep.subr.mxu0 0.0
    %1182 = vmatpush1.msra.mxu0 0.0
    %1183 = vmatprep.subr.mxu0 0.0
    %1184 = vmatpush1.msra.mxu0 0.0
    %1185 = vmatprep.subr.mxu0 0.0
    %1186 = vmatpush1.msra.mxu0 0.0
    %1187 = vmatprep.subr.mxu0 0.0
    %1188 = vmatpush1.msra.mxu0 0.0
    %1189 = vmatprep.subr.mxu0 0.0
    %1190 = vmatpush1.msra.mxu0 0.0
    %1191 = vmatprep.subr.mxu0 0.0
    %1192 = vmatpush1.msra.mxu0 0.0
    %1193 = vmatprep.subr.mxu0 0.0
    %1194 = vmatpush1.msra.mxu0 0.0
    %1195 = vmatprep.subr.mxu0 0.0
    %1196 = vmatpush1.msra.mxu0 0.0
    %1197 = vmatprep.mubr.f32.mxu0 0.0
    %1198 = vmatmul.mubr.f32.gmra.mrb[0].mxu0 %v1131
    %v1199 = vpop.f32.mrb[0].mxu0
    %v1200 = vadd.f32 0.0, %v1199
    %v1201 = vpop.f32.mrb[0].mxu0
    %1202 = vdwg.mxu0
    %v1203 = vadd.f32 %v1130, %v1200
    %v1204 = vxor.u32 %v1203, 2147483648
    %v1205 = vmul.f32 %v1204, 1.442695
    %v1206 = vpow.pop %v1205
    %v1207 = vadd.f32 %v1206, 1.0
    %v1208 = vrcp.pop %v1207
    %v1209 = vmul.f32 1.0, %v1208
    %v1210 = vtanh.pop %v1203
    %v1211 = vmul.f32 %v1209, %v1015
    %1213 = vrot.lane.b32.xlu0 %v1210, 32
    %v1214 = vpop.permute.xlu0 %1213
    %v1216 = vmul.f32 %v1209, %v1214
    %1218 = vrot.lane.b32.xlu0 %v1216, 32
    %v1219 = vpop.permute.xlu0 %1218
    %v1221 = vadd.f32 %v1211, %v1219
    %v1222 = vtanh.pop %v1221
    %1224 = vrot.lane.b32.xlu0 %v1222, 32
    %v1225 = vpop.permute.xlu0 %1224
    %v1227 = vmul.f32 %v1209, %v1225
    %v1228 = vld [vmem:[#allocation3 + $0x18] sm:$0xff]
    %v1229 = vsel %vm307, %v1127, 0
    %1231 = vmatprep.subr.mxu0 0.0
    %1232 = vmatpush1.msra.mxu0 %v302
    %1233 = vmatprep.subr.mxu0 0.0
    %1234 = vmatpush1.msra.mxu0 %v303
    %1235 = vmatprep.subr.mxu0 0.0
    %1236 = vmatpush1.msra.mxu0 %v304
    %1237 = vmatprep.subr.mxu0 0.0
    %1238 = vmatpush1.msra.mxu0 %v305
    %1239 = vmatprep.subr.mxu0 0.0
    %1240 = vmatpush1.msra.mxu0 0.0
    %1241 = vmatprep.subr.mxu0 0.0
    %1242 = vmatpush1.msra.mxu0 0.0
    %1243 = vmatprep.subr.mxu0 0.0
    %1244 = vmatpush1.msra.mxu0 0.0
    %1245 = vmatprep.subr.mxu0 0.0
    %1246 = vmatpush1.msra.mxu0 0.0
    %1247 = vmatprep.subr.mxu0 0.0
    %1248 = vmatpush1.msra.mxu0 0.0
    %1249 = vmatprep.subr.mxu0 0.0
    %1250 = vmatpush1.msra.mxu0 0.0
    %1251 = vmatprep.subr.mxu0 0.0
    %1252 = vmatpush1.msra.mxu0 0.0
    %1253 = vmatprep.subr.mxu0 0.0
    %1254 = vmatpush1.msra.mxu0 0.0
    %1255 = vmatprep.subr.mxu0 0.0
    %1256 = vmatpush1.msra.mxu0 0.0
    %1257 = vmatprep.subr.mxu0 0.0
    %1258 = vmatpush1.msra.mxu0 0.0
    %1259 = vmatprep.subr.mxu0 0.0
    %1260 = vmatpush1.msra.mxu0 0.0
    %1261 = vmatprep.subr.mxu0 0.0
    %1262 = vmatpush1.msra.mxu0 0.0
    %1263 = vmatprep.subr.mxu0 0.0
    %1264 = vmatpush1.msra.mxu0 0.0
    %1265 = vmatprep.subr.mxu0 0.0
    %1266 = vmatpush1.msra.mxu0 0.0
    %1267 = vmatprep.subr.mxu0 0.0
    %1268 = vmatpush1.msra.mxu0 0.0
    %1269 = vmatprep.subr.mxu0 0.0
    %1270 = vmatpush1.msra.mxu0 0.0
    %1271 = vmatprep.subr.mxu0 0.0
    %1272 = vmatpush1.msra.mxu0 0.0
    %1273 = vmatprep.subr.mxu0 0.0
    %1274 = vmatpush1.msra.mxu0 0.0
    %1275 = vmatprep.subr.mxu0 0.0
    %1276 = vmatpush1.msra.mxu0 0.0
    %1277 = vmatprep.subr.mxu0 0.0
    %1278 = vmatpush1.msra.mxu0 0.0
    %1279 = vmatprep.subr.mxu0 0.0
    %1280 = vmatpush1.msra.mxu0 0.0
    %1281 = vmatprep.subr.mxu0 0.0
    %1282 = vmatpush1.msra.mxu0 0.0
    %1283 = vmatprep.subr.mxu0 0.0
    %1284 = vmatpush1.msra.mxu0 0.0
    %1285 = vmatprep.subr.mxu0 0.0
    %1286 = vmatpush1.msra.mxu0 0.0
    %1287 = vmatprep.subr.mxu0 0.0
    %1288 = vmatpush1.msra.mxu0 0.0
    %1289 = vmatprep.subr.mxu0 0.0
    %1290 = vmatpush1.msra.mxu0 0.0
    %1291 = vmatprep.subr.mxu0 0.0
    %1292 = vmatpush1.msra.mxu0 0.0
    %1293 = vmatprep.subr.mxu0 0.0
    %1294 = vmatpush1.msra.mxu0 0.0
    %1295 = vmatprep.mubr.f32.mxu0 0.0
    %1296 = vmatmul.mubr.f32.gmra.mrb[0].mxu0 %v1229
    %v1297 = vpop.f32.mrb[0].mxu0
    %v1298 = vadd.f32 0.0, %v1297
    %v1299 = vpop.f32.mrb[0].mxu0
    %1300 = vdwg.mxu0
    %v1301 = vadd.f32 %v1228, %v1298
    %v1302 = vxor.u32 %v1301, 2147483648
    %v1303 = vmul.f32 %v1302, 1.442695
    %v1304 = vpow.pop %v1303
    %v1305 = vadd.f32 %v1304, 1.0
    %v1306 = vrcp.pop %v1305
    %v1307 = vmul.f32 1.0, %v1306
    %v1308 = vtanh.pop %v1301
    %v1309 = vmul.f32 %v1307, %v1113
    %1311 = vrot.lane.b32.xlu0 %v1308, 32
    %v1312 = vpop.permute.xlu0 %1311
    %v1314 = vmul.f32 %v1307, %v1312
    %1316 = vrot.lane.b32.xlu0 %v1314, 32
    %v1317 = vpop.permute.xlu0 %1316
    %v1319 = vadd.f32 %v1309, %v1317
    %v1320 = vtanh.pop %v1319
    %1322 = vrot.lane.b32.xlu0 %v1320, 32
    %v1323 = vpop.permute.xlu0 %1322
    %v1325 = vmul.f32 %v1307, %v1323
    %1327 = vrot.lane.b32.xlu0 %v1227, 64
    %v1328 = vpop.permute.xlu0 %1327
    %1330 = vst.msk [vmem:[#allocation4 + $0x20] sm:$0xff] %vm307, %v1328
    %1332 = vrot.lane.b32.xlu0 %v1325, 64
    %v1333 = vpop.permute.xlu0 %1332
    %1335 = vst.msk [vmem:[#allocation5 + $0x18] sm:$0xff] %vm307, %v1333
    %v1336 = vld [vmem:[#allocation2 + $0x28] sm:$0xff]
    %v1337 = vsel %vm307, %v1328, 0
    %1339 = vmatprep.subr.mxu0 0.0
    %1340 = vmatpush1.msra.mxu0 %v298
    %1341 = vmatprep.subr.mxu0 0.0
    %1342 = vmatpush1.msra.mxu0 %v299
    %1343 = vmatprep.subr.mxu0 0.0
    %1344 = vmatpush1.msra.mxu0 %v300
    %1345 = vmatprep.subr.mxu0 0.0
    %1346 = vmatpush1.msra.mxu0 %v301
    %1347 = vmatprep.subr.mxu0 0.0
    %1348 = vmatpush1.msra.mxu0 0.0
    %1349 = vmatprep.subr.mxu0 0.0
    %1350 = vmatpush1.msra.mxu0 0.0
    %1351 = vmatprep.subr.mxu0 0.0
    %1352 = vmatpush1.msra.mxu0 0.0
    %1353 = vmatprep.subr.mxu0 0.0
    %1354 = vmatpush1.msra.mxu0 0.0
    %1355 = vmatprep.subr.mxu0 0.0
    %1356 = vmatpush1.msra.mxu0 0.0
    %1357 = vmatprep.subr.mxu0 0.0
    %1358 = vmatpush1.msra.mxu0 0.0
    %1359 = vmatprep.subr.mxu0 0.0
    %1360 = vmatpush1.msra.mxu0 0.0
    %1361 = vmatprep.subr.mxu0 0.0
    %1362 = vmatpush1.msra.mxu0 0.0
    %1363 = vmatprep.subr.mxu0 0.0
    %1364 = vmatpush1.msra.mxu0 0.0
    %1365 = vmatprep.subr.mxu0 0.0
    %1366 = vmatpush1.msra.mxu0 0.0
    %1367 = vmatprep.subr.mxu0 0.0
    %1368 = vmatpush1.msra.mxu0 0.0
    %1369 = vmatprep.subr.mxu0 0.0
    %1370 = vmatpush1.msra.mxu0 0.0
    %1371 = vmatprep.subr.mxu0 0.0
    %1372 = vmatpush1.msra.mxu0 0.0
    %1373 = vmatprep.subr.mxu0 0.0
    %1374 = vmatpush1.msra.mxu0 0.0
    %1375 = vmatprep.subr.mxu0 0.0
    %1376 = vmatpush1.msra.mxu0 0.0
    %1377 = vmatprep.subr.mxu0 0.0
    %1378 = vmatpush1.msra.mxu0 0.0
    %1379 = vmatprep.subr.mxu0 0.0
    %1380 = vmatpush1.msra.mxu0 0.0
    %1381 = vmatprep.subr.mxu0 0.0
    %1382 = vmatpush1.msra.mxu0 0.0
    %1383 = vmatprep.subr.mxu0 0.0
    %1384 = vmatpush1.msra.mxu0 0.0
    %1385 = vmatprep.subr.mxu0 0.0
    %1386 = vmatpush1.msra.mxu0 0.0
    %1387 = vmatprep.subr.mxu0 0.0
    %1388 = vmatpush1.msra.mxu0 0.0
    %1389 = vmatprep.subr.mxu0 0.0
    %1390 = vmatpush1.msra.mxu0 0.0
    %1391 = vmatprep.subr.mxu0 0.0
    %1392 = vmatpush1.msra.mxu0 0.0
    %1393 = vmatprep.subr.mxu0 0.0
    %1394 = vmatpush1.msra.mxu0 0.0
    %1395 = vmatprep.subr.mxu0 0.0
    %1396 = vmatpush1.msra.mxu0 0.0
    %1397 = vmatprep.subr.mxu0 0.0
    %1398 = vmatpush1.msra.mxu0 0.0
    %1399 = vmatprep.subr.mxu0 0.0
    %1400 = vmatpush1.msra.mxu0 0.0
    %1401 = vmatprep.subr.mxu0 0.0
    %1402 = vmatpush1.msra.mxu0 0.0
    %1403 = vmatprep.mubr.f32.mxu0 0.0
    %1404 = vmatmul.mubr.f32.gmra.mrb[0].mxu0 %v1337
    %v1405 = vpop.f32.mrb[0].mxu0
    %v1406 = vadd.f32 0.0, %v1405
    %v1407 = vpop.f32.mrb[0].mxu0
    %1408 = vdwg.mxu0
    %v1409 = vadd.f32 %v1336, %v1406
    %v1410 = vxor.u32 %v1409, 2147483648
    %v1411 = vmul.f32 %v1410, 1.442695
    %v1412 = vpow.pop %v1411
    %v1413 = vadd.f32 %v1412, 1.0
    %v1414 = vrcp.pop %v1413
    %v1415 = vmul.f32 1.0, %v1414
    %v1416 = vtanh.pop %v1409
    %v1417 = vmul.f32 %v1415, %v1221
    %1419 = vrot.lane.b32.xlu0 %v1416, 32
    %v1420 = vpop.permute.xlu0 %1419
    %v1422 = vmul.f32 %v1415, %v1420
    %1424 = vrot.lane.b32.xlu0 %v1422, 32
    %v1425 = vpop.permute.xlu0 %1424
    %v1427 = vadd.f32 %v1417, %v1425
    %v1428 = vtanh.pop %v1427
    %1430 = vrot.lane.b32.xlu0 %v1428, 32
    %v1431 = vpop.permute.xlu0 %1430
    %v1433 = vmul.f32 %v1415, %v1431
    %v1434 = vld [vmem:[#allocation3 + $0x10] sm:$0xff]
    %v1435 = vsel %vm307, %v1333, 0
    %1437 = vmatprep.subr.mxu0 0.0
    %1438 = vmatpush1.msra.mxu0 %v302
    %1439 = vmatprep.subr.mxu0 0.0
    %1440 = vmatpush1.msra.mxu0 %v303
    %1441 = vmatprep.subr.mxu0 0.0
    %1442 = vmatpush1.msra.mxu0 %v304
    %1443 = vmatprep.subr.mxu0 0.0
    %1444 = vmatpush1.msra.mxu0 %v305
    %1445 = vmatprep.subr.mxu0 0.0
    %1446 = vmatpush1.msra.mxu0 0.0
    %1447 = vmatprep.subr.mxu0 0.0
    %1448 = vmatpush1.msra.mxu0 0.0
    %1449 = vmatprep.subr.mxu0 0.0
    %1450 = vmatpush1.msra.mxu0 0.0
    %1451 = vmatprep.subr.mxu0 0.0
    %1452 = vmatpush1.msra.mxu0 0.0
    %1453 = vmatprep.subr.mxu0 0.0
    %1454 = vmatpush1.msra.mxu0 0.0
    %1455 = vmatprep.subr.mxu0 0.0
    %1456 = vmatpush1.msra.mxu0 0.0
    %1457 = vmatprep.subr.mxu0 0.0
    %1458 = vmatpush1.msra.mxu0 0.0
    %1459 = vmatprep.subr.mxu0 0.0
    %1460 = vmatpush1.msra.mxu0 0.0
    %1461 = vmatprep.subr.mxu0 0.0
    %1462 = vmatpush1.msra.mxu0 0.0
    %1463 = vmatprep.subr.mxu0 0.0
    %1464 = vmatpush1.msra.mxu0 0.0
    %1465 = vmatprep.subr.mxu0 0.0
    %1466 = vmatpush1.msra.mxu0 0.0
    %1467 = vmatprep.subr.mxu0 0.0
    %1468 = vmatpush1.msra.mxu0 0.0
    %1469 = vmatprep.subr.mxu0 0.0
    %1470 = vmatpush1.msra.mxu0 0.0
    %1471 = vmatprep.subr.mxu0 0.0
    %1472 = vmatpush1.msra.mxu0 0.0
    %1473 = vmatprep.subr.mxu0 0.0
    %1474 = vmatpush1.msra.mxu0 0.0
    %1475 = vmatprep.subr.mxu0 0.0
    %1476 = vmatpush1.msra.mxu0 0.0
    %1477 = vmatprep.subr.mxu0 0.0
    %1478 = vmatpush1.msra.mxu0 0.0
    %1479 = vmatprep.subr.mxu0 0.0
    %1480 = vmatpush1.msra.mxu0 0.0
    %1481 = vmatprep.subr.mxu0 0.0
    %1482 = vmatpush1.msra.mxu0 0.0
    %1483 = vmatprep.subr.mxu0 0.0
    %1484 = vmatpush1.msra.mxu0 0.0
    %1485 = vmatprep.subr.mxu0 0.0
    %1486 = vmatpush1.msra.mxu0 0.0
    %1487 = vmatprep.subr.mxu0 0.0
    %1488 = vmatpush1.msra.mxu0 0.0
    %1489 = vmatprep.subr.mxu0 0.0
    %1490 = vmatpush1.msra.mxu0 0.0
    %1491 = vmatprep.subr.mxu0 0.0
    %1492 = vmatpush1.msra.mxu0 0.0
    %1493 = vmatprep.subr.mxu0 0.0
    %1494 = vmatpush1.msra.mxu0 0.0
    %1495 = vmatprep.subr.mxu0 0.0
    %1496 = vmatpush1.msra.mxu0 0.0
    %1497 = vmatprep.subr.mxu0 0.0
    %1498 = vmatpush1.msra.mxu0 0.0
    %1499 = vmatprep.subr.mxu0 0.0
    %1500 = vmatpush1.msra.mxu0 0.0
    %1501 = vmatprep.mubr.f32.mxu0 0.0
    %1502 = vmatmul.mubr.f32.gmra.mrb[0].mxu0 %v1435
    %v1503 = vpop.f32.mrb[0].mxu0
    %v1504 = vadd.f32 0.0, %v1503
    %v1505 = vpop.f32.mrb[0].mxu0
    %1506 = vdwg.mxu0
    %v1507 = vadd.f32 %v1434, %v1504
    %v1508 = vxor.u32 %v1507, 2147483648
    %v1509 = vmul.f32 %v1508, 1.442695
    %v1510 = vpow.pop %v1509
    %v1511 = vadd.f32 %v1510, 1.0
    %v1512 = vrcp.pop %v1511
    %v1513 = vmul.f32 1.0, %v1512
    %v1514 = vtanh.pop %v1507
    %v1515 = vmul.f32 %v1513, %v1319
    %1517 = vrot.lane.b32.xlu0 %v1514, 32
    %v1518 = vpop.permute.xlu0 %1517
    %v1520 = vmul.f32 %v1513, %v1518
    %1522 = vrot.lane.b32.xlu0 %v1520, 32
    %v1523 = vpop.permute.xlu0 %1522
    %v1525 = vadd.f32 %v1515, %v1523
    %v1526 = vtanh.pop %v1525
    %1528 = vrot.lane.b32.xlu0 %v1526, 32
    %v1529 = vpop.permute.xlu0 %1528
    %v1531 = vmul.f32 %v1513, %v1529
    %1533 = vrot.lane.b32.xlu0 %v1433, 64
    %v1534 = vpop.permute.xlu0 %1533
    %1536 = vst.msk [vmem:[#allocation4 + $0x28] sm:$0xff] %vm307, %v1534
    %1538 = vrot.lane.b32.xlu0 %v1531, 64
    %v1539 = vpop.permute.xlu0 %1538
    %1541 = vst.msk [vmem:[#allocation5 + $0x10] sm:$0xff] %vm307, %v1539
    %v1542 = vld [vmem:[#allocation2 + $0x30] sm:$0xff]
    %v1543 = vsel %vm307, %v1534, 0
    %1545 = vmatprep.subr.mxu0 0.0
    %1546 = vmatpush1.msra.mxu0 %v298
    %1547 = vmatprep.subr.mxu0 0.0
    %1548 = vmatpush1.msra.mxu0 %v299
    %1549 = vmatprep.subr.mxu0 0.0
    %1550 = vmatpush1.msra.mxu0 %v300
    %1551 = vmatprep.subr.mxu0 0.0
    %1552 = vmatpush1.msra.mxu0 %v301
    %1553 = vmatprep.subr.mxu0 0.0
    %1554 = vmatpush1.msra.mxu0 0.0
    %1555 = vmatprep.subr.mxu0 0.0
    %1556 = vmatpush1.msra.mxu0 0.0
    %1557 = vmatprep.subr.mxu0 0.0
    %1558 = vmatpush1.msra.mxu0 0.0
    %1559 = vmatprep.subr.mxu0 0.0
    %1560 = vmatpush1.msra.mxu0 0.0
    %1561 = vmatprep.subr.mxu0 0.0
    %1562 = vmatpush1.msra.mxu0 0.0
    %1563 = vmatprep.subr.mxu0 0.0
    %1564 = vmatpush1.msra.mxu0 0.0
    %1565 = vmatprep.subr.mxu0 0.0
    %1566 = vmatpush1.msra.mxu0 0.0
    %1567 = vmatprep.subr.mxu0 0.0
    %1568 = vmatpush1.msra.mxu0 0.0
    %1569 = vmatprep.subr.mxu0 0.0
    %1570 = vmatpush1.msra.mxu0 0.0
    %1571 = vmatprep.subr.mxu0 0.0
    %1572 = vmatpush1.msra.mxu0 0.0
    %1573 = vmatprep.subr.mxu0 0.0
    %1574 = vmatpush1.msra.mxu0 0.0
    %1575 = vmatprep.subr.mxu0 0.0
    %1576 = vmatpush1.msra.mxu0 0.0
    %1577 = vmatprep.subr.mxu0 0.0
    %1578 = vmatpush1.msra.mxu0 0.0
    %1579 = vmatprep.subr.mxu0 0.0
    %1580 = vmatpush1.msra.mxu0 0.0
    %1581 = vmatprep.subr.mxu0 0.0
    %1582 = vmatpush1.msra.mxu0 0.0
    %1583 = vmatprep.subr.mxu0 0.0
    %1584 = vmatpush1.msra.mxu0 0.0
    %1585 = vmatprep.subr.mxu0 0.0
    %1586 = vmatpush1.msra.mxu0 0.0
    %1587 = vmatprep.subr.mxu0 0.0
    %1588 = vmatpush1.msra.mxu0 0.0
    %1589 = vmatprep.subr.mxu0 0.0
    %1590 = vmatpush1.msra.mxu0 0.0
    %1591 = vmatprep.subr.mxu0 0.0
    %1592 = vmatpush1.msra.mxu0 0.0
    %1593 = vmatprep.subr.mxu0 0.0
    %1594 = vmatpush1.msra.mxu0 0.0
    %1595 = vmatprep.subr.mxu0 0.0
    %1596 = vmatpush1.msra.mxu0 0.0
    %1597 = vmatprep.subr.mxu0 0.0
    %1598 = vmatpush1.msra.mxu0 0.0
    %1599 = vmatprep.subr.mxu0 0.0
    %1600 = vmatpush1.msra.mxu0 0.0
    %1601 = vmatprep.subr.mxu0 0.0
    %1602 = vmatpush1.msra.mxu0 0.0
    %1603 = vmatprep.subr.mxu0 0.0
    %1604 = vmatpush1.msra.mxu0 0.0
    %1605 = vmatprep.subr.mxu0 0.0
    %1606 = vmatpush1.msra.mxu0 0.0
    %1607 = vmatprep.subr.mxu0 0.0
    %1608 = vmatpush1.msra.mxu0 0.0
    %1609 = vmatprep.mubr.f32.mxu0 0.0
    %1610 = vmatmul.mubr.f32.gmra.mrb[0].mxu0 %v1543
    %v1611 = vpop.f32.mrb[0].mxu0
    %v1612 = vadd.f32 0.0, %v1611
    %v1613 = vpop.f32.mrb[0].mxu0
    %1614 = vdwg.mxu0
    %v1615 = vadd.f32 %v1542, %v1612
    %v1616 = vxor.u32 %v1615, 2147483648
    %v1617 = vmul.f32 %v1616, 1.442695
    %v1618 = vpow.pop %v1617
    %v1619 = vadd.f32 %v1618, 1.0
    %v1620 = vrcp.pop %v1619
    %v1621 = vmul.f32 1.0, %v1620
    %v1622 = vtanh.pop %v1615
    %v1623 = vmul.f32 %v1621, %v1427
    %1625 = vrot.lane.b32.xlu0 %v1622, 32
    %v1626 = vpop.permute.xlu0 %1625
    %v1628 = vmul.f32 %v1621, %v1626
    %1630 = vrot.lane.b32.xlu0 %v1628, 32
    %v1631 = vpop.permute.xlu0 %1630
    %v1633 = vadd.f32 %v1623, %v1631
    %v1634 = vtanh.pop %v1633
    %1636 = vrot.lane.b32.xlu0 %v1634, 32
    %v1637 = vpop.permute.xlu0 %1636
    %v1639 = vmul.f32 %v1621, %v1637
    %v1640 = vld [vmem:[#allocation3 + $0x8] sm:$0xff]
    %v1641 = vsel %vm307, %v1539, 0
    %1643 = vmatprep.subr.mxu0 0.0
    %1644 = vmatpush1.msra.mxu0 %v302
    %1645 = vmatprep.subr.mxu0 0.0
    %1646 = vmatpush1.msra.mxu0 %v303
    %1647 = vmatprep.subr.mxu0 0.0
    %1648 = vmatpush1.msra.mxu0 %v304
    %1649 = vmatprep.subr.mxu0 0.0
    %1650 = vmatpush1.msra.mxu0 %v305
    %1651 = vmatprep.subr.mxu0 0.0
    %1652 = vmatpush1.msra.mxu0 0.0
    %1653 = vmatprep.subr.mxu0 0.0
    %1654 = vmatpush1.msra.mxu0 0.0
    %1655 = vmatprep.subr.mxu0 0.0
    %1656 = vmatpush1.msra.mxu0 0.0
    %1657 = vmatprep.subr.mxu0 0.0
    %1658 = vmatpush1.msra.mxu0 0.0
    %1659 = vmatprep.subr.mxu0 0.0
    %1660 = vmatpush1.msra.mxu0 0.0
    %1661 = vmatprep.subr.mxu0 0.0
    %1662 = vmatpush1.msra.mxu0 0.0
    %1663 = vmatprep.subr.mxu0 0.0
    %1664 = vmatpush1.msra.mxu0 0.0
    %1665 = vmatprep.subr.mxu0 0.0
    %1666 = vmatpush1.msra.mxu0 0.0
    %1667 = vmatprep.subr.mxu0 0.0
    %1668 = vmatpush1.msra.mxu0 0.0
    %1669 = vmatprep.subr.mxu0 0.0
    %1670 = vmatpush1.msra.mxu0 0.0
    %1671 = vmatprep.subr.mxu0 0.0
    %1672 = vmatpush1.msra.mxu0 0.0
    %1673 = vmatprep.subr.mxu0 0.0
    %1674 = vmatpush1.msra.mxu0 0.0
    %1675 = vmatprep.subr.mxu0 0.0
    %1676 = vmatpush1.msra.mxu0 0.0
    %1677 = vmatprep.subr.mxu0 0.0
    %1678 = vmatpush1.msra.mxu0 0.0
    %1679 = vmatprep.subr.mxu0 0.0
    %1680 = vmatpush1.msra.mxu0 0.0
    %1681 = vmatprep.subr.mxu0 0.0
    %1682 = vmatpush1.msra.mxu0 0.0
    %1683 = vmatprep.subr.mxu0 0.0
    %1684 = vmatpush1.msra.mxu0 0.0
    %1685 = vmatprep.subr.mxu0 0.0
    %1686 = vmatpush1.msra.mxu0 0.0
    %1687 = vmatprep.subr.mxu0 0.0
    %1688 = vmatpush1.msra.mxu0 0.0
    %1689 = vmatprep.subr.mxu0 0.0
    %1690 = vmatpush1.msra.mxu0 0.0
    %1691 = vmatprep.subr.mxu0 0.0
    %1692 = vmatpush1.msra.mxu0 0.0
    %1693 = vmatprep.subr.mxu0 0.0
    %1694 = vmatpush1.msra.mxu0 0.0
    %1695 = vmatprep.subr.mxu0 0.0
    %1696 = vmatpush1.msra.mxu0 0.0
    %1697 = vmatprep.subr.mxu0 0.0
    %1698 = vmatpush1.msra.mxu0 0.0
    %1699 = vmatprep.subr.mxu0 0.0
    %1700 = vmatpush1.msra.mxu0 0.0
    %1701 = vmatprep.subr.mxu0 0.0
    %1702 = vmatpush1.msra.mxu0 0.0
    %1703 = vmatprep.subr.mxu0 0.0
    %1704 = vmatpush1.msra.mxu0 0.0
    %1705 = vmatprep.subr.mxu0 0.0
    %1706 = vmatpush1.msra.mxu0 0.0
    %1707 = vmatprep.mubr.f32.mxu0 0.0
    %1708 = vmatmul.mubr.f32.gmra.mrb[0].mxu0 %v1641
    %v1709 = vpop.f32.mrb[0].mxu0
    %v1710 = vadd.f32 0.0, %v1709
    %v1711 = vpop.f32.mrb[0].mxu0
    %1712 = vdwg.mxu0
    %v1713 = vadd.f32 %v1640, %v1710
    %v1714 = vxor.u32 %v1713, 2147483648
    %v1715 = vmul.f32 %v1714, 1.442695
    %v1716 = vpow.pop %v1715
    %v1717 = vadd.f32 %v1716, 1.0
    %v1718 = vrcp.pop %v1717
    %v1719 = vmul.f32 1.0, %v1718
    %v1720 = vtanh.pop %v1713
    %v1721 = vmul.f32 %v1719, %v1525
    %1723 = vrot.lane.b32.xlu0 %v1720, 32
    %v1724 = vpop.permute.xlu0 %1723
    %v1726 = vmul.f32 %v1719, %v1724
    %1728 = vrot.lane.b32.xlu0 %v1726, 32
    %v1729 = vpop.permute.xlu0 %1728
    %v1731 = vadd.f32 %v1721, %v1729
    %v1732 = vtanh.pop %v1731
    %1734 = vrot.lane.b32.xlu0 %v1732, 32
    %v1735 = vpop.permute.xlu0 %1734
    %v1737 = vmul.f32 %v1719, %v1735
    %1739 = vrot.lane.b32.xlu0 %v1639, 64
    %v1740 = vpop.permute.xlu0 %1739
    %1742 = vst.msk [vmem:[#allocation4 + $0x30] sm:$0xff] %vm307, %v1740
    %1744 = vrot.lane.b32.xlu0 %v1737, 64
    %v1745 = vpop.permute.xlu0 %1744
    %1747 = vst.msk [vmem:[#allocation5 + $0x8] sm:$0xff] %vm307, %v1745
    %v1748 = vld [vmem:[#allocation2 + $0x38] sm:$0xff]
    %v1749 = vsel %vm307, %v1740, 0
    %1751 = vmatprep.subr.mxu0 0.0
    %1752 = vmatpush1.msra.mxu0 %v298
    %1753 = vmatprep.subr.mxu0 0.0
    %1754 = vmatpush1.msra.mxu0 %v299
    %1755 = vmatprep.subr.mxu0 0.0
    %1756 = vmatpush1.msra.mxu0 %v300
    %1757 = vmatprep.subr.mxu0 0.0
    %1758 = vmatpush1.msra.mxu0 %v301
    %1759 = vmatprep.subr.mxu0 0.0
    %1760 = vmatpush1.msra.mxu0 0.0
    %1761 = vmatprep.subr.mxu0 0.0
    %1762 = vmatpush1.msra.mxu0 0.0
    %1763 = vmatprep.subr.mxu0 0.0
    %1764 = vmatpush1.msra.mxu0 0.0
    %1765 = vmatprep.subr.mxu0 0.0
    %1766 = vmatpush1.msra.mxu0 0.0
    %1767 = vmatprep.subr.mxu0 0.0
    %1768 = vmatpush1.msra.mxu0 0.0
    %1769 = vmatprep.subr.mxu0 0.0
    %1770 = vmatpush1.msra.mxu0 0.0
    %1771 = vmatprep.subr.mxu0 0.0
    %1772 = vmatpush1.msra.mxu0 0.0
    %1773 = vmatprep.subr.mxu0 0.0
    %1774 = vmatpush1.msra.mxu0 0.0
    %1775 = vmatprep.subr.mxu0 0.0
    %1776 = vmatpush1.msra.mxu0 0.0
    %1777 = vmatprep.subr.mxu0 0.0
    %1778 = vmatpush1.msra.mxu0 0.0
    %1779 = vmatprep.subr.mxu0 0.0
    %1780 = vmatpush1.msra.mxu0 0.0
    %1781 = vmatprep.subr.mxu0 0.0
    %1782 = vmatpush1.msra.mxu0 0.0
    %1783 = vmatprep.subr.mxu0 0.0
    %1784 = vmatpush1.msra.mxu0 0.0
    %1785 = vmatprep.subr.mxu0 0.0
    %1786 = vmatpush1.msra.mxu0 0.0
    %1787 = vmatprep.subr.mxu0 0.0
    %1788 = vmatpush1.msra.mxu0 0.0
    %1789 = vmatprep.subr.mxu0 0.0
    %1790 = vmatpush1.msra.mxu0 0.0
    %1791 = vmatprep.subr.mxu0 0.0
    %1792 = vmatpush1.msra.mxu0 0.0
    %1793 = vmatprep.subr.mxu0 0.0
    %1794 = vmatpush1.msra.mxu0 0.0
    %1795 = vmatprep.subr.mxu0 0.0
    %1796 = vmatpush1.msra.mxu0 0.0
    %1797 = vmatprep.subr.mxu0 0.0
    %1798 = vmatpush1.msra.mxu0 0.0
    %1799 = vmatprep.subr.mxu0 0.0
    %1800 = vmatpush1.msra.mxu0 0.0
    %1801 = vmatprep.subr.mxu0 0.0
    %1802 = vmatpush1.msra.mxu0 0.0
    %1803 = vmatprep.subr.mxu0 0.0
    %1804 = vmatpush1.msra.mxu0 0.0
    %1805 = vmatprep.subr.mxu0 0.0
    %1806 = vmatpush1.msra.mxu0 0.0
    %1807 = vmatprep.subr.mxu0 0.0
    %1808 = vmatpush1.msra.mxu0 0.0
    %1809 = vmatprep.subr.mxu0 0.0
    %1810 = vmatpush1.msra.mxu0 0.0
    %1811 = vmatprep.subr.mxu0 0.0
    %1812 = vmatpush1.msra.mxu0 0.0
    %1813 = vmatprep.subr.mxu0 0.0
    %1814 = vmatpush1.msra.mxu0 0.0
    %1815 = vmatprep.mubr.f32.mxu0 0.0
    %1816 = vmatmul.mubr.f32.gmra.mrb[0].mxu0 %v1749
    %v1817 = vpop.f32.mrb[0].mxu0
    %v1818 = vadd.f32 0.0, %v1817
    %v1819 = vpop.f32.mrb[0].mxu0
    %1820 = vdwg.mxu0
    %v1821 = vadd.f32 %v1748, %v1818
    %v1822 = vxor.u32 %v1821, 2147483648
    %v1823 = vmul.f32 %v1822, 1.442695
    %v1824 = vpow.pop %v1823
    %v1825 = vadd.f32 %v1824, 1.0
    %v1826 = vrcp.pop %v1825
    %v1827 = vmul.f32 1.0, %v1826
    %v1828 = vtanh.pop %v1821
    %v1829 = vmul.f32 %v1827, %v1633
    %1831 = vrot.lane.b32.xlu0 %v1828, 32
    %v1832 = vpop.permute.xlu0 %1831
    %v1834 = vmul.f32 %v1827, %v1832
    %1836 = vrot.lane.b32.xlu0 %v1834, 32
    %v1837 = vpop.permute.xlu0 %1836
    %v1839 = vadd.f32 %v1829, %v1837
    %v1840 = vtanh.pop %v1839
    %1842 = vrot.lane.b32.xlu0 %v1840, 32
    %v1843 = vpop.permute.xlu0 %1842
    %v1845 = vmul.f32 %v1827, %v1843
    %v1846 = vld [vmem:[#allocation3] sm:$0xff]
    %v1847 = vsel %vm307, %v1745, 0
    %1849 = vmatprep.subr.mxu0 0.0
    %1850 = vmatpush1.msra.mxu0 %v302
    %1851 = vmatprep.subr.mxu0 0.0
    %1852 = vmatpush1.msra.mxu0 %v303
    %1853 = vmatprep.subr.mxu0 0.0
    %1854 = vmatpush1.msra.mxu0 %v304
    %1855 = vmatprep.subr.mxu0 0.0
    %1856 = vmatpush1.msra.mxu0 %v305
    %1857 = vmatprep.subr.mxu0 0.0
    %1858 = vmatpush1.msra.mxu0 0.0
    %1859 = vmatprep.subr.mxu0 0.0
    %1860 = vmatpush1.msra.mxu0 0.0
    %1861 = vmatprep.subr.mxu0 0.0
    %1862 = vmatpush1.msra.mxu0 0.0
    %1863 = vmatprep.subr.mxu0 0.0
    %1864 = vmatpush1.msra.mxu0 0.0
    %1865 = vmatprep.subr.mxu0 0.0
    %1866 = vmatpush1.msra.mxu0 0.0
    %1867 = vmatprep.subr.mxu0 0.0
    %1868 = vmatpush1.msra.mxu0 0.0
    %1869 = vmatprep.subr.mxu0 0.0
    %1870 = vmatpush1.msra.mxu0 0.0
    %1871 = vmatprep.subr.mxu0 0.0
    %1872 = vmatpush1.msra.mxu0 0.0
    %1873 = vmatprep.subr.mxu0 0.0
    %1874 = vmatpush1.msra.mxu0 0.0
    %1875 = vmatprep.subr.mxu0 0.0
    %1876 = vmatpush1.msra.mxu0 0.0
    %1877 = vmatprep.subr.mxu0 0.0
    %1878 = vmatpush1.msra.mxu0 0.0
    %1879 = vmatprep.subr.mxu0 0.0
    %1880 = vmatpush1.msra.mxu0 0.0
    %1881 = vmatprep.subr.mxu0 0.0
    %1882 = vmatpush1.msra.mxu0 0.0
    %1883 = vmatprep.subr.mxu0 0.0
    %1884 = vmatpush1.msra.mxu0 0.0
    %1885 = vmatprep.subr.mxu0 0.0
    %1886 = vmatpush1.msra.mxu0 0.0
    %1887 = vmatprep.subr.mxu0 0.0
    %1888 = vmatpush1.msra.mxu0 0.0
    %1889 = vmatprep.subr.mxu0 0.0
    %1890 = vmatpush1.msra.mxu0 0.0
    %1891 = vmatprep.subr.mxu0 0.0
    %1892 = vmatpush1.msra.mxu0 0.0
    %1893 = vmatprep.subr.mxu0 0.0
    %1894 = vmatpush1.msra.mxu0 0.0
    %1895 = vmatprep.subr.mxu0 0.0
    %1896 = vmatpush1.msra.mxu0 0.0
    %1897 = vmatprep.subr.mxu0 0.0
    %1898 = vmatpush1.msra.mxu0 0.0
    %1899 = vmatprep.subr.mxu0 0.0
    %1900 = vmatpush1.msra.mxu0 0.0
    %1901 = vmatprep.subr.mxu0 0.0
    %1902 = vmatpush1.msra.mxu0 0.0
    %1903 = vmatprep.subr.mxu0 0.0
    %1904 = vmatpush1.msra.mxu0 0.0
    %1905 = vmatprep.subr.mxu0 0.0
    %1906 = vmatpush1.msra.mxu0 0.0
    %1907 = vmatprep.subr.mxu0 0.0
    %1908 = vmatpush1.msra.mxu0 0.0
    %1909 = vmatprep.subr.mxu0 0.0
    %1910 = vmatpush1.msra.mxu0 0.0
    %1911 = vmatprep.subr.mxu0 0.0
    %1912 = vmatpush1.msra.mxu0 0.0
    %1913 = vmatprep.mubr.f32.mxu0 0.0
    %1914 = vmatmul.mubr.f32.gmra.mrb[0].mxu0 %v1847
    %v1915 = vpop.f32.mrb[0].mxu0
    %v1916 = vadd.f32 0.0, %v1915
    %v1917 = vpop.f32.mrb[0].mxu0
    %1918 = vdwg.mxu0
    %v1919 = vadd.f32 %v1846, %v1916
    %v1920 = vxor.u32 %v1919, 2147483648
    %v1921 = vmul.f32 %v1920, 1.442695
    %v1922 = vpow.pop %v1921
    %v1923 = vadd.f32 %v1922, 1.0
    %v1924 = vrcp.pop %v1923
    %v1925 = vmul.f32 1.0, %v1924
    %v1926 = vtanh.pop %v1919
    %v1927 = vmul.f32 %v1925, %v1731
    %1929 = vrot.lane.b32.xlu0 %v1926, 32
    %v1930 = vpop.permute.xlu0 %1929
    %v1932 = vmul.f32 %v1925, %v1930
    %1934 = vrot.lane.b32.xlu0 %v1932, 32
    %v1935 = vpop.permute.xlu0 %1934
    %v1937 = vadd.f32 %v1927, %v1935
    %v1938 = vtanh.pop %v1937
    %1940 = vrot.lane.b32.xlu0 %v1938, 32
    %v1941 = vpop.permute.xlu0 %1940
    %v1943 = vmul.f32 %v1925, %v1941
    %1945 = vrot.lane.b32.xlu0 %v1845, 64
    %v1946 = vpop.permute.xlu0 %1945
    %1948 = vst.msk [vmem:[#allocation4 + $0x38] sm:$0xff] %vm307, %v1946
    %1950 = vrot.lane.b32.xlu0 %v1943, 64
    %v1951 = vpop.permute.xlu0 %1950
    %1953 = vst.msk [vmem:[#allocation5] sm:$0xff] %vm307, %v1951
    %v1954 = vld [vmem:[#allocation4] sm:$0xff]
    %v1955 = vld [vmem:[#allocation4 + $0x8] sm:$0xff]
    %v1956 = vld [vmem:[#allocation4 + $0x10] sm:$0xff]
    %v1957 = vld [vmem:[#allocation4 + $0x18] sm:$0xff]
    %v1958 = vld [vmem:[#allocation4 + $0x20] sm:$0xff]
    %v1959 = vld [vmem:[#allocation4 + $0x28] sm:$0xff]
    %v1960 = vld [vmem:[#allocation4 + $0x30] sm:$0xff]
    %v1961 = vld [vmem:[#allocation4 + $0x38] sm:$0xff]
    %v1962 = vld [vmem:[#allocation5] sm:$0xff]
    %v1963 = vld [vmem:[#allocation5 + $0x8] sm:$0xff]
    %v1964 = vld [vmem:[#allocation5 + $0x10] sm:$0xff]
    %v1965 = vld [vmem:[#allocation5 + $0x18] sm:$0xff]
    %v1966 = vld [vmem:[#allocation5 + $0x20] sm:$0xff]
    %v1967 = vld [vmem:[#allocation5 + $0x28] sm:$0xff]
    %v1968 = vld [vmem:[#allocation5 + $0x30] sm:$0xff]
    %v1969 = vld [vmem:[#allocation5 + $0x38] sm:$0xff]
    %v1970 = vld [vmem:[#allocation6 + $0x70] sm:$0xff]
    %v1971 = vld [vmem:[#allocation6 + $0x78] sm:$0xff]
    %v1972 = vld [vmem:[#allocation6 + $0x80] sm:$0xff]
    %v1973 = vld [vmem:[#allocation6 + $0x88] sm:$0xff]
    %v1974 = vld [vmem:[#allocation6 + $0x90] sm:$0xff]
    %v1975 = vld [vmem:[#allocation6 + $0x98] sm:$0xff]
    %v1976 = vld [vmem:[#allocation6 + $0xa0] sm:$0xff]
    %v1977 = vld [vmem:[#allocation6 + $0xa8] sm:$0xff]
    %v1979 = vsel %vm307, %v1962, 0
    %v1982 = vsel %vm307, %v1963, 0
    %v1985 = vsel %vm307, %v1964, 0
    %v1988 = vsel %vm307, %v1965, 0
    %v1991 = vsel %vm307, %v1966, 0
    %v1994 = vsel %vm307, %v1967, 0
    %v1997 = vsel %vm307, %v1968, 0
    %v2000 = vsel %vm307, %v1969, 0
    %2002 = vmatprep.subr.mxu0 0.0
    %2003 = vmatpush1.msra.mxu0 %v1974
    %2004 = vmatprep.subr.mxu0 0.0
    %2005 = vmatpush1.msra.mxu0 %v1975
    %2006 = vmatprep.subr.mxu0 0.0
    %2007 = vmatpush1.msra.mxu0 %v1976
    %2008 = vmatprep.subr.mxu0 0.0
    %2009 = vmatpush1.msra.mxu0 %v1977
    %2010 = vmatprep.subr.mxu0 0.0
    %2011 = vmatpush1.msra.mxu0 0.0
    %2012 = vmatprep.subr.mxu0 0.0
    %2013 = vmatpush1.msra.mxu0 0.0
    %2014 = vmatprep.subr.mxu0 0.0
    %2015 = vmatpush1.msra.mxu0 0.0
    %2016 = vmatprep.subr.mxu0 0.0
    %2017 = vmatpush1.msra.mxu0 0.0
    %2018 = vmatprep.subr.mxu0 0.0
    %2019 = vmatpush1.msra.mxu0 0.0
    %2020 = vmatprep.subr.mxu0 0.0
    %2021 = vmatpush1.msra.mxu0 0.0
    %2022 = vmatprep.subr.mxu0 0.0
    %2023 = vmatpush1.msra.mxu0 0.0
    %2024 = vmatprep.subr.mxu0 0.0
    %2025 = vmatpush1.msra.mxu0 0.0
    %2026 = vmatprep.subr.mxu0 0.0
    %2027 = vmatpush1.msra.mxu0 0.0
    %2028 = vmatprep.subr.mxu0 0.0
    %2029 = vmatpush1.msra.mxu0 0.0
    %2030 = vmatprep.subr.mxu0 0.0
    %2031 = vmatpush1.msra.mxu0 0.0
    %2032 = vmatprep.subr.mxu0 0.0
    %2033 = vmatpush1.msra.mxu0 0.0
    %2034 = vmatprep.subr.mxu0 0.0
    %2035 = vmatpush1.msra.mxu0 0.0
    %2036 = vmatprep.subr.mxu0 0.0
    %2037 = vmatpush1.msra.mxu0 0.0
    %2038 = vmatprep.subr.mxu0 0.0
    %2039 = vmatpush1.msra.mxu0 0.0
    %2040 = vmatprep.subr.mxu0 0.0
    %2041 = vmatpush1.msra.mxu0 0.0
    %2042 = vmatprep.subr.mxu0 0.0
    %2043 = vmatpush1.msra.mxu0 0.0
    %2044 = vmatprep.subr.mxu0 0.0
    %2045 = vmatpush1.msra.mxu0 0.0
    %2046 = vmatprep.subr.mxu0 0.0
    %2047 = vmatpush1.msra.mxu0 0.0
    %2048 = vmatprep.subr.mxu0 0.0
    %2049 = vmatpush1.msra.mxu0 0.0
    %2050 = vmatprep.subr.mxu0 0.0
    %2051 = vmatpush1.msra.mxu0 0.0
    %2052 = vmatprep.subr.mxu0 0.0
    %2053 = vmatpush1.msra.mxu0 0.0
    %2054 = vmatprep.subr.mxu0 0.0
    %2055 = vmatpush1.msra.mxu0 0.0
    %2056 = vmatprep.subr.mxu0 0.0
    %2057 = vmatpush1.msra.mxu0 0.0
    %2058 = vmatprep.subr.mxu0 0.0
    %2059 = vmatpush1.msra.mxu0 0.0
    %2060 = vmatprep.subr.mxu0 0.0
    %2061 = vmatpush1.msra.mxu0 0.0
    %2062 = vmatprep.subr.mxu0 0.0
    %2063 = vmatpush1.msra.mxu0 0.0
    %2064 = vmatprep.subr.mxu0 0.0
    %2065 = vmatpush1.msra.mxu0 0.0
    %2066 = vmatprep.mubr.f32.mxu0 0.0
    %2067 = vmatmul.mubr.f32.gmra.mrb[0].mxu0 %v1979
    %v2068 = vpop.f32.mrb[0].mxu0
    %v2069 = vadd.f32 0.0, %v2068
    %v2070 = vpop.f32.mrb[0].mxu0
    %2071 = vmatprep.mubr.f32.mxu0 0.0
    %2072 = vmatmul.mubr.f32.gmra.mrb[0].mxu0 %v1982
    %v2073 = vpop.f32.mrb[0].mxu0
    %v2074 = vadd.f32 0.0, %v2073
    %v2075 = vpop.f32.mrb[0].mxu0
    %2076 = vmatprep.mubr.f32.mxu0 0.0
    %2077 = vmatmul.mubr.f32.gmra.mrb[0].mxu0 %v1985
    %v2078 = vpop.f32.mrb[0].mxu0
    %v2079 = vadd.f32 0.0, %v2078
    %v2080 = vpop.f32.mrb[0].mxu0
    %2081 = vmatprep.mubr.f32.mxu0 0.0
    %2082 = vmatmul.mubr.f32.gmra.mrb[0].mxu0 %v1988
    %v2083 = vpop.f32.mrb[0].mxu0
    %v2084 = vadd.f32 0.0, %v2083
    %v2085 = vpop.f32.mrb[0].mxu0
    %2086 = vmatprep.mubr.f32.mxu0 0.0
    %2087 = vmatmul.mubr.f32.gmra.mrb[0].mxu0 %v1991
    %v2088 = vpop.f32.mrb[0].mxu0
    %v2089 = vadd.f32 0.0, %v2088
    %v2090 = vpop.f32.mrb[0].mxu0
    %2091 = vmatprep.mubr.f32.mxu0 0.0
    %2092 = vmatmul.mubr.f32.gmra.mrb[0].mxu0 %v1994
    %v2093 = vpop.f32.mrb[0].mxu0
    %v2094 = vadd.f32 0.0, %v2093
    %v2095 = vpop.f32.mrb[0].mxu0
    %2096 = vmatprep.mubr.f32.mxu0 0.0
    %2097 = vmatmul.mubr.f32.gmra.mrb[0].mxu0 %v1997
    %v2098 = vpop.f32.mrb[0].mxu0
    %v2099 = vadd.f32 0.0, %v2098
    %v2100 = vpop.f32.mrb[0].mxu0
    %2101 = vmatprep.mubr.f32.mxu0 0.0
    %2102 = vmatmul.mubr.f32.gmra.mrb[0].mxu0 %v2000
    %v2103 = vpop.f32.mrb[0].mxu0
    %v2104 = vadd.f32 0.0, %v2103
    %v2105 = vpop.f32.mrb[0].mxu0
    %2106 = vdwg.mxu0
    %v2108 = vsel %vm307, %v1954, 0
    %v2111 = vsel %vm307, %v1955, 0
    %v2114 = vsel %vm307, %v1956, 0
    %v2117 = vsel %vm307, %v1957, 0
    %v2120 = vsel %vm307, %v1958, 0
    %v2123 = vsel %vm307, %v1959, 0
    %v2126 = vsel %vm307, %v1960, 0
    %v2129 = vsel %vm307, %v1961, 0
    %2131 = vmatprep.subr.mxu0 0.0
    %2132 = vmatpush1.msra.mxu0 %v1970
    %2133 = vmatprep.subr.mxu0 0.0
    %2134 = vmatpush1.msra.mxu0 %v1971
    %2135 = vmatprep.subr.mxu0 0.0
    %2136 = vmatpush1.msra.mxu0 %v1972
    %2137 = vmatprep.subr.mxu0 0.0
    %2138 = vmatpush1.msra.mxu0 %v1973
    %2139 = vmatprep.subr.mxu0 0.0
    %2140 = vmatpush1.msra.mxu0 0.0
    %2141 = vmatprep.subr.mxu0 0.0
    %2142 = vmatpush1.msra.mxu0 0.0
    %2143 = vmatprep.subr.mxu0 0.0
    %2144 = vmatpush1.msra.mxu0 0.0
    %2145 = vmatprep.subr.mxu0 0.0
    %2146 = vmatpush1.msra.mxu0 0.0
    %2147 = vmatprep.subr.mxu0 0.0
    %2148 = vmatpush1.msra.mxu0 0.0
    %2149 = vmatprep.subr.mxu0 0.0
    %2150 = vmatpush1.msra.mxu0 0.0
    %2151 = vmatprep.subr.mxu0 0.0
    %2152 = vmatpush1.msra.mxu0 0.0
    %2153 = vmatprep.subr.mxu0 0.0
    %2154 = vmatpush1.msra.mxu0 0.0
    %2155 = vmatprep.subr.mxu0 0.0
    %2156 = vmatpush1.msra.mxu0 0.0
    %2157 = vmatprep.subr.mxu0 0.0
    %2158 = vmatpush1.msra.mxu0 0.0
    %2159 = vmatprep.subr.mxu0 0.0
    %2160 = vmatpush1.msra.mxu0 0.0
    %2161 = vmatprep.subr.mxu0 0.0
    %2162 = vmatpush1.msra.mxu0 0.0
    %2163 = vmatprep.subr.mxu0 0.0
    %2164 = vmatpush1.msra.mxu0 0.0
    %2165 = vmatprep.subr.mxu0 0.0
    %2166 = vmatpush1.msra.mxu0 0.0
    %2167 = vmatprep.subr.mxu0 0.0
    %2168 = vmatpush1.msra.mxu0 0.0
    %2169 = vmatprep.subr.mxu0 0.0
    %2170 = vmatpush1.msra.mxu0 0.0
    %2171 = vmatprep.subr.mxu0 0.0
    %2172 = vmatpush1.msra.mxu0 0.0
    %2173 = vmatprep.subr.mxu0 0.0
    %2174 = vmatpush1.msra.mxu0 0.0
    %2175 = vmatprep.subr.mxu0 0.0
    %2176 = vmatpush1.msra.mxu0 0.0
    %2177 = vmatprep.subr.mxu0 0.0
    %2178 = vmatpush1.msra.mxu0 0.0
    %2179 = vmatprep.subr.mxu0 0.0
    %2180 = vmatpush1.msra.mxu0 0.0
    %2181 = vmatprep.subr.mxu0 0.0
    %2182 = vmatpush1.msra.mxu0 0.0
    %2183 = vmatprep.subr.mxu0 0.0
    %2184 = vmatpush1.msra.mxu0 0.0
    %2185 = vmatprep.subr.mxu0 0.0
    %2186 = vmatpush1.msra.mxu0 0.0
    %2187 = vmatprep.subr.mxu0 0.0
    %2188 = vmatpush1.msra.mxu0 0.0
    %2189 = vmatprep.subr.mxu0 0.0
    %2190 = vmatpush1.msra.mxu0 0.0
    %2191 = vmatprep.subr.mxu0 0.0
    %2192 = vmatpush1.msra.mxu0 0.0
    %2193 = vmatprep.subr.mxu0 0.0
    %2194 = vmatpush1.msra.mxu0 0.0
    %2195 = vmatprep.mubr.f32.mxu0 0.0
    %2196 = vmatmul.mubr.f32.gmra.mrb[0].mxu0 %v2108
    %v2197 = vpop.f32.mrb[0].mxu0
    %v2198 = vadd.f32 %v2069, %v2197
    %v2199 = vpop.f32.mrb[0].mxu0
    %2200 = vmatprep.mubr.f32.mxu0 0.0
    %2201 = vmatmul.mubr.f32.gmra.mrb[0].mxu0 %v2111
    %v2202 = vpop.f32.mrb[0].mxu0
    %v2203 = vadd.f32 %v2074, %v2202
    %v2204 = vpop.f32.mrb[0].mxu0
    %2205 = vmatprep.mubr.f32.mxu0 0.0
    %2206 = vmatmul.mubr.f32.gmra.mrb[0].mxu0 %v2114
    %v2207 = vpop.f32.mrb[0].mxu0
    %v2208 = vadd.f32 %v2079, %v2207
    %v2209 = vpop.f32.mrb[0].mxu0
    %2210 = vmatprep.mubr.f32.mxu0 0.0
    %2211 = vmatmul.mubr.f32.gmra.mrb[0].mxu0 %v2117
    %v2212 = vpop.f32.mrb[0].mxu0
    %v2213 = vadd.f32 %v2084, %v2212
    %v2214 = vpop.f32.mrb[0].mxu0
    %2215 = vmatprep.mubr.f32.mxu0 0.0
    %2216 = vmatmul.mubr.f32.gmra.mrb[0].mxu0 %v2120
    %v2217 = vpop.f32.mrb[0].mxu0
    %v2218 = vadd.f32 %v2089, %v2217
    %v2219 = vpop.f32.mrb[0].mxu0
    %2220 = vmatprep.mubr.f32.mxu0 0.0
    %2221 = vmatmul.mubr.f32.gmra.mrb[0].mxu0 %v2123
    %v2222 = vpop.f32.mrb[0].mxu0
    %v2223 = vadd.f32 %v2094, %v2222
    %v2224 = vpop.f32.mrb[0].mxu0
    %2225 = vmatprep.mubr.f32.mxu0 0.0
    %2226 = vmatmul.mubr.f32.gmra.mrb[0].mxu0 %v2126
    %v2227 = vpop.f32.mrb[0].mxu0
    %v2228 = vadd.f32 %v2099, %v2227
    %v2229 = vpop.f32.mrb[0].mxu0
    %2230 = vmatprep.mubr.f32.mxu0 0.0
    %2231 = vmatmul.mubr.f32.gmra.mrb[0].mxu0 %v2129
    %v2232 = vpop.f32.mrb[0].mxu0
    %v2233 = vadd.f32 %v2104, %v2232
    %v2234 = vpop.f32.mrb[0].mxu0
    %2235 = vdwg.mxu0
    %v2236 = vld [vmem:[#allocation6 + $0x130] sm:$0x1]
    %v2237 = vlaneseq
    %v2238 = vshrl.u32 %v2237, 7
    %v2239 = vsub.s32 0, %v2238
    %v2240 = vrot.slane %v2236, %v2239
    %v2241 = vadd.f32 %v2198, %v2240
    %v2242 = vadd.f32 %v2203, %v2240
    %v2243 = vadd.f32 %v2208, %v2240
    %v2244 = vadd.f32 %v2213, %v2240
    %v2245 = vadd.f32 %v2218, %v2240
    %v2246 = vadd.f32 %v2223, %v2240
    %v2247 = vadd.f32 %v2228, %v2240
    %v2248 = vadd.f32 %v2233, %v2240
    %2249 = vst [vmem:[#allocation2] sm:$0xff] %v2241
    %2250 = vst [vmem:[#allocation2 + $0x8] sm:$0xff] %v2242
    %2251 = vst [vmem:[#allocation2 + $0x10] sm:$0xff] %v2243
    %2252 = vst [vmem:[#allocation2 + $0x18] sm:$0xff] %v2244
    %2253 = vst [vmem:[#allocation2 + $0x20] sm:$0xff] %v2245
    %2254 = vst [vmem:[#allocation2 + $0x28] sm:$0xff] %v2246
    %2255 = vst [vmem:[#allocation2 + $0x30] sm:$0xff] %v2247
    %2256 = vst [vmem:[#allocation2 + $0x38] sm:$0xff] %v2248
    %v2257 = vld [vmem:[#allocation6 + $0xb0] sm:$0xff]
    %v2258 = vld [vmem:[#allocation6 + $0xb8] sm:$0xff]
    %v2259 = vld [vmem:[#allocation6 + $0xc0] sm:$0xff]
    %v2260 = vld [vmem:[#allocation6 + $0xc8] sm:$0xff]
    %v2261 = vld [vmem:[#allocation6 + $0xd0] sm:$0xff]
    %v2262 = vld [vmem:[#allocation6 + $0xd8] sm:$0xff]
    %v2263 = vld [vmem:[#allocation6 + $0xe0] sm:$0xff]
    %v2264 = vld [vmem:[#allocation6 + $0xe8] sm:$0xff]
    %2265 = vmatprep.subr.mxu0 0.0
    %2266 = vmatpush1.msra.mxu0 %v2261
    %2267 = vmatprep.subr.mxu0 0.0
    %2268 = vmatpush1.msra.mxu0 %v2262
    %2269 = vmatprep.subr.mxu0 0.0
    %2270 = vmatpush1.msra.mxu0 %v2263
    %2271 = vmatprep.subr.mxu0 0.0
    %2272 = vmatpush1.msra.mxu0 %v2264
    %2273 = vmatprep.subr.mxu0 0.0
    %2274 = vmatpush1.msra.mxu0 0.0
    %2275 = vmatprep.subr.mxu0 0.0
    %2276 = vmatpush1.msra.mxu0 0.0
    %2277 = vmatprep.subr.mxu0 0.0
    %2278 = vmatpush1.msra.mxu0 0.0
    %2279 = vmatprep.subr.mxu0 0.0
    %2280 = vmatpush1.msra.mxu0 0.0
    %2281 = vmatprep.subr.mxu0 0.0
    %2282 = vmatpush1.msra.mxu0 0.0
    %2283 = vmatprep.subr.mxu0 0.0
    %2284 = vmatpush1.msra.mxu0 0.0
    %2285 = vmatprep.subr.mxu0 0.0
    %2286 = vmatpush1.msra.mxu0 0.0
    %2287 = vmatprep.subr.mxu0 0.0
    %2288 = vmatpush1.msra.mxu0 0.0
    %2289 = vmatprep.subr.mxu0 0.0
    %2290 = vmatpush1.msra.mxu0 0.0
    %2291 = vmatprep.subr.mxu0 0.0
    %2292 = vmatpush1.msra.mxu0 0.0
    %2293 = vmatprep.subr.mxu0 0.0
    %2294 = vmatpush1.msra.mxu0 0.0
    %2295 = vmatprep.subr.mxu0 0.0
    %2296 = vmatpush1.msra.mxu0 0.0
    %2297 = vmatprep.subr.mxu0 0.0
    %2298 = vmatpush1.msra.mxu0 0.0
    %2299 = vmatprep.subr.mxu0 0.0
    %2300 = vmatpush1.msra.mxu0 0.0
    %2301 = vmatprep.subr.mxu0 0.0
    %2302 = vmatpush1.msra.mxu0 0.0
    %2303 = vmatprep.subr.mxu0 0.0
    %2304 = vmatpush1.msra.mxu0 0.0
    %2305 = vmatprep.subr.mxu0 0.0
    %2306 = vmatpush1.msra.mxu0 0.0
    %2307 = vmatprep.subr.mxu0 0.0
    %2308 = vmatpush1.msra.mxu0 0.0
    %2309 = vmatprep.subr.mxu0 0.0
    %2310 = vmatpush1.msra.mxu0 0.0
    %2311 = vmatprep.subr.mxu0 0.0
    %2312 = vmatpush1.msra.mxu0 0.0
    %2313 = vmatprep.subr.mxu0 0.0
    %2314 = vmatpush1.msra.mxu0 0.0
    %2315 = vmatprep.subr.mxu0 0.0
    %2316 = vmatpush1.msra.mxu0 0.0
    %2317 = vmatprep.subr.mxu0 0.0
    %2318 = vmatpush1.msra.mxu0 0.0
    %2319 = vmatprep.subr.mxu0 0.0
    %2320 = vmatpush1.msra.mxu0 0.0
    %2321 = vmatprep.subr.mxu0 0.0
    %2322 = vmatpush1.msra.mxu0 0.0
    %2323 = vmatprep.subr.mxu0 0.0
    %2324 = vmatpush1.msra.mxu0 0.0
    %2325 = vmatprep.subr.mxu0 0.0
    %2326 = vmatpush1.msra.mxu0 0.0
    %2327 = vmatprep.subr.mxu0 0.0
    %2328 = vmatpush1.msra.mxu0 0.0
    %2329 = vmatprep.mubr.f32.mxu0 0.0
    %2330 = vmatmul.mubr.f32.gmra.mrb[0].mxu0 %v1979
    %v2331 = vpop.f32.mrb[0].mxu0
    %v2332 = vadd.f32 0.0, %v2331
    %v2333 = vpop.f32.mrb[0].mxu0
    %2334 = vmatprep.mubr.f32.mxu0 0.0
    %2335 = vmatmul.mubr.f32.gmra.mrb[0].mxu0 %v1982
    %v2336 = vpop.f32.mrb[0].mxu0
    %v2337 = vadd.f32 0.0, %v2336
    %v2338 = vpop.f32.mrb[0].mxu0
    %2339 = vmatprep.mubr.f32.mxu0 0.0
    %2340 = vmatmul.mubr.f32.gmra.mrb[0].mxu0 %v1985
    %v2341 = vpop.f32.mrb[0].mxu0
    %v2342 = vadd.f32 0.0, %v2341
    %v2343 = vpop.f32.mrb[0].mxu0
    %2344 = vmatprep.mubr.f32.mxu0 0.0
    %2345 = vmatmul.mubr.f32.gmra.mrb[0].mxu0 %v1988
    %v2346 = vpop.f32.mrb[0].mxu0
    %v2347 = vadd.f32 0.0, %v2346
    %v2348 = vpop.f32.mrb[0].mxu0
    %2349 = vmatprep.mubr.f32.mxu0 0.0
    %2350 = vmatmul.mubr.f32.gmra.mrb[0].mxu0 %v1991
    %v2351 = vpop.f32.mrb[0].mxu0
    %v2352 = vadd.f32 0.0, %v2351
    %v2353 = vpop.f32.mrb[0].mxu0
    %2354 = vmatprep.mubr.f32.mxu0 0.0
    %2355 = vmatmul.mubr.f32.gmra.mrb[0].mxu0 %v1994
    %v2356 = vpop.f32.mrb[0].mxu0
    %v2357 = vadd.f32 0.0, %v2356
    %v2358 = vpop.f32.mrb[0].mxu0
    %2359 = vmatprep.mubr.f32.mxu0 0.0
    %2360 = vmatmul.mubr.f32.gmra.mrb[0].mxu0 %v1997
    %v2361 = vpop.f32.mrb[0].mxu0
    %v2362 = vadd.f32 0.0, %v2361
    %v2363 = vpop.f32.mrb[0].mxu0
    %2364 = vmatprep.mubr.f32.mxu0 0.0
    %2365 = vmatmul.mubr.f32.gmra.mrb[0].mxu0 %v2000
    %v2366 = vpop.f32.mrb[0].mxu0
    %v2367 = vadd.f32 0.0, %v2366
    %v2368 = vpop.f32.mrb[0].mxu0
    %2369 = vdwg.mxu0
    %2370 = vmatprep.subr.mxu0 0.0
    %2371 = vmatpush1.msra.mxu0 %v2257
    %2372 = vmatprep.subr.mxu0 0.0
    %2373 = vmatpush1.msra.mxu0 %v2258
    %2374 = vmatprep.subr.mxu0 0.0
    %2375 = vmatpush1.msra.mxu0 %v2259
    %2376 = vmatprep.subr.mxu0 0.0
    %2377 = vmatpush1.msra.mxu0 %v2260
    %2378 = vmatprep.subr.mxu0 0.0
    %2379 = vmatpush1.msra.mxu0 0.0
    %2380 = vmatprep.subr.mxu0 0.0
    %2381 = vmatpush1.msra.mxu0 0.0
    %2382 = vmatprep.subr.mxu0 0.0
    %2383 = vmatpush1.msra.mxu0 0.0
    %2384 = vmatprep.subr.mxu0 0.0
    %2385 = vmatpush1.msra.mxu0 0.0
    %2386 = vmatprep.subr.mxu0 0.0
    %2387 = vmatpush1.msra.mxu0 0.0
    %2388 = vmatprep.subr.mxu0 0.0
    %2389 = vmatpush1.msra.mxu0 0.0
    %2390 = vmatprep.subr.mxu0 0.0
    %2391 = vmatpush1.msra.mxu0 0.0
    %2392 = vmatprep.subr.mxu0 0.0
    %2393 = vmatpush1.msra.mxu0 0.0
    %2394 = vmatprep.subr.mxu0 0.0
    %2395 = vmatpush1.msra.mxu0 0.0
    %2396 = vmatprep.subr.mxu0 0.0
    %2397 = vmatpush1.msra.mxu0 0.0
    %2398 = vmatprep.subr.mxu0 0.0
    %2399 = vmatpush1.msra.mxu0 0.0
    %2400 = vmatprep.subr.mxu0 0.0
    %2401 = vmatpush1.msra.mxu0 0.0
    %2402 = vmatprep.subr.mxu0 0.0
    %2403 = vmatpush1.msra.mxu0 0.0
    %2404 = vmatprep.subr.mxu0 0.0
    %2405 = vmatpush1.msra.mxu0 0.0
    %2406 = vmatprep.subr.mxu0 0.0
    %2407 = vmatpush1.msra.mxu0 0.0
    %2408 = vmatprep.subr.mxu0 0.0
    %2409 = vmatpush1.msra.mxu0 0.0
    %2410 = vmatprep.subr.mxu0 0.0
    %2411 = vmatpush1.msra.mxu0 0.0
    %2412 = vmatprep.subr.mxu0 0.0
    %2413 = vmatpush1.msra.mxu0 0.0
    %2414 = vmatprep.subr.mxu0 0.0
    %2415 = vmatpush1.msra.mxu0 0.0
    %2416 = vmatprep.subr.mxu0 0.0
    %2417 = vmatpush1.msra.mxu0 0.0
    %2418 = vmatprep.subr.mxu0 0.0
    %2419 = vmatpush1.msra.mxu0 0.0
    %2420 = vmatprep.subr.mxu0 0.0
    %2421 = vmatpush1.msra.mxu0 0.0
    %2422 = vmatprep.subr.mxu0 0.0
    %2423 = vmatpush1.msra.mxu0 0.0
    %2424 = vmatprep.subr.mxu0 0.0
    %2425 = vmatpush1.msra.mxu0 0.0
    %2426 = vmatprep.subr.mxu0 0.0
    %2427 = vmatpush1.msra.mxu0 0.0
    %2428 = vmatprep.subr.mxu0 0.0
    %2429 = vmatpush1.msra.mxu0 0.0
    %2430 = vmatprep.subr.mxu0 0.0
    %2431 = vmatpush1.msra.mxu0 0.0
    %2432 = vmatprep.subr.mxu0 0.0
    %2433 = vmatpush1.msra.mxu0 0.0
    %2434 = vmatprep.mubr.f32.mxu0 0.0
    %2435 = vmatmul.mubr.f32.gmra.mrb[0].mxu0 %v2108
    %v2436 = vpop.f32.mrb[0].mxu0
    %v2437 = vadd.f32 %v2332, %v2436
    %v2438 = vpop.f32.mrb[0].mxu0
    %2439 = vmatprep.mubr.f32.mxu0 0.0
    %2440 = vmatmul.mubr.f32.gmra.mrb[0].mxu0 %v2111
    %v2441 = vpop.f32.mrb[0].mxu0
    %v2442 = vadd.f32 %v2337, %v2441
    %v2443 = vpop.f32.mrb[0].mxu0
    %2444 = vmatprep.mubr.f32.mxu0 0.0
    %2445 = vmatmul.mubr.f32.gmra.mrb[0].mxu0 %v2114
    %v2446 = vpop.f32.mrb[0].mxu0
    %v2447 = vadd.f32 %v2342, %v2446
    %v2448 = vpop.f32.mrb[0].mxu0
    %2449 = vmatprep.mubr.f32.mxu0 0.0
    %2450 = vmatmul.mubr.f32.gmra.mrb[0].mxu0 %v2117
    %v2451 = vpop.f32.mrb[0].mxu0
    %v2452 = vadd.f32 %v2347, %v2451
    %v2453 = vpop.f32.mrb[0].mxu0
    %2454 = vmatprep.mubr.f32.mxu0 0.0
    %2455 = vmatmul.mubr.f32.gmra.mrb[0].mxu0 %v2120
    %v2456 = vpop.f32.mrb[0].mxu0
    %v2457 = vadd.f32 %v2352, %v2456
    %v2458 = vpop.f32.mrb[0].mxu0
    %2459 = vmatprep.mubr.f32.mxu0 0.0
    %2460 = vmatmul.mubr.f32.gmra.mrb[0].mxu0 %v2123
    %v2461 = vpop.f32.mrb[0].mxu0
    %v2462 = vadd.f32 %v2357, %v2461
    %v2463 = vpop.f32.mrb[0].mxu0
    %2464 = vmatprep.mubr.f32.mxu0 0.0
    %2465 = vmatmul.mubr.f32.gmra.mrb[0].mxu0 %v2126
    %v2466 = vpop.f32.mrb[0].mxu0
    %v2467 = vadd.f32 %v2362, %v2466
    %v2468 = vpop.f32.mrb[0].mxu0
    %2469 = vmatprep.mubr.f32.mxu0 0.0
    %2470 = vmatmul.mubr.f32.gmra.mrb[0].mxu0 %v2129
    %v2471 = vpop.f32.mrb[0].mxu0
    %v2472 = vadd.f32 %v2367, %v2471
    %v2473 = vpop.f32.mrb[0].mxu0
    %2474 = vdwg.mxu0
    %v2475 = vld [vmem:[#allocation6 + $0x138] sm:$0x1]
    %v2476 = vlaneseq
    %v2477 = vshrl.u32 %v2476, 7
    %v2478 = vsub.s32 0, %v2477
    %v2479 = vrot.slane %v2475, %v2478
    %v2480 = vadd.f32 %v2437, %v2479
    %v2481 = vadd.f32 %v2442, %v2479
    %v2482 = vadd.f32 %v2447, %v2479
    %v2483 = vadd.f32 %v2452, %v2479
    %v2484 = vadd.f32 %v2457, %v2479
    %v2485 = vadd.f32 %v2462, %v2479
    %v2486 = vadd.f32 %v2467, %v2479
    %v2487 = vadd.f32 %v2472, %v2479
    %2488 = vst [vmem:[#allocation3] sm:$0xff] %v2480
    %2489 = vst [vmem:[#allocation3 + $0x8] sm:$0xff] %v2481
    %2490 = vst [vmem:[#allocation3 + $0x10] sm:$0xff] %v2482
    %2491 = vst [vmem:[#allocation3 + $0x18] sm:$0xff] %v2483
    %2492 = vst [vmem:[#allocation3 + $0x20] sm:$0xff] %v2484
    %2493 = vst [vmem:[#allocation3 + $0x28] sm:$0xff] %v2485
    %2494 = vst [vmem:[#allocation3 + $0x30] sm:$0xff] %v2486
    %2495 = vst [vmem:[#allocation3 + $0x38] sm:$0xff] %v2487
    %v2496 = vld [vmem:[#allocation6 + $0xf0] sm:$0xff]
    %v2497 = vld [vmem:[#allocation6 + $0xf8] sm:$0xff]
    %v2498 = vld [vmem:[#allocation6 + $0x100] sm:$0xff]
    %v2499 = vld [vmem:[#allocation6 + $0x108] sm:$0xff]
    %v2500 = vld [vmem:[#allocation6 + $0x110] sm:$0xff]
    %v2501 = vld [vmem:[#allocation6 + $0x118] sm:$0xff]
    %v2502 = vld [vmem:[#allocation6 + $0x120] sm:$0xff]
    %v2503 = vld [vmem:[#allocation6 + $0x128] sm:$0xff]
    %v2504 = vld [vmem:[#allocation2] sm:$0xff]
    %2505 = vmatprep.subr.mxu0 0.0
    %2506 = vmatpush1.msra.mxu0 %v2496
    %2507 = vmatprep.subr.mxu0 0.0
    %2508 = vmatpush1.msra.mxu0 %v2497
    %2509 = vmatprep.subr.mxu0 0.0
    %2510 = vmatpush1.msra.mxu0 %v2498
    %2511 = vmatprep.subr.mxu0 0.0
    %2512 = vmatpush1.msra.mxu0 %v2499
    %2513 = vmatprep.subr.mxu0 0.0
    %2514 = vmatpush1.msra.mxu0 0.0
    %2515 = vmatprep.subr.mxu0 0.0
    %2516 = vmatpush1.msra.mxu0 0.0
    %2517 = vmatprep.subr.mxu0 0.0
    %2518 = vmatpush1.msra.mxu0 0.0
    %2519 = vmatprep.subr.mxu0 0.0
    %2520 = vmatpush1.msra.mxu0 0.0
    %2521 = vmatprep.subr.mxu0 0.0
    %2522 = vmatpush1.msra.mxu0 0.0
    %2523 = vmatprep.subr.mxu0 0.0
    %2524 = vmatpush1.msra.mxu0 0.0
    %2525 = vmatprep.subr.mxu0 0.0
    %2526 = vmatpush1.msra.mxu0 0.0
    %2527 = vmatprep.subr.mxu0 0.0
    %2528 = vmatpush1.msra.mxu0 0.0
    %2529 = vmatprep.subr.mxu0 0.0
    %2530 = vmatpush1.msra.mxu0 0.0
    %2531 = vmatprep.subr.mxu0 0.0
    %2532 = vmatpush1.msra.mxu0 0.0
    %2533 = vmatprep.subr.mxu0 0.0
    %2534 = vmatpush1.msra.mxu0 0.0
    %2535 = vmatprep.subr.mxu0 0.0
    %2536 = vmatpush1.msra.mxu0 0.0
    %2537 = vmatprep.subr.mxu0 0.0
    %2538 = vmatpush1.msra.mxu0 0.0
    %2539 = vmatprep.subr.mxu0 0.0
    %2540 = vmatpush1.msra.mxu0 0.0
    %2541 = vmatprep.subr.mxu0 0.0
    %2542 = vmatpush1.msra.mxu0 0.0
    %2543 = vmatprep.subr.mxu0 0.0
    %2544 = vmatpush1.msra.mxu0 0.0
    %2545 = vmatprep.subr.mxu0 0.0
    %2546 = vmatpush1.msra.mxu0 0.0
    %2547 = vmatprep.subr.mxu0 0.0
    %2548 = vmatpush1.msra.mxu0 0.0
    %2549 = vmatprep.subr.mxu0 0.0
    %2550 = vmatpush1.msra.mxu0 0.0
    %2551 = vmatprep.subr.mxu0 0.0
    %2552 = vmatpush1.msra.mxu0 0.0
    %2553 = vmatprep.subr.mxu0 0.0
    %2554 = vmatpush1.msra.mxu0 0.0
    %2555 = vmatprep.subr.mxu0 0.0
    %2556 = vmatpush1.msra.mxu0 0.0
    %2557 = vmatprep.subr.mxu0 0.0
    %2558 = vmatpush1.msra.mxu0 0.0
    %2559 = vmatprep.subr.mxu0 0.0
    %2560 = vmatpush1.msra.mxu0 0.0
    %2561 = vmatprep.subr.mxu0 0.0
    %2562 = vmatpush1.msra.mxu0 0.0
    %2563 = vmatprep.subr.mxu0 0.0
    %2564 = vmatpush1.msra.mxu0 0.0
    %2565 = vmatprep.subr.mxu0 0.0
    %2566 = vmatpush1.msra.mxu0 0.0
    %2567 = vmatprep.subr.mxu0 0.0
    %2568 = vmatpush1.msra.mxu0 0.0
    %2569 = vmatprep.mubr.f32.mxu0 0.0
    %2570 = vmatmul.mubr.f32.gmra.mrb[0].mxu0 %v309
    %v2571 = vpop.f32.mrb[0].mxu0
    %v2572 = vadd.f32 0.0, %v2571
    %v2573 = vpop.f32.mrb[0].mxu0
    %2574 = vdwg.mxu0
    %v2575 = vadd.f32 %v2504, %v2572
    %v2576 = vxor.u32 %v2575, 2147483648
    %v2577 = vmul.f32 %v2576, 1.442695
    %v2578 = vpow.pop %v2577
    %v2579 = vadd.f32 %v2578, 1.0
    %v2580 = vrcp.pop %v2579
    %v2581 = vmul.f32 1.0, %v2580
    %v2582 = vtanh.pop %v2575
    %v2583 = vmul.f32 %v2581, 0.0
    %2585 = vrot.lane.b32.xlu0 %v2582, 32
    %v2586 = vpop.permute.xlu0 %2585
    %v2588 = vmul.f32 %v2581, %v2586
    %2590 = vrot.lane.b32.xlu0 %v2588, 32
    %v2591 = vpop.permute.xlu0 %2590
    %v2593 = vadd.f32 %v2583, %v2591
    %v2594 = vtanh.pop %v2593
    %2596 = vrot.lane.b32.xlu0 %v2594, 32
    %v2597 = vpop.permute.xlu0 %2596
    %v2599 = vmul.f32 %v2581, %v2597
    %v2600 = vld [vmem:[#allocation3 + $0x38] sm:$0xff]
    %2601 = vmatprep.subr.mxu0 0.0
    %2602 = vmatpush1.msra.mxu0 %v2500
    %2603 = vmatprep.subr.mxu0 0.0
    %2604 = vmatpush1.msra.mxu0 %v2501
    %2605 = vmatprep.subr.mxu0 0.0
    %2606 = vmatpush1.msra.mxu0 %v2502
    %2607 = vmatprep.subr.mxu0 0.0
    %2608 = vmatpush1.msra.mxu0 %v2503
    %2609 = vmatprep.subr.mxu0 0.0
    %2610 = vmatpush1.msra.mxu0 0.0
    %2611 = vmatprep.subr.mxu0 0.0
    %2612 = vmatpush1.msra.mxu0 0.0
    %2613 = vmatprep.subr.mxu0 0.0
    %2614 = vmatpush1.msra.mxu0 0.0
    %2615 = vmatprep.subr.mxu0 0.0
    %2616 = vmatpush1.msra.mxu0 0.0
    %2617 = vmatprep.subr.mxu0 0.0
    %2618 = vmatpush1.msra.mxu0 0.0
    %2619 = vmatprep.subr.mxu0 0.0
    %2620 = vmatpush1.msra.mxu0 0.0
    %2621 = vmatprep.subr.mxu0 0.0
    %2622 = vmatpush1.msra.mxu0 0.0
    %2623 = vmatprep.subr.mxu0 0.0
    %2624 = vmatpush1.msra.mxu0 0.0
    %2625 = vmatprep.subr.mxu0 0.0
    %2626 = vmatpush1.msra.mxu0 0.0
    %2627 = vmatprep.subr.mxu0 0.0
    %2628 = vmatpush1.msra.mxu0 0.0
    %2629 = vmatprep.subr.mxu0 0.0
    %2630 = vmatpush1.msra.mxu0 0.0
    %2631 = vmatprep.subr.mxu0 0.0
    %2632 = vmatpush1.msra.mxu0 0.0
    %2633 = vmatprep.subr.mxu0 0.0
    %2634 = vmatpush1.msra.mxu0 0.0
    %2635 = vmatprep.subr.mxu0 0.0
    %2636 = vmatpush1.msra.mxu0 0.0
    %2637 = vmatprep.subr.mxu0 0.0
    %2638 = vmatpush1.msra.mxu0 0.0
    %2639 = vmatprep.subr.mxu0 0.0
    %2640 = vmatpush1.msra.mxu0 0.0
    %2641 = vmatprep.subr.mxu0 0.0
    %2642 = vmatpush1.msra.mxu0 0.0
    %2643 = vmatprep.subr.mxu0 0.0
    %2644 = vmatpush1.msra.mxu0 0.0
    %2645 = vmatprep.subr.mxu0 0.0
    %2646 = vmatpush1.msra.mxu0 0.0
    %2647 = vmatprep.subr.mxu0 0.0
    %2648 = vmatpush1.msra.mxu0 0.0
    %2649 = vmatprep.subr.mxu0 0.0
    %2650 = vmatpush1.msra.mxu0 0.0
    %2651 = vmatprep.subr.mxu0 0.0
    %2652 = vmatpush1.msra.mxu0 0.0
    %2653 = vmatprep.subr.mxu0 0.0
    %2654 = vmatpush1.msra.mxu0 0.0
    %2655 = vmatprep.subr.mxu0 0.0
    %2656 = vmatpush1.msra.mxu0 0.0
    %2657 = vmatprep.subr.mxu0 0.0
    %2658 = vmatpush1.msra.mxu0 0.0
    %2659 = vmatprep.subr.mxu0 0.0
    %2660 = vmatpush1.msra.mxu0 0.0
    %2661 = vmatprep.subr.mxu0 0.0
    %2662 = vmatpush1.msra.mxu0 0.0
    %2663 = vmatprep.subr.mxu0 0.0
    %2664 = vmatpush1.msra.mxu0 0.0
    %2665 = vmatprep.mubr.f32.mxu0 0.0
    %2666 = vmatmul.mubr.f32.gmra.mrb[0].mxu0 %v309
    %v2667 = vpop.f32.mrb[0].mxu0
    %v2668 = vadd.f32 0.0, %v2667
    %v2669 = vpop.f32.mrb[0].mxu0
    %2670 = vdwg.mxu0
    %v2671 = vadd.f32 %v2600, %v2668
    %v2672 = vxor.u32 %v2671, 2147483648
    %v2673 = vmul.f32 %v2672, 1.442695
    %v2674 = vpow.pop %v2673
    %v2675 = vadd.f32 %v2674, 1.0
    %v2676 = vrcp.pop %v2675
    %v2677 = vmul.f32 1.0, %v2676
    %v2678 = vtanh.pop %v2671
    %v2679 = vmul.f32 %v2677, 0.0
    %2681 = vrot.lane.b32.xlu0 %v2678, 32
    %v2682 = vpop.permute.xlu0 %2681
    %v2684 = vmul.f32 %v2677, %v2682
    %2686 = vrot.lane.b32.xlu0 %v2684, 32
    %v2687 = vpop.permute.xlu0 %2686
    %v2689 = vadd.f32 %v2679, %v2687
    %v2690 = vtanh.pop %v2689
    %2692 = vrot.lane.b32.xlu0 %v2690, 32
    %v2693 = vpop.permute.xlu0 %2692
    %v2695 = vmul.f32 %v2677, %v2693
    %2697 = vrot.lane.b32.xlu0 %v2599, 64
    %v2698 = vpop.permute.xlu0 %2697
    %2700 = vst.msk [vmem:[#allocation4] sm:$0xff] %vm307, %v2698
    %2702 = vrot.lane.b32.xlu0 %v2695, 64
    %v2703 = vpop.permute.xlu0 %2702
    %2705 = vst.msk [vmem:[#allocation5 + $0x38] sm:$0xff] %vm307, %v2703
    %v2706 = vld [vmem:[#allocation2 + $0x8] sm:$0xff]
    %v2707 = vsel %vm307, %v2698, 0
    %2709 = vmatprep.subr.mxu0 0.0
    %2710 = vmatpush1.msra.mxu0 %v2496
    %2711 = vmatprep.subr.mxu0 0.0
    %2712 = vmatpush1.msra.mxu0 %v2497
    %2713 = vmatprep.subr.mxu0 0.0
    %2714 = vmatpush1.msra.mxu0 %v2498
    %2715 = vmatprep.subr.mxu0 0.0
    %2716 = vmatpush1.msra.mxu0 %v2499
    %2717 = vmatprep.subr.mxu0 0.0
    %2718 = vmatpush1.msra.mxu0 0.0
    %2719 = vmatprep.subr.mxu0 0.0
    %2720 = vmatpush1.msra.mxu0 0.0
    %2721 = vmatprep.subr.mxu0 0.0
    %2722 = vmatpush1.msra.mxu0 0.0
    %2723 = vmatprep.subr.mxu0 0.0
    %2724 = vmatpush1.msra.mxu0 0.0
    %2725 = vmatprep.subr.mxu0 0.0
    %2726 = vmatpush1.msra.mxu0 0.0
    %2727 = vmatprep.subr.mxu0 0.0
    %2728 = vmatpush1.msra.mxu0 0.0
    %2729 = vmatprep.subr.mxu0 0.0
    %2730 = vmatpush1.msra.mxu0 0.0
    %2731 = vmatprep.subr.mxu0 0.0
    %2732 = vmatpush1.msra.mxu0 0.0
    %2733 = vmatprep.subr.mxu0 0.0
    %2734 = vmatpush1.msra.mxu0 0.0
    %2735 = vmatprep.subr.mxu0 0.0
    %2736 = vmatpush1.msra.mxu0 0.0
    %2737 = vmatprep.subr.mxu0 0.0
    %2738 = vmatpush1.msra.mxu0 0.0
    %2739 = vmatprep.subr.mxu0 0.0
    %2740 = vmatpush1.msra.mxu0 0.0
    %2741 = vmatprep.subr.mxu0 0.0
    %2742 = vmatpush1.msra.mxu0 0.0
    %2743 = vmatprep.subr.mxu0 0.0
    %2744 = vmatpush1.msra.mxu0 0.0
    %2745 = vmatprep.subr.mxu0 0.0
    %2746 = vmatpush1.msra.mxu0 0.0
    %2747 = vmatprep.subr.mxu0 0.0
    %2748 = vmatpush1.msra.mxu0 0.0
    %2749 = vmatprep.subr.mxu0 0.0
    %2750 = vmatpush1.msra.mxu0 0.0
    %2751 = vmatprep.subr.mxu0 0.0
    %2752 = vmatpush1.msra.mxu0 0.0
    %2753 = vmatprep.subr.mxu0 0.0
    %2754 = vmatpush1.msra.mxu0 0.0
    %2755 = vmatprep.subr.mxu0 0.0
    %2756 = vmatpush1.msra.mxu0 0.0
    %2757 = vmatprep.subr.mxu0 0.0
    %2758 = vmatpush1.msra.mxu0 0.0
    %2759 = vmatprep.subr.mxu0 0.0
    %2760 = vmatpush1.msra.mxu0 0.0
    %2761 = vmatprep.subr.mxu0 0.0
    %2762 = vmatpush1.msra.mxu0 0.0
    %2763 = vmatprep.subr.mxu0 0.0
    %2764 = vmatpush1.msra.mxu0 0.0
    %2765 = vmatprep.subr.mxu0 0.0
    %2766 = vmatpush1.msra.mxu0 0.0
    %2767 = vmatprep.subr.mxu0 0.0
    %2768 = vmatpush1.msra.mxu0 0.0
    %2769 = vmatprep.subr.mxu0 0.0
    %2770 = vmatpush1.msra.mxu0 0.0
    %2771 = vmatprep.subr.mxu0 0.0
    %2772 = vmatpush1.msra.mxu0 0.0
    %2773 = vmatprep.mubr.f32.mxu0 0.0
    %2774 = vmatmul.mubr.f32.gmra.mrb[0].mxu0 %v2707
    %v2775 = vpop.f32.mrb[0].mxu0
    %v2776 = vadd.f32 0.0, %v2775
    %v2777 = vpop.f32.mrb[0].mxu0
    %2778 = vdwg.mxu0
    %v2779 = vadd.f32 %v2706, %v2776
    %v2780 = vxor.u32 %v2779, 2147483648
    %v2781 = vmul.f32 %v2780, 1.442695
    %v2782 = vpow.pop %v2781
    %v2783 = vadd.f32 %v2782, 1.0
    %v2784 = vrcp.pop %v2783
    %v2785 = vmul.f32 1.0, %v2784
    %v2786 = vtanh.pop %v2779
    %v2787 = vmul.f32 %v2785, %v2593
    %2789 = vrot.lane.b32.xlu0 %v2786, 32
    %v2790 = vpop.permute.xlu0 %2789
    %v2792 = vmul.f32 %v2785, %v2790
    %2794 = vrot.lane.b32.xlu0 %v2792, 32
    %v2795 = vpop.permute.xlu0 %2794
    %v2797 = vadd.f32 %v2787, %v2795
    %v2798 = vtanh.pop %v2797
    %2800 = vrot.lane.b32.xlu0 %v2798, 32
    %v2801 = vpop.permute.xlu0 %2800
    %v2803 = vmul.f32 %v2785, %v2801
    %v2804 = vld [vmem:[#allocation3 + $0x30] sm:$0xff]
    %v2805 = vsel %vm307, %v2703, 0
    %2807 = vmatprep.subr.mxu0 0.0
    %2808 = vmatpush1.msra.mxu0 %v2500
    %2809 = vmatprep.subr.mxu0 0.0
    %2810 = vmatpush1.msra.mxu0 %v2501
    %2811 = vmatprep.subr.mxu0 0.0
    %2812 = vmatpush1.msra.mxu0 %v2502
    %2813 = vmatprep.subr.mxu0 0.0
    %2814 = vmatpush1.msra.mxu0 %v2503
    %2815 = vmatprep.subr.mxu0 0.0
    %2816 = vmatpush1.msra.mxu0 0.0
    %2817 = vmatprep.subr.mxu0 0.0
    %2818 = vmatpush1.msra.mxu0 0.0
    %2819 = vmatprep.subr.mxu0 0.0
    %2820 = vmatpush1.msra.mxu0 0.0
    %2821 = vmatprep.subr.mxu0 0.0
    %2822 = vmatpush1.msra.mxu0 0.0
    %2823 = vmatprep.subr.mxu0 0.0
    %2824 = vmatpush1.msra.mxu0 0.0
    %2825 = vmatprep.subr.mxu0 0.0
    %2826 = vmatpush1.msra.mxu0 0.0
    %2827 = vmatprep.subr.mxu0 0.0
    %2828 = vmatpush1.msra.mxu0 0.0
    %2829 = vmatprep.subr.mxu0 0.0
    %2830 = vmatpush1.msra.mxu0 0.0
    %2831 = vmatprep.subr.mxu0 0.0
    %2832 = vmatpush1.msra.mxu0 0.0
    %2833 = vmatprep.subr.mxu0 0.0
    %2834 = vmatpush1.msra.mxu0 0.0
    %2835 = vmatprep.subr.mxu0 0.0
    %2836 = vmatpush1.msra.mxu0 0.0
    %2837 = vmatprep.subr.mxu0 0.0
    %2838 = vmatpush1.msra.mxu0 0.0
    %2839 = vmatprep.subr.mxu0 0.0
    %2840 = vmatpush1.msra.mxu0 0.0
    %2841 = vmatprep.subr.mxu0 0.0
    %2842 = vmatpush1.msra.mxu0 0.0
    %2843 = vmatprep.subr.mxu0 0.0
    %2844 = vmatpush1.msra.mxu0 0.0
    %2845 = vmatprep.subr.mxu0 0.0
    %2846 = vmatpush1.msra.mxu0 0.0
    %2847 = vmatprep.subr.mxu0 0.0
    %2848 = vmatpush1.msra.mxu0 0.0
    %2849 = vmatprep.subr.mxu0 0.0
    %2850 = vmatpush1.msra.mxu0 0.0
    %2851 = vmatprep.subr.mxu0 0.0
    %2852 = vmatpush1.msra.mxu0 0.0
    %2853 = vmatprep.subr.mxu0 0.0
    %2854 = vmatpush1.msra.mxu0 0.0
    %2855 = vmatprep.subr.mxu0 0.0
    %2856 = vmatpush1.msra.mxu0 0.0
    %2857 = vmatprep.subr.mxu0 0.0
    %2858 = vmatpush1.msra.mxu0 0.0
    %2859 = vmatprep.subr.mxu0 0.0
    %2860 = vmatpush1.msra.mxu0 0.0
    %2861 = vmatprep.subr.mxu0 0.0
    %2862 = vmatpush1.msra.mxu0 0.0
    %2863 = vmatprep.subr.mxu0 0.0
    %2864 = vmatpush1.msra.mxu0 0.0
    %2865 = vmatprep.subr.mxu0 0.0
    %2866 = vmatpush1.msra.mxu0 0.0
    %2867 = vmatprep.subr.mxu0 0.0
    %2868 = vmatpush1.msra.mxu0 0.0
    %2869 = vmatprep.subr.mxu0 0.0
    %2870 = vmatpush1.msra.mxu0 0.0
    %2871 = vmatprep.mubr.f32.mxu0 0.0
    %2872 = vmatmul.mubr.f32.gmra.mrb[0].mxu0 %v2805
    %v2873 = vpop.f32.mrb[0].mxu0
    %v2874 = vadd.f32 0.0, %v2873
    %v2875 = vpop.f32.mrb[0].mxu0
    %2876 = vdwg.mxu0
    %v2877 = vadd.f32 %v2804, %v2874
    %v2878 = vxor.u32 %v2877, 2147483648
    %v2879 = vmul.f32 %v2878, 1.442695
    %v2880 = vpow.pop %v2879
    %v2881 = vadd.f32 %v2880, 1.0
    %v2882 = vrcp.pop %v2881
    %v2883 = vmul.f32 1.0, %v2882
    %v2884 = vtanh.pop %v2877
    %v2885 = vmul.f32 %v2883, %v2689
    %2887 = vrot.lane.b32.xlu0 %v2884, 32
    %v2888 = vpop.permute.xlu0 %2887
    %v2890 = vmul.f32 %v2883, %v2888
    %2892 = vrot.lane.b32.xlu0 %v2890, 32
    %v2893 = vpop.permute.xlu0 %2892
    %v2895 = vadd.f32 %v2885, %v2893
    %v2896 = vtanh.pop %v2895
    %2898 = vrot.lane.b32.xlu0 %v2896, 32
    %v2899 = vpop.permute.xlu0 %2898
    %v2901 = vmul.f32 %v2883, %v2899
    %2903 = vrot.lane.b32.xlu0 %v2803, 64
    %v2904 = vpop.permute.xlu0 %2903
    %2906 = vst.msk [vmem:[#allocation4 + $0x8] sm:$0xff] %vm307, %v2904
    %2908 = vrot.lane.b32.xlu0 %v2901, 64
    %v2909 = vpop.permute.xlu0 %2908
    %2911 = vst.msk [vmem:[#allocation5 + $0x30] sm:$0xff] %vm307, %v2909
    %v2912 = vld [vmem:[#allocation2 + $0x10] sm:$0xff]
    %v2913 = vsel %vm307, %v2904, 0
    %2915 = vmatprep.subr.mxu0 0.0
    %2916 = vmatpush1.msra.mxu0 %v2496
    %2917 = vmatprep.subr.mxu0 0.0
    %2918 = vmatpush1.msra.mxu0 %v2497
    %2919 = vmatprep.subr.mxu0 0.0
    %2920 = vmatpush1.msra.mxu0 %v2498
    %2921 = vmatprep.subr.mxu0 0.0
    %2922 = vmatpush1.msra.mxu0 %v2499
    %2923 = vmatprep.subr.mxu0 0.0
    %2924 = vmatpush1.msra.mxu0 0.0
    %2925 = vmatprep.subr.mxu0 0.0
    %2926 = vmatpush1.msra.mxu0 0.0
    %2927 = vmatprep.subr.mxu0 0.0
    %2928 = vmatpush1.msra.mxu0 0.0
    %2929 = vmatprep.subr.mxu0 0.0
    %2930 = vmatpush1.msra.mxu0 0.0
    %2931 = vmatprep.subr.mxu0 0.0
    %2932 = vmatpush1.msra.mxu0 0.0
    %2933 = vmatprep.subr.mxu0 0.0
    %2934 = vmatpush1.msra.mxu0 0.0
    %2935 = vmatprep.subr.mxu0 0.0
    %2936 = vmatpush1.msra.mxu0 0.0
    %2937 = vmatprep.subr.mxu0 0.0
    %2938 = vmatpush1.msra.mxu0 0.0
    %2939 = vmatprep.subr.mxu0 0.0
    %2940 = vmatpush1.msra.mxu0 0.0
    %2941 = vmatprep.subr.mxu0 0.0
    %2942 = vmatpush1.msra.mxu0 0.0
    %2943 = vmatprep.subr.mxu0 0.0
    %2944 = vmatpush1.msra.mxu0 0.0
    %2945 = vmatprep.subr.mxu0 0.0
    %2946 = vmatpush1.msra.mxu0 0.0
    %2947 = vmatprep.subr.mxu0 0.0
    %2948 = vmatpush1.msra.mxu0 0.0
    %2949 = vmatprep.subr.mxu0 0.0
    %2950 = vmatpush1.msra.mxu0 0.0
    %2951 = vmatprep.subr.mxu0 0.0
    %2952 = vmatpush1.msra.mxu0 0.0
    %2953 = vmatprep.subr.mxu0 0.0
    %2954 = vmatpush1.msra.mxu0 0.0
    %2955 = vmatprep.subr.mxu0 0.0
    %2956 = vmatpush1.msra.mxu0 0.0
    %2957 = vmatprep.subr.mxu0 0.0
    %2958 = vmatpush1.msra.mxu0 0.0
    %2959 = vmatprep.subr.mxu0 0.0
    %2960 = vmatpush1.msra.mxu0 0.0
    %2961 = vmatprep.subr.mxu0 0.0
    %2962 = vmatpush1.msra.mxu0 0.0
    %2963 = vmatprep.subr.mxu0 0.0
    %2964 = vmatpush1.msra.mxu0 0.0
    %2965 = vmatprep.subr.mxu0 0.0
    %2966 = vmatpush1.msra.mxu0 0.0
    %2967 = vmatprep.subr.mxu0 0.0
    %2968 = vmatpush1.msra.mxu0 0.0
    %2969 = vmatprep.subr.mxu0 0.0
    %2970 = vmatpush1.msra.mxu0 0.0
    %2971 = vmatprep.subr.mxu0 0.0
    %2972 = vmatpush1.msra.mxu0 0.0
    %2973 = vmatprep.subr.mxu0 0.0
    %2974 = vmatpush1.msra.mxu0 0.0
    %2975 = vmatprep.subr.mxu0 0.0
    %2976 = vmatpush1.msra.mxu0 0.0
    %2977 = vmatprep.subr.mxu0 0.0
    %2978 = vmatpush1.msra.mxu0 0.0
    %2979 = vmatprep.mubr.f32.mxu0 0.0
    %2980 = vmatmul.mubr.f32.gmra.mrb[0].mxu0 %v2913
    %v2981 = vpop.f32.mrb[0].mxu0
    %v2982 = vadd.f32 0.0, %v2981
    %v2983 = vpop.f32.mrb[0].mxu0
    %2984 = vdwg.mxu0
    %v2985 = vadd.f32 %v2912, %v2982
    %v2986 = vxor.u32 %v2985, 2147483648
    %v2987 = vmul.f32 %v2986, 1.442695
    %v2988 = vpow.pop %v2987
    %v2989 = vadd.f32 %v2988, 1.0
    %v2990 = vrcp.pop %v2989
    %v2991 = vmul.f32 1.0, %v2990
    %v2992 = vtanh.pop %v2985
    %v2993 = vmul.f32 %v2991, %v2797
    %2995 = vrot.lane.b32.xlu0 %v2992, 32
    %v2996 = vpop.permute.xlu0 %2995
    %v2998 = vmul.f32 %v2991, %v2996
    %3000 = vrot.lane.b32.xlu0 %v2998, 32
    %v3001 = vpop.permute.xlu0 %3000
    %v3003 = vadd.f32 %v2993, %v3001
    %v3004 = vtanh.pop %v3003
    %3006 = vrot.lane.b32.xlu0 %v3004, 32
    %v3007 = vpop.permute.xlu0 %3006
    %v3009 = vmul.f32 %v2991, %v3007
    %v3010 = vld [vmem:[#allocation3 + $0x28] sm:$0xff]
    %v3011 = vsel %vm307, %v2909, 0
    %3013 = vmatprep.subr.mxu0 0.0
    %3014 = vmatpush1.msra.mxu0 %v2500
    %3015 = vmatprep.subr.mxu0 0.0
    %3016 = vmatpush1.msra.mxu0 %v2501
    %3017 = vmatprep.subr.mxu0 0.0
    %3018 = vmatpush1.msra.mxu0 %v2502
    %3019 = vmatprep.subr.mxu0 0.0
    %3020 = vmatpush1.msra.mxu0 %v2503
    %3021 = vmatprep.subr.mxu0 0.0
    %3022 = vmatpush1.msra.mxu0 0.0
    %3023 = vmatprep.subr.mxu0 0.0
    %3024 = vmatpush1.msra.mxu0 0.0
    %3025 = vmatprep.subr.mxu0 0.0
    %3026 = vmatpush1.msra.mxu0 0.0
    %3027 = vmatprep.subr.mxu0 0.0
    %3028 = vmatpush1.msra.mxu0 0.0
    %3029 = vmatprep.subr.mxu0 0.0
    %3030 = vmatpush1.msra.mxu0 0.0
    %3031 = vmatprep.subr.mxu0 0.0
    %3032 = vmatpush1.msra.mxu0 0.0
    %3033 = vmatprep.subr.mxu0 0.0
    %3034 = vmatpush1.msra.mxu0 0.0
    %3035 = vmatprep.subr.mxu0 0.0
    %3036 = vmatpush1.msra.mxu0 0.0
    %3037 = vmatprep.subr.mxu0 0.0
    %3038 = vmatpush1.msra.mxu0 0.0
    %3039 = vmatprep.subr.mxu0 0.0
    %3040 = vmatpush1.msra.mxu0 0.0
    %3041 = vmatprep.subr.mxu0 0.0
    %3042 = vmatpush1.msra.mxu0 0.0
    %3043 = vmatprep.subr.mxu0 0.0
    %3044 = vmatpush1.msra.mxu0 0.0
    %3045 = vmatprep.subr.mxu0 0.0
    %3046 = vmatpush1.msra.mxu0 0.0
    %3047 = vmatprep.subr.mxu0 0.0
    %3048 = vmatpush1.msra.mxu0 0.0
    %3049 = vmatprep.subr.mxu0 0.0
    %3050 = vmatpush1.msra.mxu0 0.0
    %3051 = vmatprep.subr.mxu0 0.0
    %3052 = vmatpush1.msra.mxu0 0.0
    %3053 = vmatprep.subr.mxu0 0.0
    %3054 = vmatpush1.msra.mxu0 0.0
    %3055 = vmatprep.subr.mxu0 0.0
    %3056 = vmatpush1.msra.mxu0 0.0
    %3057 = vmatprep.subr.mxu0 0.0
    %3058 = vmatpush1.msra.mxu0 0.0
    %3059 = vmatprep.subr.mxu0 0.0
    %3060 = vmatpush1.msra.mxu0 0.0
    %3061 = vmatprep.subr.mxu0 0.0
    %3062 = vmatpush1.msra.mxu0 0.0
    %3063 = vmatprep.subr.mxu0 0.0
    %3064 = vmatpush1.msra.mxu0 0.0
    %3065 = vmatprep.subr.mxu0 0.0
    %3066 = vmatpush1.msra.mxu0 0.0
    %3067 = vmatprep.subr.mxu0 0.0
    %3068 = vmatpush1.msra.mxu0 0.0
    %3069 = vmatprep.subr.mxu0 0.0
    %3070 = vmatpush1.msra.mxu0 0.0
    %3071 = vmatprep.subr.mxu0 0.0
    %3072 = vmatpush1.msra.mxu0 0.0
    %3073 = vmatprep.subr.mxu0 0.0
    %3074 = vmatpush1.msra.mxu0 0.0
    %3075 = vmatprep.subr.mxu0 0.0
    %3076 = vmatpush1.msra.mxu0 0.0
    %3077 = vmatprep.mubr.f32.mxu0 0.0
    %3078 = vmatmul.mubr.f32.gmra.mrb[0].mxu0 %v3011
    %v3079 = vpop.f32.mrb[0].mxu0
    %v3080 = vadd.f32 0.0, %v3079
    %v3081 = vpop.f32.mrb[0].mxu0
    %3082 = vdwg.mxu0
    %v3083 = vadd.f32 %v3010, %v3080
    %v3084 = vxor.u32 %v3083, 2147483648
    %v3085 = vmul.f32 %v3084, 1.442695
    %v3086 = vpow.pop %v3085
    %v3087 = vadd.f32 %v3086, 1.0
    %v3088 = vrcp.pop %v3087
    %v3089 = vmul.f32 1.0, %v3088
    %v3090 = vtanh.pop %v3083
    %v3091 = vmul.f32 %v3089, %v2895
    %3093 = vrot.lane.b32.xlu0 %v3090, 32
    %v3094 = vpop.permute.xlu0 %3093
    %v3096 = vmul.f32 %v3089, %v3094
    %3098 = vrot.lane.b32.xlu0 %v3096, 32
    %v3099 = vpop.permute.xlu0 %3098
    %v3101 = vadd.f32 %v3091, %v3099
    %v3102 = vtanh.pop %v3101
    %3104 = vrot.lane.b32.xlu0 %v3102, 32
    %v3105 = vpop.permute.xlu0 %3104
    %v3107 = vmul.f32 %v3089, %v3105
    %3109 = vrot.lane.b32.xlu0 %v3009, 64
    %v3110 = vpop.permute.xlu0 %3109
    %3112 = vst.msk [vmem:[#allocation4 + $0x10] sm:$0xff] %vm307, %v3110
    %3114 = vrot.lane.b32.xlu0 %v3107, 64
    %v3115 = vpop.permute.xlu0 %3114
    %3117 = vst.msk [vmem:[#allocation5 + $0x28] sm:$0xff] %vm307, %v3115
    %v3118 = vld [vmem:[#allocation2 + $0x18] sm:$0xff]
    %v3119 = vsel %vm307, %v3110, 0
    %3121 = vmatprep.subr.mxu0 0.0
    %3122 = vmatpush1.msra.mxu0 %v2496
    %3123 = vmatprep.subr.mxu0 0.0
    %3124 = vmatpush1.msra.mxu0 %v2497
    %3125 = vmatprep.subr.mxu0 0.0
    %3126 = vmatpush1.msra.mxu0 %v2498
    %3127 = vmatprep.subr.mxu0 0.0
    %3128 = vmatpush1.msra.mxu0 %v2499
    %3129 = vmatprep.subr.mxu0 0.0
    %3130 = vmatpush1.msra.mxu0 0.0
    %3131 = vmatprep.subr.mxu0 0.0
    %3132 = vmatpush1.msra.mxu0 0.0
    %3133 = vmatprep.subr.mxu0 0.0
    %3134 = vmatpush1.msra.mxu0 0.0
    %3135 = vmatprep.subr.mxu0 0.0
    %3136 = vmatpush1.msra.mxu0 0.0
    %3137 = vmatprep.subr.mxu0 0.0
    %3138 = vmatpush1.msra.mxu0 0.0
    %3139 = vmatprep.subr.mxu0 0.0
    %3140 = vmatpush1.msra.mxu0 0.0
    %3141 = vmatprep.subr.mxu0 0.0
    %3142 = vmatpush1.msra.mxu0 0.0
    %3143 = vmatprep.subr.mxu0 0.0
    %3144 = vmatpush1.msra.mxu0 0.0
    %3145 = vmatprep.subr.mxu0 0.0
    %3146 = vmatpush1.msra.mxu0 0.0
    %3147 = vmatprep.subr.mxu0 0.0
    %3148 = vmatpush1.msra.mxu0 0.0
    %3149 = vmatprep.subr.mxu0 0.0
    %3150 = vmatpush1.msra.mxu0 0.0
    %3151 = vmatprep.subr.mxu0 0.0
    %3152 = vmatpush1.msra.mxu0 0.0
    %3153 = vmatprep.subr.mxu0 0.0
    %3154 = vmatpush1.msra.mxu0 0.0
    %3155 = vmatprep.subr.mxu0 0.0
    %3156 = vmatpush1.msra.mxu0 0.0
    %3157 = vmatprep.subr.mxu0 0.0
    %3158 = vmatpush1.msra.mxu0 0.0
    %3159 = vmatprep.subr.mxu0 0.0
    %3160 = vmatpush1.msra.mxu0 0.0
    %3161 = vmatprep.subr.mxu0 0.0
    %3162 = vmatpush1.msra.mxu0 0.0
    %3163 = vmatprep.subr.mxu0 0.0
    %3164 = vmatpush1.msra.mxu0 0.0
    %3165 = vmatprep.subr.mxu0 0.0
    %3166 = vmatpush1.msra.mxu0 0.0
    %3167 = vmatprep.subr.mxu0 0.0
    %3168 = vmatpush1.msra.mxu0 0.0
    %3169 = vmatprep.subr.mxu0 0.0
    %3170 = vmatpush1.msra.mxu0 0.0
    %3171 = vmatprep.subr.mxu0 0.0
    %3172 = vmatpush1.msra.mxu0 0.0
    %3173 = vmatprep.subr.mxu0 0.0
    %3174 = vmatpush1.msra.mxu0 0.0
    %3175 = vmatprep.subr.mxu0 0.0
    %3176 = vmatpush1.msra.mxu0 0.0
    %3177 = vmatprep.subr.mxu0 0.0
    %3178 = vmatpush1.msra.mxu0 0.0
    %3179 = vmatprep.subr.mxu0 0.0
    %3180 = vmatpush1.msra.mxu0 0.0
    %3181 = vmatprep.subr.mxu0 0.0
    %3182 = vmatpush1.msra.mxu0 0.0
    %3183 = vmatprep.subr.mxu0 0.0
    %3184 = vmatpush1.msra.mxu0 0.0
    %3185 = vmatprep.mubr.f32.mxu0 0.0
    %3186 = vmatmul.mubr.f32.gmra.mrb[0].mxu0 %v3119
    %v3187 = vpop.f32.mrb[0].mxu0
    %v3188 = vadd.f32 0.0, %v3187
    %v3189 = vpop.f32.mrb[0].mxu0
    %3190 = vdwg.mxu0
    %v3191 = vadd.f32 %v3118, %v3188
    %v3192 = vxor.u32 %v3191, 2147483648
    %v3193 = vmul.f32 %v3192, 1.442695
    %v3194 = vpow.pop %v3193
    %v3195 = vadd.f32 %v3194, 1.0
    %v3196 = vrcp.pop %v3195
    %v3197 = vmul.f32 1.0, %v3196
    %v3198 = vtanh.pop %v3191
    %v3199 = vmul.f32 %v3197, %v3003
    %3201 = vrot.lane.b32.xlu0 %v3198, 32
    %v3202 = vpop.permute.xlu0 %3201
    %v3204 = vmul.f32 %v3197, %v3202
    %3206 = vrot.lane.b32.xlu0 %v3204, 32
    %v3207 = vpop.permute.xlu0 %3206
    %v3209 = vadd.f32 %v3199, %v3207
    %v3210 = vtanh.pop %v3209
    %3212 = vrot.lane.b32.xlu0 %v3210, 32
    %v3213 = vpop.permute.xlu0 %3212
    %v3215 = vmul.f32 %v3197, %v3213
    %v3216 = vld [vmem:[#allocation3 + $0x20] sm:$0xff]
    %v3217 = vsel %vm307, %v3115, 0
    %3219 = vmatprep.subr.mxu0 0.0
    %3220 = vmatpush1.msra.mxu0 %v2500
    %3221 = vmatprep.subr.mxu0 0.0
    %3222 = vmatpush1.msra.mxu0 %v2501
    %3223 = vmatprep.subr.mxu0 0.0
    %3224 = vmatpush1.msra.mxu0 %v2502
    %3225 = vmatprep.subr.mxu0 0.0
    %3226 = vmatpush1.msra.mxu0 %v2503
    %3227 = vmatprep.subr.mxu0 0.0
    %3228 = vmatpush1.msra.mxu0 0.0
    %3229 = vmatprep.subr.mxu0 0.0
    %3230 = vmatpush1.msra.mxu0 0.0
    %3231 = vmatprep.subr.mxu0 0.0
    %3232 = vmatpush1.msra.mxu0 0.0
    %3233 = vmatprep.subr.mxu0 0.0
    %3234 = vmatpush1.msra.mxu0 0.0
    %3235 = vmatprep.subr.mxu0 0.0
    %3236 = vmatpush1.msra.mxu0 0.0
    %3237 = vmatprep.subr.mxu0 0.0
    %3238 = vmatpush1.msra.mxu0 0.0
    %3239 = vmatprep.subr.mxu0 0.0
    %3240 = vmatpush1.msra.mxu0 0.0
    %3241 = vmatprep.subr.mxu0 0.0
    %3242 = vmatpush1.msra.mxu0 0.0
    %3243 = vmatprep.subr.mxu0 0.0
    %3244 = vmatpush1.msra.mxu0 0.0
    %3245 = vmatprep.subr.mxu0 0.0
    %3246 = vmatpush1.msra.mxu0 0.0
    %3247 = vmatprep.subr.mxu0 0.0
    %3248 = vmatpush1.msra.mxu0 0.0
    %3249 = vmatprep.subr.mxu0 0.0
    %3250 = vmatpush1.msra.mxu0 0.0
    %3251 = vmatprep.subr.mxu0 0.0
    %3252 = vmatpush1.msra.mxu0 0.0
    %3253 = vmatprep.subr.mxu0 0.0
    %3254 = vmatpush1.msra.mxu0 0.0
    %3255 = vmatprep.subr.mxu0 0.0
    %3256 = vmatpush1.msra.mxu0 0.0
    %3257 = vmatprep.subr.mxu0 0.0
    %3258 = vmatpush1.msra.mxu0 0.0
    %3259 = vmatprep.subr.mxu0 0.0
    %3260 = vmatpush1.msra.mxu0 0.0
    %3261 = vmatprep.subr.mxu0 0.0
    %3262 = vmatpush1.msra.mxu0 0.0
    %3263 = vmatprep.subr.mxu0 0.0
    %3264 = vmatpush1.msra.mxu0 0.0
    %3265 = vmatprep.subr.mxu0 0.0
    %3266 = vmatpush1.msra.mxu0 0.0
    %3267 = vmatprep.subr.mxu0 0.0
    %3268 = vmatpush1.msra.mxu0 0.0
    %3269 = vmatprep.subr.mxu0 0.0
    %3270 = vmatpush1.msra.mxu0 0.0
    %3271 = vmatprep.subr.mxu0 0.0
    %3272 = vmatpush1.msra.mxu0 0.0
    %3273 = vmatprep.subr.mxu0 0.0
    %3274 = vmatpush1.msra.mxu0 0.0
    %3275 = vmatprep.subr.mxu0 0.0
    %3276 = vmatpush1.msra.mxu0 0.0
    %3277 = vmatprep.subr.mxu0 0.0
    %3278 = vmatpush1.msra.mxu0 0.0
    %3279 = vmatprep.subr.mxu0 0.0
    %3280 = vmatpush1.msra.mxu0 0.0
    %3281 = vmatprep.subr.mxu0 0.0
    %3282 = vmatpush1.msra.mxu0 0.0
    %3283 = vmatprep.mubr.f32.mxu0 0.0
    %3284 = vmatmul.mubr.f32.gmra.mrb[0].mxu0 %v3217
    %v3285 = vpop.f32.mrb[0].mxu0
    %v3286 = vadd.f32 0.0, %v3285
    %v3287 = vpop.f32.mrb[0].mxu0
    %3288 = vdwg.mxu0
    %v3289 = vadd.f32 %v3216, %v3286
    %v3290 = vxor.u32 %v3289, 2147483648
    %v3291 = vmul.f32 %v3290, 1.442695
    %v3292 = vpow.pop %v3291
    %v3293 = vadd.f32 %v3292, 1.0
    %v3294 = vrcp.pop %v3293
    %v3295 = vmul.f32 1.0, %v3294
    %v3296 = vtanh.pop %v3289
    %v3297 = vmul.f32 %v3295, %v3101
    %3299 = vrot.lane.b32.xlu0 %v3296, 32
    %v3300 = vpop.permute.xlu0 %3299
    %v3302 = vmul.f32 %v3295, %v3300
    %3304 = vrot.lane.b32.xlu0 %v3302, 32
    %v3305 = vpop.permute.xlu0 %3304
    %v3307 = vadd.f32 %v3297, %v3305
    %v3308 = vtanh.pop %v3307
    %3310 = vrot.lane.b32.xlu0 %v3308, 32
    %v3311 = vpop.permute.xlu0 %3310
    %v3313 = vmul.f32 %v3295, %v3311
    %3315 = vrot.lane.b32.xlu0 %v3215, 64
    %v3316 = vpop.permute.xlu0 %3315
    %3318 = vst.msk [vmem:[#allocation4 + $0x18] sm:$0xff] %vm307, %v3316
    %3320 = vrot.lane.b32.xlu0 %v3313, 64
    %v3321 = vpop.permute.xlu0 %3320
    %3323 = vst.msk [vmem:[#allocation5 + $0x20] sm:$0xff] %vm307, %v3321
    %v3324 = vld [vmem:[#allocation2 + $0x20] sm:$0xff]
    %v3325 = vsel %vm307, %v3316, 0
    %3327 = vmatprep.subr.mxu0 0.0
    %3328 = vmatpush1.msra.mxu0 %v2496
    %3329 = vmatprep.subr.mxu0 0.0
    %3330 = vmatpush1.msra.mxu0 %v2497
    %3331 = vmatprep.subr.mxu0 0.0
    %3332 = vmatpush1.msra.mxu0 %v2498
    %3333 = vmatprep.subr.mxu0 0.0
    %3334 = vmatpush1.msra.mxu0 %v2499
    %3335 = vmatprep.subr.mxu0 0.0
    %3336 = vmatpush1.msra.mxu0 0.0
    %3337 = vmatprep.subr.mxu0 0.0
    %3338 = vmatpush1.msra.mxu0 0.0
    %3339 = vmatprep.subr.mxu0 0.0
    %3340 = vmatpush1.msra.mxu0 0.0
    %3341 = vmatprep.subr.mxu0 0.0
    %3342 = vmatpush1.msra.mxu0 0.0
    %3343 = vmatprep.subr.mxu0 0.0
    %3344 = vmatpush1.msra.mxu0 0.0
    %3345 = vmatprep.subr.mxu0 0.0
    %3346 = vmatpush1.msra.mxu0 0.0
    %3347 = vmatprep.subr.mxu0 0.0
    %3348 = vmatpush1.msra.mxu0 0.0
    %3349 = vmatprep.subr.mxu0 0.0
    %3350 = vmatpush1.msra.mxu0 0.0
    %3351 = vmatprep.subr.mxu0 0.0
    %3352 = vmatpush1.msra.mxu0 0.0
    %3353 = vmatprep.subr.mxu0 0.0
    %3354 = vmatpush1.msra.mxu0 0.0
    %3355 = vmatprep.subr.mxu0 0.0
    %3356 = vmatpush1.msra.mxu0 0.0
    %3357 = vmatprep.subr.mxu0 0.0
    %3358 = vmatpush1.msra.mxu0 0.0
    %3359 = vmatprep.subr.mxu0 0.0
    %3360 = vmatpush1.msra.mxu0 0.0
    %3361 = vmatprep.subr.mxu0 0.0
    %3362 = vmatpush1.msra.mxu0 0.0
    %3363 = vmatprep.subr.mxu0 0.0
    %3364 = vmatpush1.msra.mxu0 0.0
    %3365 = vmatprep.subr.mxu0 0.0
    %3366 = vmatpush1.msra.mxu0 0.0
    %3367 = vmatprep.subr.mxu0 0.0
    %3368 = vmatpush1.msra.mxu0 0.0
    %3369 = vmatprep.subr.mxu0 0.0
    %3370 = vmatpush1.msra.mxu0 0.0
    %3371 = vmatprep.subr.mxu0 0.0
    %3372 = vmatpush1.msra.mxu0 0.0
    %3373 = vmatprep.subr.mxu0 0.0
    %3374 = vmatpush1.msra.mxu0 0.0
    %3375 = vmatprep.subr.mxu0 0.0
    %3376 = vmatpush1.msra.mxu0 0.0
    %3377 = vmatprep.subr.mxu0 0.0
    %3378 = vmatpush1.msra.mxu0 0.0
    %3379 = vmatprep.subr.mxu0 0.0
    %3380 = vmatpush1.msra.mxu0 0.0
    %3381 = vmatprep.subr.mxu0 0.0
    %3382 = vmatpush1.msra.mxu0 0.0
    %3383 = vmatprep.subr.mxu0 0.0
    %3384 = vmatpush1.msra.mxu0 0.0
    %3385 = vmatprep.subr.mxu0 0.0
    %3386 = vmatpush1.msra.mxu0 0.0
    %3387 = vmatprep.subr.mxu0 0.0
    %3388 = vmatpush1.msra.mxu0 0.0
    %3389 = vmatprep.subr.mxu0 0.0
    %3390 = vmatpush1.msra.mxu0 0.0
    %3391 = vmatprep.mubr.f32.mxu0 0.0
    %3392 = vmatmul.mubr.f32.gmra.mrb[0].mxu0 %v3325
    %v3393 = vpop.f32.mrb[0].mxu0
    %v3394 = vadd.f32 0.0, %v3393
    %v3395 = vpop.f32.mrb[0].mxu0
    %3396 = vdwg.mxu0
    %v3397 = vadd.f32 %v3324, %v3394
    %v3398 = vxor.u32 %v3397, 2147483648
    %v3399 = vmul.f32 %v3398, 1.442695
    %v3400 = vpow.pop %v3399
    %v3401 = vadd.f32 %v3400, 1.0
    %v3402 = vrcp.pop %v3401
    %v3403 = vmul.f32 1.0, %v3402
    %v3404 = vtanh.pop %v3397
    %v3405 = vmul.f32 %v3403, %v3209
    %3407 = vrot.lane.b32.xlu0 %v3404, 32
    %v3408 = vpop.permute.xlu0 %3407
    %v3410 = vmul.f32 %v3403, %v3408
    %3412 = vrot.lane.b32.xlu0 %v3410, 32
    %v3413 = vpop.permute.xlu0 %3412
    %v3415 = vadd.f32 %v3405, %v3413
    %v3416 = vtanh.pop %v3415
    %3418 = vrot.lane.b32.xlu0 %v3416, 32
    %v3419 = vpop.permute.xlu0 %3418
    %v3421 = vmul.f32 %v3403, %v3419
    %v3422 = vld [vmem:[#allocation3 + $0x18] sm:$0xff]
    %v3423 = vsel %vm307, %v3321, 0
    %3425 = vmatprep.subr.mxu0 0.0
    %3426 = vmatpush1.msra.mxu0 %v2500
    %3427 = vmatprep.subr.mxu0 0.0
    %3428 = vmatpush1.msra.mxu0 %v2501
    %3429 = vmatprep.subr.mxu0 0.0
    %3430 = vmatpush1.msra.mxu0 %v2502
    %3431 = vmatprep.subr.mxu0 0.0
    %3432 = vmatpush1.msra.mxu0 %v2503
    %3433 = vmatprep.subr.mxu0 0.0
    %3434 = vmatpush1.msra.mxu0 0.0
    %3435 = vmatprep.subr.mxu0 0.0
    %3436 = vmatpush1.msra.mxu0 0.0
    %3437 = vmatprep.subr.mxu0 0.0
    %3438 = vmatpush1.msra.mxu0 0.0
    %3439 = vmatprep.subr.mxu0 0.0
    %3440 = vmatpush1.msra.mxu0 0.0
    %3441 = vmatprep.subr.mxu0 0.0
    %3442 = vmatpush1.msra.mxu0 0.0
    %3443 = vmatprep.subr.mxu0 0.0
    %3444 = vmatpush1.msra.mxu0 0.0
    %3445 = vmatprep.subr.mxu0 0.0
    %3446 = vmatpush1.msra.mxu0 0.0
    %3447 = vmatprep.subr.mxu0 0.0
    %3448 = vmatpush1.msra.mxu0 0.0
    %3449 = vmatprep.subr.mxu0 0.0
    %3450 = vmatpush1.msra.mxu0 0.0
    %3451 = vmatprep.subr.mxu0 0.0
    %3452 = vmatpush1.msra.mxu0 0.0
    %3453 = vmatprep.subr.mxu0 0.0
    %3454 = vmatpush1.msra.mxu0 0.0
    %3455 = vmatprep.subr.mxu0 0.0
    %3456 = vmatpush1.msra.mxu0 0.0
    %3457 = vmatprep.subr.mxu0 0.0
    %3458 = vmatpush1.msra.mxu0 0.0
    %3459 = vmatprep.subr.mxu0 0.0
    %3460 = vmatpush1.msra.mxu0 0.0
    %3461 = vmatprep.subr.mxu0 0.0
    %3462 = vmatpush1.msra.mxu0 0.0
    %3463 = vmatprep.subr.mxu0 0.0
    %3464 = vmatpush1.msra.mxu0 0.0
    %3465 = vmatprep.subr.mxu0 0.0
    %3466 = vmatpush1.msra.mxu0 0.0
    %3467 = vmatprep.subr.mxu0 0.0
    %3468 = vmatpush1.msra.mxu0 0.0
    %3469 = vmatprep.subr.mxu0 0.0
    %3470 = vmatpush1.msra.mxu0 0.0
    %3471 = vmatprep.subr.mxu0 0.0
    %3472 = vmatpush1.msra.mxu0 0.0
    %3473 = vmatprep.subr.mxu0 0.0
    %3474 = vmatpush1.msra.mxu0 0.0
    %3475 = vmatprep.subr.mxu0 0.0
    %3476 = vmatpush1.msra.mxu0 0.0
    %3477 = vmatprep.subr.mxu0 0.0
    %3478 = vmatpush1.msra.mxu0 0.0
    %3479 = vmatprep.subr.mxu0 0.0
    %3480 = vmatpush1.msra.mxu0 0.0
    %3481 = vmatprep.subr.mxu0 0.0
    %3482 = vmatpush1.msra.mxu0 0.0
    %3483 = vmatprep.subr.mxu0 0.0
    %3484 = vmatpush1.msra.mxu0 0.0
    %3485 = vmatprep.subr.mxu0 0.0
    %3486 = vmatpush1.msra.mxu0 0.0
    %3487 = vmatprep.subr.mxu0 0.0
    %3488 = vmatpush1.msra.mxu0 0.0
    %3489 = vmatprep.mubr.f32.mxu0 0.0
    %3490 = vmatmul.mubr.f32.gmra.mrb[0].mxu0 %v3423
    %v3491 = vpop.f32.mrb[0].mxu0
    %v3492 = vadd.f32 0.0, %v3491
    %v3493 = vpop.f32.mrb[0].mxu0
    %3494 = vdwg.mxu0
    %v3495 = vadd.f32 %v3422, %v3492
    %v3496 = vxor.u32 %v3495, 2147483648
    %v3497 = vmul.f32 %v3496, 1.442695
    %v3498 = vpow.pop %v3497
    %v3499 = vadd.f32 %v3498, 1.0
    %v3500 = vrcp.pop %v3499
    %v3501 = vmul.f32 1.0, %v3500
    %v3502 = vtanh.pop %v3495
    %v3503 = vmul.f32 %v3501, %v3307
    %3505 = vrot.lane.b32.xlu0 %v3502, 32
    %v3506 = vpop.permute.xlu0 %3505
    %v3508 = vmul.f32 %v3501, %v3506
    %3510 = vrot.lane.b32.xlu0 %v3508, 32
    %v3511 = vpop.permute.xlu0 %3510
    %v3513 = vadd.f32 %v3503, %v3511
    %v3514 = vtanh.pop %v3513
    %3516 = vrot.lane.b32.xlu0 %v3514, 32
    %v3517 = vpop.permute.xlu0 %3516
    %v3519 = vmul.f32 %v3501, %v3517
    %3521 = vrot.lane.b32.xlu0 %v3421, 64
    %v3522 = vpop.permute.xlu0 %3521
    %3524 = vst.msk [vmem:[#allocation4 + $0x20] sm:$0xff] %vm307, %v3522
    %3526 = vrot.lane.b32.xlu0 %v3519, 64
    %v3527 = vpop.permute.xlu0 %3526
    %3529 = vst.msk [vmem:[#allocation5 + $0x18] sm:$0xff] %vm307, %v3527
    %v3530 = vld [vmem:[#allocation2 + $0x28] sm:$0xff]
    %v3531 = vsel %vm307, %v3522, 0
    %3533 = vmatprep.subr.mxu0 0.0
    %3534 = vmatpush1.msra.mxu0 %v2496
    %3535 = vmatprep.subr.mxu0 0.0
    %3536 = vmatpush1.msra.mxu0 %v2497
    %3537 = vmatprep.subr.mxu0 0.0
    %3538 = vmatpush1.msra.mxu0 %v2498
    %3539 = vmatprep.subr.mxu0 0.0
    %3540 = vmatpush1.msra.mxu0 %v2499
    %3541 = vmatprep.subr.mxu0 0.0
    %3542 = vmatpush1.msra.mxu0 0.0
    %3543 = vmatprep.subr.mxu0 0.0
    %3544 = vmatpush1.msra.mxu0 0.0
    %3545 = vmatprep.subr.mxu0 0.0
    %3546 = vmatpush1.msra.mxu0 0.0
    %3547 = vmatprep.subr.mxu0 0.0
    %3548 = vmatpush1.msra.mxu0 0.0
    %3549 = vmatprep.subr.mxu0 0.0
    %3550 = vmatpush1.msra.mxu0 0.0
    %3551 = vmatprep.subr.mxu0 0.0
    %3552 = vmatpush1.msra.mxu0 0.0
    %3553 = vmatprep.subr.mxu0 0.0
    %3554 = vmatpush1.msra.mxu0 0.0
    %3555 = vmatprep.subr.mxu0 0.0
    %3556 = vmatpush1.msra.mxu0 0.0
    %3557 = vmatprep.subr.mxu0 0.0
    %3558 = vmatpush1.msra.mxu0 0.0
    %3559 = vmatprep.subr.mxu0 0.0
    %3560 = vmatpush1.msra.mxu0 0.0
    %3561 = vmatprep.subr.mxu0 0.0
    %3562 = vmatpush1.msra.mxu0 0.0
    %3563 = vmatprep.subr.mxu0 0.0
    %3564 = vmatpush1.msra.mxu0 0.0
    %3565 = vmatprep.subr.mxu0 0.0
    %3566 = vmatpush1.msra.mxu0 0.0
    %3567 = vmatprep.subr.mxu0 0.0
    %3568 = vmatpush1.msra.mxu0 0.0
    %3569 = vmatprep.subr.mxu0 0.0
    %3570 = vmatpush1.msra.mxu0 0.0
    %3571 = vmatprep.subr.mxu0 0.0
    %3572 = vmatpush1.msra.mxu0 0.0
    %3573 = vmatprep.subr.mxu0 0.0
    %3574 = vmatpush1.msra.mxu0 0.0
    %3575 = vmatprep.subr.mxu0 0.0
    %3576 = vmatpush1.msra.mxu0 0.0
    %3577 = vmatprep.subr.mxu0 0.0
    %3578 = vmatpush1.msra.mxu0 0.0
    %3579 = vmatprep.subr.mxu0 0.0
    %3580 = vmatpush1.msra.mxu0 0.0
    %3581 = vmatprep.subr.mxu0 0.0
    %3582 = vmatpush1.msra.mxu0 0.0
    %3583 = vmatprep.subr.mxu0 0.0
    %3584 = vmatpush1.msra.mxu0 0.0
    %3585 = vmatprep.subr.mxu0 0.0
    %3586 = vmatpush1.msra.mxu0 0.0
    %3587 = vmatprep.subr.mxu0 0.0
    %3588 = vmatpush1.msra.mxu0 0.0
    %3589 = vmatprep.subr.mxu0 0.0
    %3590 = vmatpush1.msra.mxu0 0.0
    %3591 = vmatprep.subr.mxu0 0.0
    %3592 = vmatpush1.msra.mxu0 0.0
    %3593 = vmatprep.subr.mxu0 0.0
    %3594 = vmatpush1.msra.mxu0 0.0
    %3595 = vmatprep.subr.mxu0 0.0
    %3596 = vmatpush1.msra.mxu0 0.0
    %3597 = vmatprep.mubr.f32.mxu0 0.0
    %3598 = vmatmul.mubr.f32.gmra.mrb[0].mxu0 %v3531
    %v3599 = vpop.f32.mrb[0].mxu0
    %v3600 = vadd.f32 0.0, %v3599
    %v3601 = vpop.f32.mrb[0].mxu0
    %3602 = vdwg.mxu0
    %v3603 = vadd.f32 %v3530, %v3600
    %v3604 = vxor.u32 %v3603, 2147483648
    %v3605 = vmul.f32 %v3604, 1.442695
    %v3606 = vpow.pop %v3605
    %v3607 = vadd.f32 %v3606, 1.0
    %v3608 = vrcp.pop %v3607
    %v3609 = vmul.f32 1.0, %v3608
    %v3610 = vtanh.pop %v3603
    %v3611 = vmul.f32 %v3609, %v3415
    %3613 = vrot.lane.b32.xlu0 %v3610, 32
    %v3614 = vpop.permute.xlu0 %3613
    %v3616 = vmul.f32 %v3609, %v3614
    %3618 = vrot.lane.b32.xlu0 %v3616, 32
    %v3619 = vpop.permute.xlu0 %3618
    %v3621 = vadd.f32 %v3611, %v3619
    %v3622 = vtanh.pop %v3621
    %3624 = vrot.lane.b32.xlu0 %v3622, 32
    %v3625 = vpop.permute.xlu0 %3624
    %v3627 = vmul.f32 %v3609, %v3625
    %v3628 = vld [vmem:[#allocation3 + $0x10] sm:$0xff]
    %v3629 = vsel %vm307, %v3527, 0
    %3631 = vmatprep.subr.mxu0 0.0
    %3632 = vmatpush1.msra.mxu0 %v2500
    %3633 = vmatprep.subr.mxu0 0.0
    %3634 = vmatpush1.msra.mxu0 %v2501
    %3635 = vmatprep.subr.mxu0 0.0
    %3636 = vmatpush1.msra.mxu0 %v2502
    %3637 = vmatprep.subr.mxu0 0.0
    %3638 = vmatpush1.msra.mxu0 %v2503
    %3639 = vmatprep.subr.mxu0 0.0
    %3640 = vmatpush1.msra.mxu0 0.0
    %3641 = vmatprep.subr.mxu0 0.0
    %3642 = vmatpush1.msra.mxu0 0.0
    %3643 = vmatprep.subr.mxu0 0.0
    %3644 = vmatpush1.msra.mxu0 0.0
    %3645 = vmatprep.subr.mxu0 0.0
    %3646 = vmatpush1.msra.mxu0 0.0
    %3647 = vmatprep.subr.mxu0 0.0
    %3648 = vmatpush1.msra.mxu0 0.0
    %3649 = vmatprep.subr.mxu0 0.0
    %3650 = vmatpush1.msra.mxu0 0.0
    %3651 = vmatprep.subr.mxu0 0.0
    %3652 = vmatpush1.msra.mxu0 0.0
    %3653 = vmatprep.subr.mxu0 0.0
    %3654 = vmatpush1.msra.mxu0 0.0
    %3655 = vmatprep.subr.mxu0 0.0
    %3656 = vmatpush1.msra.mxu0 0.0
    %3657 = vmatprep.subr.mxu0 0.0
    %3658 = vmatpush1.msra.mxu0 0.0
    %3659 = vmatprep.subr.mxu0 0.0
    %3660 = vmatpush1.msra.mxu0 0.0
    %3661 = vmatprep.subr.mxu0 0.0
    %3662 = vmatpush1.msra.mxu0 0.0
    %3663 = vmatprep.subr.mxu0 0.0
    %3664 = vmatpush1.msra.mxu0 0.0
    %3665 = vmatprep.subr.mxu0 0.0
    %3666 = vmatpush1.msra.mxu0 0.0
    %3667 = vmatprep.subr.mxu0 0.0
    %3668 = vmatpush1.msra.mxu0 0.0
    %3669 = vmatprep.subr.mxu0 0.0
    %3670 = vmatpush1.msra.mxu0 0.0
    %3671 = vmatprep.subr.mxu0 0.0
    %3672 = vmatpush1.msra.mxu0 0.0
    %3673 = vmatprep.subr.mxu0 0.0
    %3674 = vmatpush1.msra.mxu0 0.0
    %3675 = vmatprep.subr.mxu0 0.0
    %3676 = vmatpush1.msra.mxu0 0.0
    %3677 = vmatprep.subr.mxu0 0.0
    %3678 = vmatpush1.msra.mxu0 0.0
    %3679 = vmatprep.subr.mxu0 0.0
    %3680 = vmatpush1.msra.mxu0 0.0
    %3681 = vmatprep.subr.mxu0 0.0
    %3682 = vmatpush1.msra.mxu0 0.0
    %3683 = vmatprep.subr.mxu0 0.0
    %3684 = vmatpush1.msra.mxu0 0.0
    %3685 = vmatprep.subr.mxu0 0.0
    %3686 = vmatpush1.msra.mxu0 0.0
    %3687 = vmatprep.subr.mxu0 0.0
    %3688 = vmatpush1.msra.mxu0 0.0
    %3689 = vmatprep.subr.mxu0 0.0
    %3690 = vmatpush1.msra.mxu0 0.0
    %3691 = vmatprep.subr.mxu0 0.0
    %3692 = vmatpush1.msra.mxu0 0.0
    %3693 = vmatprep.subr.mxu0 0.0
    %3694 = vmatpush1.msra.mxu0 0.0
    %3695 = vmatprep.mubr.f32.mxu0 0.0
    %3696 = vmatmul.mubr.f32.gmra.mrb[0].mxu0 %v3629
    %v3697 = vpop.f32.mrb[0].mxu0
    %v3698 = vadd.f32 0.0, %v3697
    %v3699 = vpop.f32.mrb[0].mxu0
    %3700 = vdwg.mxu0
    %v3701 = vadd.f32 %v3628, %v3698
    %v3702 = vxor.u32 %v3701, 2147483648
    %v3703 = vmul.f32 %v3702, 1.442695
    %v3704 = vpow.pop %v3703
    %v3705 = vadd.f32 %v3704, 1.0
    %v3706 = vrcp.pop %v3705
    %v3707 = vmul.f32 1.0, %v3706
    %v3708 = vtanh.pop %v3701
    %v3709 = vmul.f32 %v3707, %v3513
    %3711 = vrot.lane.b32.xlu0 %v3708, 32
    %v3712 = vpop.permute.xlu0 %3711
    %v3714 = vmul.f32 %v3707, %v3712
    %3716 = vrot.lane.b32.xlu0 %v3714, 32
    %v3717 = vpop.permute.xlu0 %3716
    %v3719 = vadd.f32 %v3709, %v3717
    %v3720 = vtanh.pop %v3719
    %3722 = vrot.lane.b32.xlu0 %v3720, 32
    %v3723 = vpop.permute.xlu0 %3722
    %v3725 = vmul.f32 %v3707, %v3723
    %3727 = vrot.lane.b32.xlu0 %v3627, 64
    %v3728 = vpop.permute.xlu0 %3727
    %3730 = vst.msk [vmem:[#allocation4 + $0x28] sm:$0xff] %vm307, %v3728
    %3732 = vrot.lane.b32.xlu0 %v3725, 64
    %v3733 = vpop.permute.xlu0 %3732
    %3735 = vst.msk [vmem:[#allocation5 + $0x10] sm:$0xff] %vm307, %v3733
    %v3736 = vld [vmem:[#allocation2 + $0x30] sm:$0xff]
    %v3737 = vsel %vm307, %v3728, 0
    %3739 = vmatprep.subr.mxu0 0.0
    %3740 = vmatpush1.msra.mxu0 %v2496
    %3741 = vmatprep.subr.mxu0 0.0
    %3742 = vmatpush1.msra.mxu0 %v2497
    %3743 = vmatprep.subr.mxu0 0.0
    %3744 = vmatpush1.msra.mxu0 %v2498
    %3745 = vmatprep.subr.mxu0 0.0
    %3746 = vmatpush1.msra.mxu0 %v2499
    %3747 = vmatprep.subr.mxu0 0.0
    %3748 = vmatpush1.msra.mxu0 0.0
    %3749 = vmatprep.subr.mxu0 0.0
    %3750 = vmatpush1.msra.mxu0 0.0
    %3751 = vmatprep.subr.mxu0 0.0
    %3752 = vmatpush1.msra.mxu0 0.0
    %3753 = vmatprep.subr.mxu0 0.0
    %3754 = vmatpush1.msra.mxu0 0.0
    %3755 = vmatprep.subr.mxu0 0.0
    %3756 = vmatpush1.msra.mxu0 0.0
    %3757 = vmatprep.subr.mxu0 0.0
    %3758 = vmatpush1.msra.mxu0 0.0
    %3759 = vmatprep.subr.mxu0 0.0
    %3760 = vmatpush1.msra.mxu0 0.0
    %3761 = vmatprep.subr.mxu0 0.0
    %3762 = vmatpush1.msra.mxu0 0.0
    %3763 = vmatprep.subr.mxu0 0.0
    %3764 = vmatpush1.msra.mxu0 0.0
    %3765 = vmatprep.subr.mxu0 0.0
    %3766 = vmatpush1.msra.mxu0 0.0
    %3767 = vmatprep.subr.mxu0 0.0
    %3768 = vmatpush1.msra.mxu0 0.0
    %3769 = vmatprep.subr.mxu0 0.0
    %3770 = vmatpush1.msra.mxu0 0.0
    %3771 = vmatprep.subr.mxu0 0.0
    %3772 = vmatpush1.msra.mxu0 0.0
    %3773 = vmatprep.subr.mxu0 0.0
    %3774 = vmatpush1.msra.mxu0 0.0
    %3775 = vmatprep.subr.mxu0 0.0
    %3776 = vmatpush1.msra.mxu0 0.0
    %3777 = vmatprep.subr.mxu0 0.0
    %3778 = vmatpush1.msra.mxu0 0.0
    %3779 = vmatprep.subr.mxu0 0.0
    %3780 = vmatpush1.msra.mxu0 0.0
    %3781 = vmatprep.subr.mxu0 0.0
    %3782 = vmatpush1.msra.mxu0 0.0
    %3783 = vmatprep.subr.mxu0 0.0
    %3784 = vmatpush1.msra.mxu0 0.0
    %3785 = vmatprep.subr.mxu0 0.0
    %3786 = vmatpush1.msra.mxu0 0.0
    %3787 = vmatprep.subr.mxu0 0.0
    %3788 = vmatpush1.msra.mxu0 0.0
    %3789 = vmatprep.subr.mxu0 0.0
    %3790 = vmatpush1.msra.mxu0 0.0
    %3791 = vmatprep.subr.mxu0 0.0
    %3792 = vmatpush1.msra.mxu0 0.0
    %3793 = vmatprep.subr.mxu0 0.0
    %3794 = vmatpush1.msra.mxu0 0.0
    %3795 = vmatprep.subr.mxu0 0.0
    %3796 = vmatpush1.msra.mxu0 0.0
    %3797 = vmatprep.subr.mxu0 0.0
    %3798 = vmatpush1.msra.mxu0 0.0
    %3799 = vmatprep.subr.mxu0 0.0
    %3800 = vmatpush1.msra.mxu0 0.0
    %3801 = vmatprep.subr.mxu0 0.0
    %3802 = vmatpush1.msra.mxu0 0.0
    %3803 = vmatprep.mubr.f32.mxu0 0.0
    %3804 = vmatmul.mubr.f32.gmra.mrb[0].mxu0 %v3737
    %v3805 = vpop.f32.mrb[0].mxu0
    %v3806 = vadd.f32 0.0, %v3805
    %v3807 = vpop.f32.mrb[0].mxu0
    %3808 = vdwg.mxu0
    %v3809 = vadd.f32 %v3736, %v3806
    %v3810 = vxor.u32 %v3809, 2147483648
    %v3811 = vmul.f32 %v3810, 1.442695
    %v3812 = vpow.pop %v3811
    %v3813 = vadd.f32 %v3812, 1.0
    %v3814 = vrcp.pop %v3813
    %v3815 = vmul.f32 1.0, %v3814
    %v3816 = vtanh.pop %v3809
    %v3817 = vmul.f32 %v3815, %v3621
    %3819 = vrot.lane.b32.xlu0 %v3816, 32
    %v3820 = vpop.permute.xlu0 %3819
    %v3822 = vmul.f32 %v3815, %v3820
    %3824 = vrot.lane.b32.xlu0 %v3822, 32
    %v3825 = vpop.permute.xlu0 %3824
    %v3827 = vadd.f32 %v3817, %v3825
    %v3828 = vtanh.pop %v3827
    %3830 = vrot.lane.b32.xlu0 %v3828, 32
    %v3831 = vpop.permute.xlu0 %3830
    %v3833 = vmul.f32 %v3815, %v3831
    %v3834 = vld [vmem:[#allocation3 + $0x8] sm:$0xff]
    %v3835 = vsel %vm307, %v3733, 0
    %3837 = vmatprep.subr.mxu0 0.0
    %3838 = vmatpush1.msra.mxu0 %v2500
    %3839 = vmatprep.subr.mxu0 0.0
    %3840 = vmatpush1.msra.mxu0 %v2501
    %3841 = vmatprep.subr.mxu0 0.0
    %3842 = vmatpush1.msra.mxu0 %v2502
    %3843 = vmatprep.subr.mxu0 0.0
    %3844 = vmatpush1.msra.mxu0 %v2503
    %3845 = vmatprep.subr.mxu0 0.0
    %3846 = vmatpush1.msra.mxu0 0.0
    %3847 = vmatprep.subr.mxu0 0.0
    %3848 = vmatpush1.msra.mxu0 0.0
    %3849 = vmatprep.subr.mxu0 0.0
    %3850 = vmatpush1.msra.mxu0 0.0
    %3851 = vmatprep.subr.mxu0 0.0
    %3852 = vmatpush1.msra.mxu0 0.0
    %3853 = vmatprep.subr.mxu0 0.0
    %3854 = vmatpush1.msra.mxu0 0.0
    %3855 = vmatprep.subr.mxu0 0.0
    %3856 = vmatpush1.msra.mxu0 0.0
    %3857 = vmatprep.subr.mxu0 0.0
    %3858 = vmatpush1.msra.mxu0 0.0
    %3859 = vmatprep.subr.mxu0 0.0
    %3860 = vmatpush1.msra.mxu0 0.0
    %3861 = vmatprep.subr.mxu0 0.0
    %3862 = vmatpush1.msra.mxu0 0.0
    %3863 = vmatprep.subr.mxu0 0.0
    %3864 = vmatpush1.msra.mxu0 0.0
    %3865 = vmatprep.subr.mxu0 0.0
    %3866 = vmatpush1.msra.mxu0 0.0
    %3867 = vmatprep.subr.mxu0 0.0
    %3868 = vmatpush1.msra.mxu0 0.0
    %3869 = vmatprep.subr.mxu0 0.0
    %3870 = vmatpush1.msra.mxu0 0.0
    %3871 = vmatprep.subr.mxu0 0.0
    %3872 = vmatpush1.msra.mxu0 0.0
    %3873 = vmatprep.subr.mxu0 0.0
    %3874 = vmatpush1.msra.mxu0 0.0
    %3875 = vmatprep.subr.mxu0 0.0
    %3876 = vmatpush1.msra.mxu0 0.0
    %3877 = vmatprep.subr.mxu0 0.0
    %3878 = vmatpush1.msra.mxu0 0.0
    %3879 = vmatprep.subr.mxu0 0.0
    %3880 = vmatpush1.msra.mxu0 0.0
    %3881 = vmatprep.subr.mxu0 0.0
    %3882 = vmatpush1.msra.mxu0 0.0
    %3883 = vmatprep.subr.mxu0 0.0
    %3884 = vmatpush1.msra.mxu0 0.0
    %3885 = vmatprep.subr.mxu0 0.0
    %3886 = vmatpush1.msra.mxu0 0.0
    %3887 = vmatprep.subr.mxu0 0.0
    %3888 = vmatpush1.msra.mxu0 0.0
    %3889 = vmatprep.subr.mxu0 0.0
    %3890 = vmatpush1.msra.mxu0 0.0
    %3891 = vmatprep.subr.mxu0 0.0
    %3892 = vmatpush1.msra.mxu0 0.0
    %3893 = vmatprep.subr.mxu0 0.0
    %3894 = vmatpush1.msra.mxu0 0.0
    %3895 = vmatprep.subr.mxu0 0.0
    %3896 = vmatpush1.msra.mxu0 0.0
    %3897 = vmatprep.subr.mxu0 0.0
    %3898 = vmatpush1.msra.mxu0 0.0
    %3899 = vmatprep.subr.mxu0 0.0
    %3900 = vmatpush1.msra.mxu0 0.0
    %3901 = vmatprep.mubr.f32.mxu0 0.0
    %3902 = vmatmul.mubr.f32.gmra.mrb[0].mxu0 %v3835
    %v3903 = vpop.f32.mrb[0].mxu0
    %v3904 = vadd.f32 0.0, %v3903
    %v3905 = vpop.f32.mrb[0].mxu0
    %3906 = vdwg.mxu0
    %v3907 = vadd.f32 %v3834, %v3904
    %v3908 = vxor.u32 %v3907, 2147483648
    %v3909 = vmul.f32 %v3908, 1.442695
    %v3910 = vpow.pop %v3909
    %v3911 = vadd.f32 %v3910, 1.0
    %v3912 = vrcp.pop %v3911
    %v3913 = vmul.f32 1.0, %v3912
    %v3914 = vtanh.pop %v3907
    %v3915 = vmul.f32 %v3913, %v3719
    %3917 = vrot.lane.b32.xlu0 %v3914, 32
    %v3918 = vpop.permute.xlu0 %3917
    %v3920 = vmul.f32 %v3913, %v3918
    %3922 = vrot.lane.b32.xlu0 %v3920, 32
    %v3923 = vpop.permute.xlu0 %3922
    %v3925 = vadd.f32 %v3915, %v3923
    %v3926 = vtanh.pop %v3925
    %3928 = vrot.lane.b32.xlu0 %v3926, 32
    %v3929 = vpop.permute.xlu0 %3928
    %v3931 = vmul.f32 %v3913, %v3929
    %3933 = vrot.lane.b32.xlu0 %v3833, 64
    %v3934 = vpop.permute.xlu0 %3933
    %3936 = vst.msk [vmem:[#allocation4 + $0x30] sm:$0xff] %vm307, %v3934
    %3938 = vrot.lane.b32.xlu0 %v3931, 64
    %v3939 = vpop.permute.xlu0 %3938
    %3941 = vst.msk [vmem:[#allocation5 + $0x8] sm:$0xff] %vm307, %v3939
    %v3942 = vld [vmem:[#allocation2 + $0x38] sm:$0xff]
    %v3943 = vsel %vm307, %v3934, 0
    %3945 = vmatprep.subr.mxu0 0.0
    %3946 = vmatpush1.msra.mxu0 %v2496
    %3947 = vmatprep.subr.mxu0 0.0
    %3948 = vmatpush1.msra.mxu0 %v2497
    %3949 = vmatprep.subr.mxu0 0.0
    %3950 = vmatpush1.msra.mxu0 %v2498
    %3951 = vmatprep.subr.mxu0 0.0
    %3952 = vmatpush1.msra.mxu0 %v2499
    %3953 = vmatprep.subr.mxu0 0.0
    %3954 = vmatpush1.msra.mxu0 0.0
    %3955 = vmatprep.subr.mxu0 0.0
    %3956 = vmatpush1.msra.mxu0 0.0
    %3957 = vmatprep.subr.mxu0 0.0
    %3958 = vmatpush1.msra.mxu0 0.0
    %3959 = vmatprep.subr.mxu0 0.0
    %3960 = vmatpush1.msra.mxu0 0.0
    %3961 = vmatprep.subr.mxu0 0.0
    %3962 = vmatpush1.msra.mxu0 0.0
    %3963 = vmatprep.subr.mxu0 0.0
    %3964 = vmatpush1.msra.mxu0 0.0
    %3965 = vmatprep.subr.mxu0 0.0
    %3966 = vmatpush1.msra.mxu0 0.0
    %3967 = vmatprep.subr.mxu0 0.0
    %3968 = vmatpush1.msra.mxu0 0.0
    %3969 = vmatprep.subr.mxu0 0.0
    %3970 = vmatpush1.msra.mxu0 0.0
    %3971 = vmatprep.subr.mxu0 0.0
    %3972 = vmatpush1.msra.mxu0 0.0
    %3973 = vmatprep.subr.mxu0 0.0
    %3974 = vmatpush1.msra.mxu0 0.0
    %3975 = vmatprep.subr.mxu0 0.0
    %3976 = vmatpush1.msra.mxu0 0.0
    %3977 = vmatprep.subr.mxu0 0.0
    %3978 = vmatpush1.msra.mxu0 0.0
    %3979 = vmatprep.subr.mxu0 0.0
    %3980 = vmatpush1.msra.mxu0 0.0
    %3981 = vmatprep.subr.mxu0 0.0
    %3982 = vmatpush1.msra.mxu0 0.0
    %3983 = vmatprep.subr.mxu0 0.0
    %3984 = vmatpush1.msra.mxu0 0.0
    %3985 = vmatprep.subr.mxu0 0.0
    %3986 = vmatpush1.msra.mxu0 0.0
    %3987 = vmatprep.subr.mxu0 0.0
    %3988 = vmatpush1.msra.mxu0 0.0
    %3989 = vmatprep.subr.mxu0 0.0
    %3990 = vmatpush1.msra.mxu0 0.0
    %3991 = vmatprep.subr.mxu0 0.0
    %3992 = vmatpush1.msra.mxu0 0.0
    %3993 = vmatprep.subr.mxu0 0.0
    %3994 = vmatpush1.msra.mxu0 0.0
    %3995 = vmatprep.subr.mxu0 0.0
    %3996 = vmatpush1.msra.mxu0 0.0
    %3997 = vmatprep.subr.mxu0 0.0
    %3998 = vmatpush1.msra.mxu0 0.0
    %3999 = vmatprep.subr.mxu0 0.0
    %4000 = vmatpush1.msra.mxu0 0.0
    %4001 = vmatprep.subr.mxu0 0.0
    %4002 = vmatpush1.msra.mxu0 0.0
    %4003 = vmatprep.subr.mxu0 0.0
    %4004 = vmatpush1.msra.mxu0 0.0
    %4005 = vmatprep.subr.mxu0 0.0
    %4006 = vmatpush1.msra.mxu0 0.0
    %4007 = vmatprep.subr.mxu0 0.0
    %4008 = vmatpush1.msra.mxu0 0.0
    %4009 = vmatprep.mubr.f32.mxu0 0.0
    %4010 = vmatmul.mubr.f32.gmra.mrb[0].mxu0 %v3943
    %v4011 = vpop.f32.mrb[0].mxu0
    %v4012 = vadd.f32 0.0, %v4011
    %v4013 = vpop.f32.mrb[0].mxu0
    %4014 = vdwg.mxu0
    %v4015 = vadd.f32 %v3942, %v4012
    %v4016 = vxor.u32 %v4015, 2147483648
    %v4017 = vmul.f32 %v4016, 1.442695
    %v4018 = vpow.pop %v4017
    %v4019 = vadd.f32 %v4018, 1.0
    %v4020 = vrcp.pop %v4019
    %v4021 = vmul.f32 1.0, %v4020
    %v4022 = vtanh.pop %v4015
    %v4023 = vmul.f32 %v4021, %v3827
    %4025 = vrot.lane.b32.xlu0 %v4022, 32
    %v4026 = vpop.permute.xlu0 %4025
    %v4028 = vmul.f32 %v4021, %v4026
    %4030 = vrot.lane.b32.xlu0 %v4028, 32
    %v4031 = vpop.permute.xlu0 %4030
    %v4033 = vadd.f32 %v4023, %v4031
    %v4034 = vtanh.pop %v4033
    %4036 = vrot.lane.b32.xlu0 %v4034, 32
    %v4037 = vpop.permute.xlu0 %4036
    %v4039 = vmul.f32 %v4021, %v4037
    %v4040 = vld [vmem:[#allocation3] sm:$0xff]
    %v4041 = vsel %vm307, %v3939, 0
    %4043 = vmatprep.subr.mxu0 0.0
    %4044 = vmatpush1.msra.mxu0 %v2500
    %4045 = vmatprep.subr.mxu0 0.0
    %4046 = vmatpush1.msra.mxu0 %v2501
    %4047 = vmatprep.subr.mxu0 0.0
    %4048 = vmatpush1.msra.mxu0 %v2502
    %4049 = vmatprep.subr.mxu0 0.0
    %4050 = vmatpush1.msra.mxu0 %v2503
    %4051 = vmatprep.subr.mxu0 0.0
    %4052 = vmatpush1.msra.mxu0 0.0
    %4053 = vmatprep.subr.mxu0 0.0
    %4054 = vmatpush1.msra.mxu0 0.0
    %4055 = vmatprep.subr.mxu0 0.0
    %4056 = vmatpush1.msra.mxu0 0.0
    %4057 = vmatprep.subr.mxu0 0.0
    %4058 = vmatpush1.msra.mxu0 0.0
    %4059 = vmatprep.subr.mxu0 0.0
    %4060 = vmatpush1.msra.mxu0 0.0
    %4061 = vmatprep.subr.mxu0 0.0
    %4062 = vmatpush1.msra.mxu0 0.0
    %4063 = vmatprep.subr.mxu0 0.0
    %4064 = vmatpush1.msra.mxu0 0.0
    %4065 = vmatprep.subr.mxu0 0.0
    %4066 = vmatpush1.msra.mxu0 0.0
    %4067 = vmatprep.subr.mxu0 0.0
    %4068 = vmatpush1.msra.mxu0 0.0
    %4069 = vmatprep.subr.mxu0 0.0
    %4070 = vmatpush1.msra.mxu0 0.0
    %4071 = vmatprep.subr.mxu0 0.0
    %4072 = vmatpush1.msra.mxu0 0.0
    %4073 = vmatprep.subr.mxu0 0.0
    %4074 = vmatpush1.msra.mxu0 0.0
    %4075 = vmatprep.subr.mxu0 0.0
    %4076 = vmatpush1.msra.mxu0 0.0
    %4077 = vmatprep.subr.mxu0 0.0
    %4078 = vmatpush1.msra.mxu0 0.0
    %4079 = vmatprep.subr.mxu0 0.0
    %4080 = vmatpush1.msra.mxu0 0.0
    %4081 = vmatprep.subr.mxu0 0.0
    %4082 = vmatpush1.msra.mxu0 0.0
    %4083 = vmatprep.subr.mxu0 0.0
    %4084 = vmatpush1.msra.mxu0 0.0
    %4085 = vmatprep.subr.mxu0 0.0
    %4086 = vmatpush1.msra.mxu0 0.0
    %4087 = vmatprep.subr.mxu0 0.0
    %4088 = vmatpush1.msra.mxu0 0.0
    %4089 = vmatprep.subr.mxu0 0.0
    %4090 = vmatpush1.msra.mxu0 0.0
    %4091 = vmatprep.subr.mxu0 0.0
    %4092 = vmatpush1.msra.mxu0 0.0
    %4093 = vmatprep.subr.mxu0 0.0
    %4094 = vmatpush1.msra.mxu0 0.0
    %4095 = vmatprep.subr.mxu0 0.0
    %4096 = vmatpush1.msra.mxu0 0.0
    %4097 = vmatprep.subr.mxu0 0.0
    %4098 = vmatpush1.msra.mxu0 0.0
    %4099 = vmatprep.subr.mxu0 0.0
    %4100 = vmatpush1.msra.mxu0 0.0
    %4101 = vmatprep.subr.mxu0 0.0
    %4102 = vmatpush1.msra.mxu0 0.0
    %4103 = vmatprep.subr.mxu0 0.0
    %4104 = vmatpush1.msra.mxu0 0.0
    %4105 = vmatprep.subr.mxu0 0.0
    %4106 = vmatpush1.msra.mxu0 0.0
    %4107 = vmatprep.mubr.f32.mxu0 0.0
    %4108 = vmatmul.mubr.f32.gmra.mrb[0].mxu0 %v4041
    %v4109 = vpop.f32.mrb[0].mxu0
    %v4110 = vadd.f32 0.0, %v4109
    %v4111 = vpop.f32.mrb[0].mxu0
    %4112 = vdwg.mxu0
    %v4113 = vadd.f32 %v4040, %v4110
    %v4114 = vxor.u32 %v4113, 2147483648
    %v4115 = vmul.f32 %v4114, 1.442695
    %v4116 = vpow.pop %v4115
    %v4117 = vadd.f32 %v4116, 1.0
    %v4118 = vrcp.pop %v4117
    %v4119 = vmul.f32 1.0, %v4118
    %v4120 = vtanh.pop %v4113
    %v4121 = vmul.f32 %v4119, %v3925
    %4123 = vrot.lane.b32.xlu0 %v4120, 32
    %v4124 = vpop.permute.xlu0 %4123
    %v4126 = vmul.f32 %v4119, %v4124
    %4128 = vrot.lane.b32.xlu0 %v4126, 32
    %v4129 = vpop.permute.xlu0 %4128
    %v4131 = vadd.f32 %v4121, %v4129
    %v4132 = vtanh.pop %v4131
    %4134 = vrot.lane.b32.xlu0 %v4132, 32
    %v4135 = vpop.permute.xlu0 %4134
    %v4137 = vmul.f32 %v4119, %v4135
    %4139 = vrot.lane.b32.xlu0 %v4039, 64
    %v4140 = vpop.permute.xlu0 %4139
    %4142 = vst.msk [vmem:[#allocation4 + $0x38] sm:$0xff] %vm307, %v4140
    %4144 = vrot.lane.b32.xlu0 %v4137, 64
    %v4145 = vpop.permute.xlu0 %4144
    %4147 = vst.msk [vmem:[#allocation5] sm:$0xff] %vm307, %v4145
    %v4148 = vld [vmem:[#allocation4] sm:$0xff]
    %v4149 = vld [vmem:[#allocation4 + $0x8] sm:$0xff]
    %v4150 = vld [vmem:[#allocation4 + $0x10] sm:$0xff]
    %v4151 = vld [vmem:[#allocation4 + $0x18] sm:$0xff]
    %v4152 = vld [vmem:[#allocation4 + $0x20] sm:$0xff]
    %v4153 = vld [vmem:[#allocation4 + $0x28] sm:$0xff]
    %v4154 = vld [vmem:[#allocation4 + $0x30] sm:$0xff]
    %v4155 = vld [vmem:[#allocation4 + $0x38] sm:$0xff]
    %v4156 = vld [vmem:[#allocation5] sm:$0xff]
    %v4157 = vld [vmem:[#allocation5 + $0x8] sm:$0xff]
    %v4158 = vld [vmem:[#allocation5 + $0x10] sm:$0xff]
    %v4159 = vld [vmem:[#allocation5 + $0x18] sm:$0xff]
    %v4160 = vld [vmem:[#allocation5 + $0x20] sm:$0xff]
    %v4161 = vld [vmem:[#allocation5 + $0x28] sm:$0xff]
    %v4162 = vld [vmem:[#allocation5 + $0x30] sm:$0xff]
    %v4163 = vld [vmem:[#allocation5 + $0x38] sm:$0xff]
    %v4164 = vld [vmem:[#allocation6 + $0x140] sm:$0xff]
    %v4165 = vld [vmem:[#allocation6 + $0x148] sm:$0xff]
    %v4166 = vld [vmem:[#allocation6 + $0x150] sm:$0xff]
    %v4167 = vld [vmem:[#allocation6 + $0x158] sm:$0xff]
    %v4168 = vld [vmem:[#allocation6 + $0x160] sm:$0xff]
    %v4169 = vld [vmem:[#allocation6 + $0x168] sm:$0xff]
    %v4170 = vld [vmem:[#allocation6 + $0x170] sm:$0xff]
    %v4171 = vld [vmem:[#allocation6 + $0x178] sm:$0xff]
    %v4173 = vsel %vm307, %v4156, 0
    %v4176 = vsel %vm307, %v4157, 0
    %v4179 = vsel %vm307, %v4158, 0
    %v4182 = vsel %vm307, %v4159, 0
    %v4185 = vsel %vm307, %v4160, 0
    %v4188 = vsel %vm307, %v4161, 0
    %v4191 = vsel %vm307, %v4162, 0
    %v4194 = vsel %vm307, %v4163, 0
    %4196 = vmatprep.subr.mxu0 0.0
    %4197 = vmatpush1.msra.mxu0 %v4168
    %4198 = vmatprep.subr.mxu0 0.0
    %4199 = vmatpush1.msra.mxu0 %v4169
    %4200 = vmatprep.subr.mxu0 0.0
    %4201 = vmatpush1.msra.mxu0 %v4170
    %4202 = vmatprep.subr.mxu0 0.0
    %4203 = vmatpush1.msra.mxu0 %v4171
    %4204 = vmatprep.subr.mxu0 0.0
    %4205 = vmatpush1.msra.mxu0 0.0
    %4206 = vmatprep.subr.mxu0 0.0
    %4207 = vmatpush1.msra.mxu0 0.0
    %4208 = vmatprep.subr.mxu0 0.0
    %4209 = vmatpush1.msra.mxu0 0.0
    %4210 = vmatprep.subr.mxu0 0.0
    %4211 = vmatpush1.msra.mxu0 0.0
    %4212 = vmatprep.subr.mxu0 0.0
    %4213 = vmatpush1.msra.mxu0 0.0
    %4214 = vmatprep.subr.mxu0 0.0
    %4215 = vmatpush1.msra.mxu0 0.0
    %4216 = vmatprep.subr.mxu0 0.0
    %4217 = vmatpush1.msra.mxu0 0.0
    %4218 = vmatprep.subr.mxu0 0.0
    %4219 = vmatpush1.msra.mxu0 0.0
    %4220 = vmatprep.subr.mxu0 0.0
    %4221 = vmatpush1.msra.mxu0 0.0
    %4222 = vmatprep.subr.mxu0 0.0
    %4223 = vmatpush1.msra.mxu0 0.0
    %4224 = vmatprep.subr.mxu0 0.0
    %4225 = vmatpush1.msra.mxu0 0.0
    %4226 = vmatprep.subr.mxu0 0.0
    %4227 = vmatpush1.msra.mxu0 0.0
    %4228 = vmatprep.subr.mxu0 0.0
    %4229 = vmatpush1.msra.mxu0 0.0
    %4230 = vmatprep.subr.mxu0 0.0
    %4231 = vmatpush1.msra.mxu0 0.0
    %4232 = vmatprep.subr.mxu0 0.0
    %4233 = vmatpush1.msra.mxu0 0.0
    %4234 = vmatprep.subr.mxu0 0.0
    %4235 = vmatpush1.msra.mxu0 0.0
    %4236 = vmatprep.subr.mxu0 0.0
    %4237 = vmatpush1.msra.mxu0 0.0
    %4238 = vmatprep.subr.mxu0 0.0
    %4239 = vmatpush1.msra.mxu0 0.0
    %4240 = vmatprep.subr.mxu0 0.0
    %4241 = vmatpush1.msra.mxu0 0.0
    %4242 = vmatprep.subr.mxu0 0.0
    %4243 = vmatpush1.msra.mxu0 0.0
    %4244 = vmatprep.subr.mxu0 0.0
    %4245 = vmatpush1.msra.mxu0 0.0
    %4246 = vmatprep.subr.mxu0 0.0
    %4247 = vmatpush1.msra.mxu0 0.0
    %4248 = vmatprep.subr.mxu0 0.0
    %4249 = vmatpush1.msra.mxu0 0.0
    %4250 = vmatprep.subr.mxu0 0.0
    %4251 = vmatpush1.msra.mxu0 0.0
    %4252 = vmatprep.subr.mxu0 0.0
    %4253 = vmatpush1.msra.mxu0 0.0
    %4254 = vmatprep.subr.mxu0 0.0
    %4255 = vmatpush1.msra.mxu0 0.0
    %4256 = vmatprep.subr.mxu0 0.0
    %4257 = vmatpush1.msra.mxu0 0.0
    %4258 = vmatprep.subr.mxu0 0.0
    %4259 = vmatpush1.msra.mxu0 0.0
    %4260 = vmatprep.mubr.f32.mxu0 0.0
    %4261 = vmatmul.mubr.f32.gmra.mrb[0].mxu0 %v4173
    %v4262 = vpop.f32.mrb[0].mxu0
    %v4263 = vadd.f32 0.0, %v4262
    %v4264 = vpop.f32.mrb[0].mxu0
    %4265 = vmatprep.mubr.f32.mxu0 0.0
    %4266 = vmatmul.mubr.f32.gmra.mrb[0].mxu0 %v4176
    %v4267 = vpop.f32.mrb[0].mxu0
    %v4268 = vadd.f32 0.0, %v4267
    %v4269 = vpop.f32.mrb[0].mxu0
    %4270 = vmatprep.mubr.f32.mxu0 0.0
    %4271 = vmatmul.mubr.f32.gmra.mrb[0].mxu0 %v4179
    %v4272 = vpop.f32.mrb[0].mxu0
    %v4273 = vadd.f32 0.0, %v4272
    %v4274 = vpop.f32.mrb[0].mxu0
    %4275 = vmatprep.mubr.f32.mxu0 0.0
    %4276 = vmatmul.mubr.f32.gmra.mrb[0].mxu0 %v4182
    %v4277 = vpop.f32.mrb[0].mxu0
    %v4278 = vadd.f32 0.0, %v4277
    %v4279 = vpop.f32.mrb[0].mxu0
    %4280 = vmatprep.mubr.f32.mxu0 0.0
    %4281 = vmatmul.mubr.f32.gmra.mrb[0].mxu0 %v4185
    %v4282 = vpop.f32.mrb[0].mxu0
    %v4283 = vadd.f32 0.0, %v4282
    %v4284 = vpop.f32.mrb[0].mxu0
    %4285 = vmatprep.mubr.f32.mxu0 0.0
    %4286 = vmatmul.mubr.f32.gmra.mrb[0].mxu0 %v4188
    %v4287 = vpop.f32.mrb[0].mxu0
    %v4288 = vadd.f32 0.0, %v4287
    %v4289 = vpop.f32.mrb[0].mxu0
    %4290 = vmatprep.mubr.f32.mxu0 0.0
    %4291 = vmatmul.mubr.f32.gmra.mrb[0].mxu0 %v4191
    %v4292 = vpop.f32.mrb[0].mxu0
    %v4293 = vadd.f32 0.0, %v4292
    %v4294 = vpop.f32.mrb[0].mxu0
    %4295 = vmatprep.mubr.f32.mxu0 0.0
    %4296 = vmatmul.mubr.f32.gmra.mrb[0].mxu0 %v4194
    %v4297 = vpop.f32.mrb[0].mxu0
    %v4298 = vadd.f32 0.0, %v4297
    %v4299 = vpop.f32.mrb[0].mxu0
    %4300 = vdwg.mxu0
    %v4302 = vsel %vm307, %v4148, 0
    %v4305 = vsel %vm307, %v4149, 0
    %v4308 = vsel %vm307, %v4150, 0
    %v4311 = vsel %vm307, %v4151, 0
    %v4314 = vsel %vm307, %v4152, 0
    %v4317 = vsel %vm307, %v4153, 0
    %v4320 = vsel %vm307, %v4154, 0
    %v4323 = vsel %vm307, %v4155, 0
    %4325 = vmatprep.subr.mxu0 0.0
    %4326 = vmatpush1.msra.mxu0 %v4164
    %4327 = vmatprep.subr.mxu0 0.0
    %4328 = vmatpush1.msra.mxu0 %v4165
    %4329 = vmatprep.subr.mxu0 0.0
    %4330 = vmatpush1.msra.mxu0 %v4166
    %4331 = vmatprep.subr.mxu0 0.0
    %4332 = vmatpush1.msra.mxu0 %v4167
    %4333 = vmatprep.subr.mxu0 0.0
    %4334 = vmatpush1.msra.mxu0 0.0
    %4335 = vmatprep.subr.mxu0 0.0
    %4336 = vmatpush1.msra.mxu0 0.0
    %4337 = vmatprep.subr.mxu0 0.0
    %4338 = vmatpush1.msra.mxu0 0.0
    %4339 = vmatprep.subr.mxu0 0.0
    %4340 = vmatpush1.msra.mxu0 0.0
    %4341 = vmatprep.subr.mxu0 0.0
    %4342 = vmatpush1.msra.mxu0 0.0
    %4343 = vmatprep.subr.mxu0 0.0
    %4344 = vmatpush1.msra.mxu0 0.0
    %4345 = vmatprep.subr.mxu0 0.0
    %4346 = vmatpush1.msra.mxu0 0.0
    %4347 = vmatprep.subr.mxu0 0.0
    %4348 = vmatpush1.msra.mxu0 0.0
    %4349 = vmatprep.subr.mxu0 0.0
    %4350 = vmatpush1.msra.mxu0 0.0
    %4351 = vmatprep.subr.mxu0 0.0
    %4352 = vmatpush1.msra.mxu0 0.0
    %4353 = vmatprep.subr.mxu0 0.0
    %4354 = vmatpush1.msra.mxu0 0.0
    %4355 = vmatprep.subr.mxu0 0.0
    %4356 = vmatpush1.msra.mxu0 0.0
    %4357 = vmatprep.subr.mxu0 0.0
    %4358 = vmatpush1.msra.mxu0 0.0
    %4359 = vmatprep.subr.mxu0 0.0
    %4360 = vmatpush1.msra.mxu0 0.0
    %4361 = vmatprep.subr.mxu0 0.0
    %4362 = vmatpush1.msra.mxu0 0.0
    %4363 = vmatprep.subr.mxu0 0.0
    %4364 = vmatpush1.msra.mxu0 0.0
    %4365 = vmatprep.subr.mxu0 0.0
    %4366 = vmatpush1.msra.mxu0 0.0
    %4367 = vmatprep.subr.mxu0 0.0
    %4368 = vmatpush1.msra.mxu0 0.0
    %4369 = vmatprep.subr.mxu0 0.0
    %4370 = vmatpush1.msra.mxu0 0.0
    %4371 = vmatprep.subr.mxu0 0.0
    %4372 = vmatpush1.msra.mxu0 0.0
    %4373 = vmatprep.subr.mxu0 0.0
    %4374 = vmatpush1.msra.mxu0 0.0
    %4375 = vmatprep.subr.mxu0 0.0
    %4376 = vmatpush1.msra.mxu0 0.0
    %4377 = vmatprep.subr.mxu0 0.0
    %4378 = vmatpush1.msra.mxu0 0.0
    %4379 = vmatprep.subr.mxu0 0.0
    %4380 = vmatpush1.msra.mxu0 0.0
    %4381 = vmatprep.subr.mxu0 0.0
    %4382 = vmatpush1.msra.mxu0 0.0
    %4383 = vmatprep.subr.mxu0 0.0
    %4384 = vmatpush1.msra.mxu0 0.0
    %4385 = vmatprep.subr.mxu0 0.0
    %4386 = vmatpush1.msra.mxu0 0.0
    %4387 = vmatprep.subr.mxu0 0.0
    %4388 = vmatpush1.msra.mxu0 0.0
    %4389 = vmatprep.mubr.f32.mxu0 0.0
    %4390 = vmatmul.mubr.f32.gmra.mrb[0].mxu0 %v4302
    %v4391 = vpop.f32.mrb[0].mxu0
    %v4392 = vadd.f32 %v4263, %v4391
    %v4393 = vpop.f32.mrb[0].mxu0
    %4394 = vmatprep.mubr.f32.mxu0 0.0
    %4395 = vmatmul.mubr.f32.gmra.mrb[0].mxu0 %v4305
    %v4396 = vpop.f32.mrb[0].mxu0
    %v4397 = vadd.f32 %v4268, %v4396
    %v4398 = vpop.f32.mrb[0].mxu0
    %4399 = vmatprep.mubr.f32.mxu0 0.0
    %4400 = vmatmul.mubr.f32.gmra.mrb[0].mxu0 %v4308
    %v4401 = vpop.f32.mrb[0].mxu0
    %v4402 = vadd.f32 %v4273, %v4401
    %v4403 = vpop.f32.mrb[0].mxu0
    %4404 = vmatprep.mubr.f32.mxu0 0.0
    %4405 = vmatmul.mubr.f32.gmra.mrb[0].mxu0 %v4311
    %v4406 = vpop.f32.mrb[0].mxu0
    %v4407 = vadd.f32 %v4278, %v4406
    %v4408 = vpop.f32.mrb[0].mxu0
    %4409 = vmatprep.mubr.f32.mxu0 0.0
    %4410 = vmatmul.mubr.f32.gmra.mrb[0].mxu0 %v4314
    %v4411 = vpop.f32.mrb[0].mxu0
    %v4412 = vadd.f32 %v4283, %v4411
    %v4413 = vpop.f32.mrb[0].mxu0
    %4414 = vmatprep.mubr.f32.mxu0 0.0
    %4415 = vmatmul.mubr.f32.gmra.mrb[0].mxu0 %v4317
    %v4416 = vpop.f32.mrb[0].mxu0
    %v4417 = vadd.f32 %v4288, %v4416
    %v4418 = vpop.f32.mrb[0].mxu0
    %4419 = vmatprep.mubr.f32.mxu0 0.0
    %4420 = vmatmul.mubr.f32.gmra.mrb[0].mxu0 %v4320
    %v4421 = vpop.f32.mrb[0].mxu0
    %v4422 = vadd.f32 %v4293, %v4421
    %v4423 = vpop.f32.mrb[0].mxu0
    %4424 = vmatprep.mubr.f32.mxu0 0.0
    %4425 = vmatmul.mubr.f32.gmra.mrb[0].mxu0 %v4323
    %v4426 = vpop.f32.mrb[0].mxu0
    %v4427 = vadd.f32 %v4298, %v4426
    %v4428 = vpop.f32.mrb[0].mxu0
    %4429 = vdwg.mxu0
    %v4430 = vld [vmem:[#allocation6 + $0x180] sm:$0x1]
    %v4431 = vlaneseq
    %v4432 = vshrl.u32 %v4431, 7
    %v4433 = vsub.s32 0, %v4432
    %v4434 = vrot.slane %v4430, %v4433
    %v4435 = vadd.f32 %v4392, %v4434
    %v4436 = vadd.f32 %v4397, %v4434
    %v4437 = vadd.f32 %v4402, %v4434
    %v4438 = vadd.f32 %v4407, %v4434
    %v4439 = vadd.f32 %v4412, %v4434
    %v4440 = vadd.f32 %v4417, %v4434
    %v4441 = vadd.f32 %v4422, %v4434
    %v4442 = vadd.f32 %v4427, %v4434
    %4443 = vst [vmem:[%s2] sm:$0xff] %v4435
    %4444 = vst [vmem:[%s2 + $0x8] sm:$0xff] %v4436
    %4445 = vst [vmem:[%s2 + $0x10] sm:$0xff] %v4437
    %4446 = vst [vmem:[%s2 + $0x18] sm:$0xff] %v4438
    %4447 = vst [vmem:[%s2 + $0x20] sm:$0xff] %v4439
    %4448 = vst [vmem:[%s2 + $0x28] sm:$0xff] %v4440
    %4449 = vst [vmem:[%s2 + $0x30] sm:$0xff] %v4441
    %4450 = vst [vmem:[%s2 + $0x38] sm:$0xff] %v4442
    // Predicated region
    $region14: #{model_forward.1} parent=1 // pred_check
      _
    $region15: #{model_forward.1} parent=1 // pred_check_branch
      %4452 = sbr.rel (0) target = $region17
    $region16: #{model_forward.1} parent=1 // pred_region
      _
    $region17: #{model_forward.1} parent=1 // pred_fallthru
      _
    // Predicated region
    $region18: #{model_forward.1} parent=1 // pred_check
      _
    $region19: #{model_forward.1} parent=1 // pred_check_branch
      %4454 = sbr.rel (0) target = $region21
    $region20: #{model_forward.1} parent=1 // pred_region
      _
    $region21: #{model_forward.1} parent=1 // pred_fallthru
      _
    %4455 = vsyncpa [#allocation7], 1

</llo_original>
